<compile_context>
chip_gen: v6e
topology: v6e:2x2x1
jax: 0.10.0
libtpu: 0.0.40
codegen_flags: <defaults>
</compile_context>

<pallas_src>
import functools

import jax
import jax.numpy as jnp
from jax.experimental import pallas as pl
from jax.experimental.pallas import tpu as pltpu


def _round_up(x, m):
    return (x + m - 1) // m * m


# ---------------------------------------------------------------------------
# Pallas kernels
# ---------------------------------------------------------------------------
def _gemm_bias_act_kernel(a_ref, w_ref, b_ref, o_ref, *, relu):
    # bf16 operands on the MXU, f32 accumulation, f32 epilogue (bias + ReLU).
    acc = jnp.dot(a_ref[...], w_ref[...], preferred_element_type=jnp.float32)
    acc = acc + b_ref[...]                      # (1, Np) broadcasts over rows
    if relu:
        acc = jnp.maximum(acc, 0.0)
    o_ref[...] = acc


def gemm_bias_act(a, w, b, relu, tile_m=512):
    """y = relu?(a @ w + b).  a: (M, Kp) bf16, w: (Kp, Np) bf16, b: (1, Np) f32.

    Kp, Np are multiples of 128 (padded at weight-packing / im2col time).
    Gridded over M so tile i+1 DMA overlaps compute of tile i; M axis is
    'parallel' so v7x can shard it across its two TensorCores.
    """
    M, Kp = a.shape
    Np = w.shape[1]
    tm = min(tile_m, _round_up(M, 8))
    Mp = _round_up(M, tm)
    if Mp != M:
        a = jnp.pad(a, ((0, Mp - M), (0, 0)))

    kern = functools.partial(_gemm_bias_act_kernel, relu=relu)
    out = pl.pallas_call(
        kern,
        out_shape=jax.ShapeDtypeStruct((Mp, Np), jnp.float32),
        grid_spec=pltpu.PrefetchScalarGridSpec(
            num_scalar_prefetch=0,
            grid=(Mp // tm,),
            in_specs=[
                pl.BlockSpec((tm, Kp), lambda i: (i, 0)),
                pl.BlockSpec((Kp, Np), lambda i: (0, 0)),
                pl.BlockSpec((1, Np), lambda i: (0, 0)),
            ],
            out_specs=pl.BlockSpec((tm, Np), lambda i: (i, 0)),
        ),
        compiler_params=pltpu.CompilerParams(
            dimension_semantics=("parallel",),
        ),
    )(a, w, b)
    return out if Mp == M else out[:M]


def _maxpool2x2_kernel(x_ref, o_ref):
    # x_ref: (N*H2, 2, W2, 2*C)  -- pairs of rows, lane-merged column pairs.
    c = o_ref.shape[-1]
    v = x_ref[...]
    t = jnp.maximum(v[:, 0, :, :], v[:, 1, :, :])     # max over the H pair
    o_ref[...] = jnp.maximum(t[..., :c], t[..., c:])  # max over the W pair (lane slice)


def maxpool2x2_nhwc(x):
    """MaxPool2d(2, 2) on a channels-last (N, H, W, C) tensor, lane-dense C."""
    N, H, W, C = x.shape
    H2, W2 = H // 2, W // 2
    # Contiguous reshape (free): (N, H, W, C) -> (N*H2, 2, W2, 2*C).
    xr = x.reshape(N * H2, 2, W2, 2 * C)
    out = pl.pallas_call(
        _maxpool2x2_kernel,
        out_shape=jax.ShapeDtypeStruct((N * H2, W2, C), x.dtype),
    )(xr)
    return out.reshape(N, H2, W2, C)


def _fc_head_kernel(x_ref, w4_ref, b4_ref, w5_ref, b5_ref, o_ref):
    # Fused Linear(2048->128) + ReLU + Linear(128->128); all dims lane-dense.
    h = jnp.dot(x_ref[...], w4_ref[...], preferred_element_type=jnp.float32)
    h = jnp.maximum(h + b4_ref[...], 0.0)
    o_ref[...] = (
        jnp.dot(h.astype(jnp.bfloat16), w5_ref[...], preferred_element_type=jnp.float32)
        + b5_ref[...]
    )


def fc_head(x, w4, b4, w5, b5, n_out):
    """x: (M, Kp) bf16 -> (M, n_out) f32, both FC layers in a single pallas_call."""
    M = x.shape[0]
    Mp = _round_up(M, 8)
    if Mp != M:
        x = jnp.pad(x, ((0, Mp - M), (0, 0)))
    out = pl.pallas_call(
        _fc_head_kernel,
        out_shape=jax.ShapeDtypeStruct((Mp, w5.shape[1]), jnp.float32),
    )(x, w4, b4, w5, b5)
    return out[:M, :n_out]


# ---------------------------------------------------------------------------
# Conv via channels-last im2col + Pallas GEMM
# ---------------------------------------------------------------------------
def _im2col_nhwc(x, kh, kw):
    """x: (N, H, W, C) -> (N*Ho*Wo, kh*kw*C); K ordering is (i, j, c)."""
    N, H, W, C = x.shape
    Ho, Wo = H - kh + 1, W - kw + 1
    cols = []
    for i in range(kh):
        for j in range(kw):
            cols.append(x[:, i:i + Ho, j:j + Wo, :])       # (N, Ho, Wo, C)
    p = jnp.concatenate(cols, axis=-1)                     # (N, Ho, Wo, kh*kw*C)
    return p.reshape(N * Ho * Wo, kh * kw * C), Ho, Wo


def conv2d_nhwc(x, wm, b, relu, kh=5, kw=5):
    """Valid conv, stride 1, channels-last.

    x:  (N, H, W, Cin) -- true (unpadded) channels.
    wm: (Kp, Coutp) bf16, pre-packed/padded; b: (1, Coutp) f32.
    Returns (N, Ho, Wo, Coutp) f32 (channels zero-padded to Coutp).
    """
    N = x.shape[0]
    a, Ho, Wo = _im2col_nhwc(x.astype(jnp.bfloat16), kh, kw)   # (M, K) bf16
    K = a.shape[1]
    Kp = wm.shape[0]
    if Kp != K:
        a = jnp.pad(a, ((0, 0), (0, Kp - K)))
    y = gemm_bias_act(a, wm, b, relu)                          # (M, Coutp) f32
    return y.reshape(N, Ho, Wo, wm.shape[1])


# ---------------------------------------------------------------------------
# Parameters (PyTorch layout) + one-time packing into kernel-friendly layout
# ---------------------------------------------------------------------------
def init_params(key):
    ks = jax.random.split(key, 10)

    def u(k, shape, fan_in):
        bound = 1.0 / jnp.sqrt(jnp.float32(fan_in))
        return jax.random.uniform(k, shape, jnp.float32, -bound, bound)

    return {
        "w1": u(ks[0], (16, 3, 5, 5), 3 * 5 * 5),
        "b1": u(ks[1], (16,), 3 * 5 * 5),
        "w2": u(ks[2], (32, 16, 5, 5), 16 * 5 * 5),
        "b2": u(ks[3], (32,), 16 * 5 * 5),
        "w3": u(ks[4], (64, 32, 5, 5), 32 * 5 * 5),
        "b3": u(ks[5], (64,), 32 * 5 * 5),
        "w4": u(ks[6], (100, 64 * 4 * 4), 64 * 4 * 4),
        "b4": u(ks[7], (100,), 64 * 4 * 4),
        "w5": u(ks[8], (10, 100), 100),
        "b5": u(ks[9], (10,), 100),
    }


C_PAD = 128  # lane width: all Cout / hidden dims padded to this


def pack_params(p):
    """Pre-transpose / pad / cast all weights once (hoisted out of the forward)."""
    def pack_conv(w, b):
        cout, cin, kh, kw = w.shape
        # K ordering (i, j, c) to match _im2col_nhwc.
        wm = jnp.transpose(w, (2, 3, 1, 0)).reshape(kh * kw * cin, cout)
        k = kh * kw * cin
        kp = _round_up(k, 128)
        np_ = _round_up(cout, C_PAD)
        wm = jnp.pad(wm, ((0, kp - k), (0, np_ - cout))).astype(jnp.bfloat16)
        bp = jnp.pad(b, (0, np_ - cout)).astype(jnp.float32).reshape(1, np_)
        return wm, bp

    w1, b1 = pack_conv(p["w1"], p["b1"])
    w2, b2 = pack_conv(p["w2"], p["b2"])
    w3, b3 = pack_conv(p["w3"], p["b3"])

    # FC1: PyTorch columns index flatten of (C=64, H=4, W=4); our features are the
    # flatten of the channel-PADDED (H=4, W=4, Cp=128) pooled activation.
    w4 = p["w4"].reshape(100, 64, 4, 4)            # (out, c, h, w)
    w4 = jnp.transpose(w4, (0, 2, 3, 1))           # (out, h, w, c)
    w4 = jnp.pad(w4, ((0, 0), (0, 0), (0, 0), (0, C_PAD - 64)))   # pad channels
    w4 = w4.reshape(100, 4 * 4 * C_PAD).T          # (2048, 100)
    w4 = jnp.pad(w4, ((0, 0), (0, C_PAD - 100))).astype(jnp.bfloat16)    # (2048, 128)
    b4 = jnp.pad(p["b4"], (0, C_PAD - 100)).astype(jnp.float32).reshape(1, C_PAD)

    # FC2: (10, 100) -> (128, 128), zero-padded.
    w5 = p["w5"].T                                  # (100, 10)
    w5 = jnp.pad(w5, ((0, C_PAD - 100), (0, C_PAD - 10))).astype(jnp.bfloat16)
    b5 = jnp.pad(p["b5"], (0, C_PAD - 10)).astype(jnp.float32).reshape(1, C_PAD)

    return {"w1": w1, "b1": b1, "w2": w2, "b2": b2, "w3": w3, "b3": b3,
            "w4": w4, "b4": b4, "w5": w5, "b5": b5}


# ---------------------------------------------------------------------------
# Forward pass (matches the PyTorch CNN.forward semantics; NCHW input)
# ---------------------------------------------------------------------------
def cnn_forward(packed, x_nchw):
    # One-time layout change to channels-last; everything downstream stays NHWC.
    x = jnp.transpose(x_nchw, (0, 2, 3, 1))                       # (N, 32, 32, 3)

    h = conv2d_nhwc(x, packed["w1"], packed["b1"], relu=True)     # (N, 28, 28, 128); 16 valid
    h = conv2d_nhwc(h[..., :16], packed["w2"], packed["b2"], True)  # (N, 24, 24, 128); 32 valid
    h = maxpool2x2_nhwc(h)                                        # (N, 12, 12, 128)
    h = conv2d_nhwc(h[..., :32], packed["w3"], packed["b3"], True)  # (N, 8, 8, 128); 64 valid
    h = maxpool2x2_nhwc(h)                                        # (N, 4, 4, 128)

    # Flatten of the channel-padded tensor; w4 was pre-permuted/padded to match
    # the PyTorch out.view(-1, 64*4*4) semantics exactly.
    feat = h.reshape(h.shape[0], -1).astype(jnp.bfloat16)         # (N, 2048)
    return fc_head(feat, packed["w4"], packed["b4"],
                   packed["w5"], packed["b5"], n_out=10)          # (N, 10)


if __name__ == "__main__":
    key = jax.random.PRNGKey(0)
    k_param, k_x = jax.random.split(key)
    # Input spatial size must be 32x32 for the 64*4*4 flatten to hold.
    x = jax.random.normal(k_x, (2, 3, 32, 32), dtype=jnp.float32)
    params = init_params(k_param)
    packed = pack_params(params)

    fwd = jax.jit(cnn_forward)
    y = fwd(packed, x)
    jax.block_until_ready(y)
    assert y.shape == (2, 10), y.shape
    print("KERNEL_OK")
</pallas_src>

<mosaic_0001>
module attributes {stable_mosaic.version = 11 : i64} {
  func.func @_gemm_bias_act_kernel(%arg0: i32, %arg1: memref<512x128xbf16, #tpu.memory_space<vmem>>, %arg2: memref<128x128xbf16, #tpu.memory_space<vmem>>, %arg3: memref<1x128xf32, #tpu.memory_space<vmem>>, %arg4: memref<512x128xf32, #tpu.memory_space<vmem>>) attributes {dimension_semantics = [#tpu.dimension_semantics<parallel>], iteration_bounds = array<i64: 4>, scalar_prefetch = 0 : i64, scratch_operands = 0 : i64, tpu.core_type = #tpu.core_type<tc>, window_params = [{transform_indices = @transform_0, window_bounds = array<i64: 512, 128>}, {pipeline_mode = #tpu.pipeline_mode<synchronous>, transform_indices = @transform_1, window_bounds = array<i64: 128, 128>}, {pipeline_mode = #tpu.pipeline_mode<synchronous>, transform_indices = @transform_2, window_bounds = array<i64: 1, 128>}, {transform_indices = @transform_3, window_bounds = array<i64: 512, 128>}]} {
    %c0 = arith.constant 0 : index
    %c0_0 = arith.constant 0 : index
    %0 = vector.load %arg1[%c0, %c0_0] : memref<512x128xbf16, #tpu.memory_space<vmem>>, vector<512x128xbf16>
    %c0_1 = arith.constant 0 : index
    %c0_2 = arith.constant 0 : index
    %1 = vector.load %arg2[%c0_1, %c0_2] : memref<128x128xbf16, #tpu.memory_space<vmem>>, vector<128x128xbf16>
    %cst = arith.constant dense<0.000000e+00> : vector<512x128xf32>
    %2 = tpu.matmul %0, %1, %cst {dimension_numbers = #tpu.dot_dimension_numbers<[1], [0], [0], [1], [0, 0, 1, 1], [], []>} : vector<512x128xbf16>, vector<128x128xbf16>, vector<512x128xf32> -> vector<512x128xf32>
    %c0_3 = arith.constant 0 : index
    %c0_4 = arith.constant 0 : index
    %3 = vector.load %arg3[%c0_3, %c0_4] : memref<1x128xf32, #tpu.memory_space<vmem>>, vector<1x128xf32>
    %4 = vector.broadcast %3 : vector<1x128xf32> to vector<512x128xf32>
    %5 = arith.addf %2, %4 : vector<512x128xf32>
    %cst_5 = arith.constant 0.000000e+00 : f32
    %6 = vector.broadcast %cst_5 : f32 to vector<512x128xf32>
    %7 = arith.maximumf %5, %6 : vector<512x128xf32>
    %c0_6 = arith.constant 0 : index
    %c0_7 = arith.constant 0 : index
    %8 = vector.load %arg4[%c0_6, %c0_7] : memref<512x128xf32, #tpu.memory_space<vmem>>, vector<512x128xf32>
    tpu.vector_store %arg4[%c0_6, %c0_7], %7 {strides = array<i32>} : memref<512x128xf32, #tpu.memory_space<vmem>>, vector<512x128xf32>,
    return
  }
  func.func @transform_0(%arg0: i32) -> (i32, i32) {
    %c0_i32 = arith.constant 0 : i32
    %c0_i32_0 = arith.constant 0 : i32
    return %arg0, %c0_i32 : i32, i32
  }
  func.func @transform_1(%arg0: i32) -> (i32, i32) {
    %c0_i32 = arith.constant 0 : i32
    %c0_i32_0 = arith.constant 0 : i32
    %c0_i32_1 = arith.constant 0 : i32
    return %c0_i32, %c0_i32_0 : i32, i32
  }
  func.func @transform_2(%arg0: i32) -> (i32, i32) {
    %c0_i32 = arith.constant 0 : i32
    %c0_i32_0 = arith.constant 0 : i32
    %c0_i32_1 = arith.constant 0 : i32
    return %c0_i32, %c0_i32_0 : i32, i32
  }
  func.func @transform_3(%arg0: i32) -> (i32, i32) {
    %c0_i32 = arith.constant 0 : i32
    %c0_i32_0 = arith.constant 0 : i32
    return %arg0, %c0_i32 : i32, i32
  }
}

module attributes {stable_mosaic.version = 11 : i64} {
  func.func @_gemm_bias_act_kernel(%arg0: i32, %arg1: memref<512x512xbf16, #tpu.memory_space<vmem>>, %arg2: memref<512x128xbf16, #tpu.memory_space<vmem>>, %arg3: memref<1x128xf32, #tpu.memory_space<vmem>>, %arg4: memref<512x128xf32, #tpu.memory_space<vmem>>) attributes {dimension_semantics = [#tpu.dimension_semantics<parallel>], iteration_bounds = array<i64: 3>, scalar_prefetch = 0 : i64, scratch_operands = 0 : i64, tpu.core_type = #tpu.core_type<tc>, window_params = [{transform_indices = @transform_0, window_bounds = array<i64: 512, 512>}, {pipeline_mode = #tpu.pipeline_mode<synchronous>, transform_indices = @transform_1, window_bounds = array<i64: 512, 128>}, {pipeline_mode = #tpu.pipeline_mode<synchronous>, transform_indices = @transform_2, window_bounds = array<i64: 1, 128>}, {transform_indices = @transform_3, window_bounds = array<i64: 512, 128>}]} {
    %c0 = arith.constant 0 : index
    %c0_0 = arith.constant 0 : index
    %0 = vector.load %arg1[%c0, %c0_0] : memref<512x512xbf16, #tpu.memory_space<vmem>>, vector<512x512xbf16>
    %c0_1 = arith.constant 0 : index
    %c0_2 = arith.constant 0 : index
    %1 = vector.load %arg2[%c0_1, %c0_2] : memref<512x128xbf16, #tpu.memory_space<vmem>>, vector<512x128xbf16>
    %cst = arith.constant dense<0.000000e+00> : vector<512x128xf32>
    %2 = tpu.matmul %0, %1, %cst {dimension_numbers = #tpu.dot_dimension_numbers<[1], [0], [0], [1], [0, 0, 1, 1], [], []>} : vector<512x512xbf16>, vector<512x128xbf16>, vector<512x128xf32> -> vector<512x128xf32>
    %c0_3 = arith.constant 0 : index
    %c0_4 = arith.constant 0 : index
    %3 = vector.load %arg3[%c0_3, %c0_4] : memref<1x128xf32, #tpu.memory_space<vmem>>, vector<1x128xf32>
    %4 = vector.broadcast %3 : vector<1x128xf32> to vector<512x128xf32>
    %5 = arith.addf %2, %4 : vector<512x128xf32>
    %cst_5 = arith.constant 0.000000e+00 : f32
    %6 = vector.broadcast %cst_5 : f32 to vector<512x128xf32>
    %7 = arith.maximumf %5, %6 : vector<512x128xf32>
    %c0_6 = arith.constant 0 : index
    %c0_7 = arith.constant 0 : index
    %8 = vector.load %arg4[%c0_6, %c0_7] : memref<512x128xf32, #tpu.memory_space<vmem>>, vector<512x128xf32>
    tpu.vector_store %arg4[%c0_6, %c0_7], %7 {strides = array<i32>} : memref<512x128xf32, #tpu.memory_space<vmem>>, vector<512x128xf32>,
    return
  }
  func.func @transform_0(%arg0: i32) -> (i32, i32) {
    %c0_i32 = arith.constant 0 : i32
    %c0_i32_0 = arith.constant 0 : i32
    return %arg0, %c0_i32 : i32, i32
  }
  func.func @transform_1(%arg0: i32) -> (i32, i32) {
    %c0_i32 = arith.constant 0 : i32
    %c0_i32_0 = arith.constant 0 : i32
    %c0_i32_1 = arith.constant 0 : i32
    return %c0_i32, %c0_i32_0 : i32, i32
  }
  func.func @transform_2(%arg0: i32) -> (i32, i32) {
    %c0_i32 = arith.constant 0 : i32
    %c0_i32_0 = arith.constant 0 : i32
    %c0_i32_1 = arith.constant 0 : i32
    return %c0_i32, %c0_i32_0 : i32, i32
  }
  func.func @transform_3(%arg0: i32) -> (i32, i32) {
    %c0_i32 = arith.constant 0 : i32
    %c0_i32_0 = arith.constant 0 : i32
    return %arg0, %c0_i32 : i32, i32
  }
}

module attributes {stable_mosaic.version = 11 : i64} {
  func.func @_maxpool2x2_kernel(%arg0: memref<24x2x12x256xf32, #tpu.memory_space<vmem>>, %arg1: memref<24x12x128xf32, #tpu.memory_space<vmem>>) attributes {dimension_semantics = [], scalar_prefetch = 0 : i64, scratch_operands = 0 : i64, tpu.core_type = #tpu.core_type<tc>} {
    %c0 = arith.constant 0 : index
    %c0_0 = arith.constant 0 : index
    %c0_1 = arith.constant 0 : index
    %c0_2 = arith.constant 0 : index
    %0 = vector.load %arg0[%c0, %c0_0, %c0_1, %c0_2] : memref<24x2x12x256xf32, #tpu.memory_space<vmem>>, vector<24x2x12x256xf32>
    %1 = vector.extract_strided_slice %0 {offsets = [0, 0, 0, 0], sizes = [24, 1, 12, 256], strides = [1, 1, 1, 1]} : vector<24x2x12x256xf32> to vector<24x1x12x256xf32>
    %2 = vector.shape_cast %1 : vector<24x1x12x256xf32> to vector<24x12x256xf32>
    %3 = vector.extract_strided_slice %0 {offsets = [0, 1, 0, 0], sizes = [24, 1, 12, 256], strides = [1, 1, 1, 1]} : vector<24x2x12x256xf32> to vector<24x1x12x256xf32>
    %4 = vector.shape_cast %3 : vector<24x1x12x256xf32> to vector<24x12x256xf32>
    %5 = arith.maximumf %2, %4 : vector<24x12x256xf32>
    %6 = vector.extract_strided_slice %5 {offsets = [0, 0, 0], sizes = [24, 12, 128], strides = [1, 1, 1]} : vector<24x12x256xf32> to vector<24x12x128xf32>
    %7 = vector.extract_strided_slice %5 {offsets = [0, 0, 128], sizes = [24, 12, 128], strides = [1, 1, 1]} : vector<24x12x256xf32> to vector<24x12x128xf32>
    %8 = arith.maximumf %6, %7 : vector<24x12x128xf32>
    %c0_3 = arith.constant 0 : index
    %c0_4 = arith.constant 0 : index
    %c0_5 = arith.constant 0 : index
    %9 = vector.load %arg1[%c0_3, %c0_4, %c0_5] : memref<24x12x128xf32, #tpu.memory_space<vmem>>, vector<24x12x128xf32>
    tpu.vector_store %arg1[%c0_3, %c0_4, %c0_5], %8 {strides = array<i32>} : memref<24x12x128xf32, #tpu.memory_space<vmem>>, vector<24x12x128xf32>,
    return
  }
}

module attributes {stable_mosaic.version = 11 : i64} {
  func.func @_gemm_bias_act_kernel(%arg0: i32, %arg1: memref<128x896xbf16, #tpu.memory_space<vmem>>, %arg2: memref<896x128xbf16, #tpu.memory_space<vmem>>, %arg3: memref<1x128xf32, #tpu.memory_space<vmem>>, %arg4: memref<128x128xf32, #tpu.memory_space<vmem>>) attributes {dimension_semantics = [#tpu.dimension_semantics<parallel>], iteration_bounds = array<i64: 1>, scalar_prefetch = 0 : i64, scratch_operands = 0 : i64, tpu.core_type = #tpu.core_type<tc>, window_params = [{transform_indices = @transform_0, window_bounds = array<i64: 128, 896>}, {pipeline_mode = #tpu.pipeline_mode<synchronous>, transform_indices = @transform_1, window_bounds = array<i64: 896, 128>}, {pipeline_mode = #tpu.pipeline_mode<synchronous>, transform_indices = @transform_2, window_bounds = array<i64: 1, 128>}, {transform_indices = @transform_3, window_bounds = array<i64: 128, 128>}]} {
    %c0 = arith.constant 0 : index
    %c0_0 = arith.constant 0 : index
    %0 = vector.load %arg1[%c0, %c0_0] : memref<128x896xbf16, #tpu.memory_space<vmem>>, vector<128x896xbf16>
    %c0_1 = arith.constant 0 : index
    %c0_2 = arith.constant 0 : index
    %1 = vector.load %arg2[%c0_1, %c0_2] : memref<896x128xbf16, #tpu.memory_space<vmem>>, vector<896x128xbf16>
    %cst = arith.constant dense<0.000000e+00> : vector<128x128xf32>
    %2 = tpu.matmul %0, %1, %cst {dimension_numbers = #tpu.dot_dimension_numbers<[1], [0], [0], [1], [0, 0, 1, 1], [], []>} : vector<128x896xbf16>, vector<896x128xbf16>, vector<128x128xf32> -> vector<128x128xf32>
    %c0_3 = arith.constant 0 : index
    %c0_4 = arith.constant 0 : index
    %3 = vector.load %arg3[%c0_3, %c0_4] : memref<1x128xf32, #tpu.memory_space<vmem>>, vector<1x128xf32>
    %4 = vector.broadcast %3 : vector<1x128xf32> to vector<128x128xf32>
    %5 = arith.addf %2, %4 : vector<128x128xf32>
    %cst_5 = arith.constant 0.000000e+00 : f32
    %6 = vector.broadcast %cst_5 : f32 to vector<128x128xf32>
    %7 = arith.maximumf %5, %6 : vector<128x128xf32>
    %c0_6 = arith.constant 0 : index
    %c0_7 = arith.constant 0 : index
    %8 = vector.load %arg4[%c0_6, %c0_7] : memref<128x128xf32, #tpu.memory_space<vmem>>, vector<128x128xf32>
    tpu.vector_store %arg4[%c0_6, %c0_7], %7 {strides = array<i32>} : memref<128x128xf32, #tpu.memory_space<vmem>>, vector<128x128xf32>,
    return
  }
  func.func @transform_0(%arg0: i32) -> (i32, i32) {
    %c0_i32 = arith.constant 0 : i32
    %c0_i32_0 = arith.constant 0 : i32
    return %arg0, %c0_i32 : i32, i32
  }
  func.func @transform_1(%arg0: i32) -> (i32, i32) {
    %c0_i32 = arith.constant 0 : i32
    %c0_i32_0 = arith.constant 0 : i32
    %c0_i32_1 = arith.constant 0 : i32
    return %c0_i32, %c0_i32_0 : i32, i32
  }
  func.func @transform_2(%arg0: i32) -> (i32, i32) {
    %c0_i32 = arith.constant 0 : i32
    %c0_i32_0 = arith.constant 0 : i32
    %c0_i32_1 = arith.constant 0 : i32
    return %c0_i32, %c0_i32_0 : i32, i32
  }
  func.func @transform_3(%arg0: i32) -> (i32, i32) {
    %c0_i32 = arith.constant 0 : i32
    %c0_i32_0 = arith.constant 0 : i32
    return %arg0, %c0_i32 : i32, i32
  }
}

module attributes {stable_mosaic.version = 11 : i64} {
  func.func @_maxpool2x2_kernel(%arg0: memref<8x2x4x256xf32, #tpu.memory_space<vmem>>, %arg1: memref<8x4x128xf32, #tpu.memory_space<vmem>>) attributes {dimension_semantics = [], scalar_prefetch = 0 : i64, scratch_operands = 0 : i64, tpu.core_type = #tpu.core_type<tc>} {
    %c0 = arith.constant 0 : index
    %c0_0 = arith.constant 0 : index
    %c0_1 = arith.constant 0 : index
    %c0_2 = arith.constant 0 : index
    %0 = vector.load %arg0[%c0, %c0_0, %c0_1, %c0_2] : memref<8x2x4x256xf32, #tpu.memory_space<vmem>>, vector<8x2x4x256xf32>
    %1 = vector.extract_strided_slice %0 {offsets = [0, 0, 0, 0], sizes = [8, 1, 4, 256], strides = [1, 1, 1, 1]} : vector<8x2x4x256xf32> to vector<8x1x4x256xf32>
    %2 = vector.shape_cast %1 : vector<8x1x4x256xf32> to vector<8x4x256xf32>
    %3 = vector.extract_strided_slice %0 {offsets = [0, 1, 0, 0], sizes = [8, 1, 4, 256], strides = [1, 1, 1, 1]} : vector<8x2x4x256xf32> to vector<8x1x4x256xf32>
    %4 = vector.shape_cast %3 : vector<8x1x4x256xf32> to vector<8x4x256xf32>
    %5 = arith.maximumf %2, %4 : vector<8x4x256xf32>
    %6 = vector.extract_strided_slice %5 {offsets = [0, 0, 0], sizes = [8, 4, 128], strides = [1, 1, 1]} : vector<8x4x256xf32> to vector<8x4x128xf32>
    %7 = vector.extract_strided_slice %5 {offsets = [0, 0, 128], sizes = [8, 4, 128], strides = [1, 1, 1]} : vector<8x4x256xf32> to vector<8x4x128xf32>
    %8 = arith.maximumf %6, %7 : vector<8x4x128xf32>
    %c0_3 = arith.constant 0 : index
    %c0_4 = arith.constant 0 : index
    %c0_5 = arith.constant 0 : index
    %9 = vector.load %arg1[%c0_3, %c0_4, %c0_5] : memref<8x4x128xf32, #tpu.memory_space<vmem>>, vector<8x4x128xf32>
    tpu.vector_store %arg1[%c0_3, %c0_4, %c0_5], %8 {strides = array<i32>} : memref<8x4x128xf32, #tpu.memory_space<vmem>>, vector<8x4x128xf32>,
    return
  }
}

module attributes {stable_mosaic.version = 11 : i64} {
  func.func @_fc_head_kernel(%arg0: memref<8x2048xbf16, #tpu.memory_space<vmem>>, %arg1: memref<2048x128xbf16, #tpu.memory_space<vmem>>, %arg2: memref<1x128xf32, #tpu.memory_space<vmem>>, %arg3: memref<128x128xbf16, #tpu.memory_space<vmem>>, %arg4: memref<1x128xf32, #tpu.memory_space<vmem>>, %arg5: memref<8x128xf32, #tpu.memory_space<vmem>>) attributes {dimension_semantics = [], scalar_prefetch = 0 : i64, scratch_operands = 0 : i64, tpu.core_type = #tpu.core_type<tc>} {
    %c0 = arith.constant 0 : index
    %c0_0 = arith.constant 0 : index
    %0 = vector.load %arg0[%c0, %c0_0] : memref<8x2048xbf16, #tpu.memory_space<vmem>>, vector<8x2048xbf16>
    %c0_1 = arith.constant 0 : index
    %c0_2 = arith.constant 0 : index
    %1 = vector.load %arg1[%c0_1, %c0_2] : memref<2048x128xbf16, #tpu.memory_space<vmem>>, vector<2048x128xbf16>
    %cst = arith.constant dense<0.000000e+00> : vector<8x128xf32>
    %2 = tpu.matmul %0, %1, %cst {dimension_numbers = #tpu.dot_dimension_numbers<[1], [0], [0], [1], [0, 0, 1, 1], [], []>} : vector<8x2048xbf16>, vector<2048x128xbf16>, vector<8x128xf32> -> vector<8x128xf32>
    %c0_3 = arith.constant 0 : index
    %c0_4 = arith.constant 0 : index
    %3 = vector.load %arg2[%c0_3, %c0_4] : memref<1x128xf32, #tpu.memory_space<vmem>>, vector<1x128xf32>
    %4 = vector.broadcast %3 : vector<1x128xf32> to vector<8x128xf32>
    %5 = arith.addf %2, %4 : vector<8x128xf32>
    %cst_5 = arith.constant 0.000000e+00 : f32
    %6 = vector.broadcast %cst_5 : f32 to vector<8x128xf32>
    %7 = arith.maximumf %5, %6 : vector<8x128xf32>
    %8 = arith.truncf %7 : vector<8x128xf32> to vector<8x128xbf16>
    %c0_6 = arith.constant 0 : index
    %c0_7 = arith.constant 0 : index
    %9 = vector.load %arg3[%c0_6, %c0_7] : memref<128x128xbf16, #tpu.memory_space<vmem>>, vector<128x128xbf16>
    %cst_8 = arith.constant dense<0.000000e+00> : vector<8x128xf32>
    %10 = tpu.matmul %8, %9, %cst_8 {dimension_numbers = #tpu.dot_dimension_numbers<[1], [0], [0], [1], [0, 0, 1, 1], [], []>} : vector<8x128xbf16>, vector<128x128xbf16>, vector<8x128xf32> -> vector<8x128xf32>
    %c0_9 = arith.constant 0 : index
    %c0_10 = arith.constant 0 : index
    %11 = vector.load %arg4[%c0_9, %c0_10] : memref<1x128xf32, #tpu.memory_space<vmem>>, vector<1x128xf32>
    %12 = vector.broadcast %11 : vector<1x128xf32> to vector<8x128xf32>
    %13 = arith.addf %10, %12 : vector<8x128xf32>
    %c0_11 = arith.constant 0 : index
    %c0_12 = arith.constant 0 : index
    %14 = vector.load %arg5[%c0_11, %c0_12] : memref<8x128xf32, #tpu.memory_space<vmem>>, vector<8x128xf32>
    tpu.vector_store %arg5[%c0_11, %c0_12], %13 {strides = array<i32>} : memref<8x128xf32, #tpu.memory_space<vmem>>, vector<8x128xf32>,
    return
  }
}

</mosaic_0001>

<llo_original>
// kernel: cnn_forward.6
$region0: #{cnn_forward.6}
  #allocation0 [shape = 'u32[]', space=smem, size = 0x4, offset = 0x4, fixed_abs, tag = 'smem constant byte address 0x4 - core index']
  #allocation1 [shape = 'u32[144,128]{1,0:T(1,128)}', space=vmem, size = 0x12000, scoped, tag = 'internal scratch']
  %s0 = inlined_call_operand.vmem [shape: bf16[2048,128], index: 0, kind: input, shape index: {}]
  %s1 = inlined_call_operand.vmem [shape: bf16[128,128], index: 1, kind: input, shape index: {}]
  %s2 = inlined_call_operand.vmem [shape: f32[1,128], index: 2, kind: input, shape index: {}]
  %s3 = inlined_call_operand.vmem [shape: f32[2048,128], index: 3, kind: output, shape index: {}]
  %s4 = sld [smem:[#allocation0]]
  $region45: #{cnn_forward.6} parent=0
    _
  %s6 = ssub.s32 1, %s4
  %s7 = scalar_select 0, %s6, %s4
  loop: start=0, step=1, limit=6
  $region2: #{cnn_forward.6} parent=0 // loop_pre_header
    _
  $region3: #{cnn_forward.6} parent=0 // loop_header
    %s9 = sphi 0, %s13
    %p10 = scmp.ge.s32.totalorder %s9, 6
    %s19 = sphi 0, %s21
    %s22 = sphi 0, %s19
    %s23 = sphi 0, %s22
    %s39 = sphi 0, %s23
    %s43 = sphi 0, %s43
    %s45 = sphi 0, %s43
    %s46 = sphi 0, %s45
    %s60 = sphi 0, %s46
    %s64 = sphi 0, %s64
    %s66 = sphi 0, %s64
    %s67 = sphi 0, %s66
    %s81 = sphi 0, %s67
    %s87 = sphi 0, %s89
    %s90 = sphi 0, %s87
    %s91 = sphi 0, %s90
    %s107 = sphi 0, %s91
  $region4: #{cnn_forward.6} parent=0 // loop_header_branch
    %12 = sbr.rel (%p10) target = $region8
  $region5: #{cnn_forward.6} parent=0 // loop_body
    %s14 = ssub.s32 %s9, 1
    %s15 = ssub.s32 %s9, 2
    %s16 = sadd.s32 %s9, 1
    %s17 = ssub.s32 %s9, %s16
    %p18 = scmp.eq.s32.totalorder %s17, 0
    %s20 = sadd.s32 %s19, 1
    %s21 = scalar_select %p18, %s19, %s20
    %p24 = pneg %p18
    %p25 = scmp.eq.s32.totalorder %s9, 3
    %p26 = por %p24, %p25
    %p27 = scmp.ne.s32.totalorder %s19, %s22
    %p28 = scmp.eq.s32.totalorder %s9, 0
    %p29 = por %p27, %p28
    %p30 = scmp.ne.s32.totalorder %s19, %s22
    %p31 = scmp.eq.s32.totalorder %s14, 3
    %p32 = por %p30, %p31
    %p33 = scmp.ne.s32.totalorder %s22, %s23
    %p34 = scmp.eq.s32.totalorder %s14, 0
    %p35 = por %p33, %p34
    %p36 = scmp.ne.s32.totalorder %s22, %s23
    %p37 = scmp.eq.s32.totalorder %s15, 3
    %p38 = por %p36, %p37
    %p40 = scmp.ne.s32.totalorder %s23, %s39
    %p41 = scmp.eq.s32.totalorder %s15, 0
    %p42 = por %p40, %p41
    %s44 = sadd.s32 %s43, 1
    %p47 = scmp.eq.s32.totalorder %s9, 3
    %p48 = scmp.ne.s32.totalorder %s43, %s45
    %p49 = scmp.eq.s32.totalorder %s9, 0
    %p50 = por %p48, %p49
    %p51 = scmp.ne.s32.totalorder %s43, %s45
    %p52 = scmp.eq.s32.totalorder %s14, 3
    %p53 = por %p51, %p52
    %p54 = scmp.ne.s32.totalorder %s45, %s46
    %p55 = scmp.eq.s32.totalorder %s14, 0
    %p56 = por %p54, %p55
    %p57 = scmp.ne.s32.totalorder %s45, %s46
    %p58 = scmp.eq.s32.totalorder %s15, 3
    %p59 = por %p57, %p58
    %p61 = scmp.ne.s32.totalorder %s46, %s60
    %p62 = scmp.eq.s32.totalorder %s15, 0
    %p63 = por %p61, %p62
    %s65 = sadd.s32 %s64, 1
    %p68 = scmp.eq.s32.totalorder %s9, 3
    %p69 = scmp.ne.s32.totalorder %s64, %s66
    %p70 = scmp.eq.s32.totalorder %s9, 0
    %p71 = por %p69, %p70
    %p72 = scmp.ne.s32.totalorder %s64, %s66
    %p73 = scmp.eq.s32.totalorder %s14, 3
    %p74 = por %p72, %p73
    %p75 = scmp.ne.s32.totalorder %s66, %s67
    %p76 = scmp.eq.s32.totalorder %s14, 0
    %p77 = por %p75, %p76
    %p78 = scmp.ne.s32.totalorder %s66, %s67
    %p79 = scmp.eq.s32.totalorder %s15, 3
    %p80 = por %p78, %p79
    %p82 = scmp.ne.s32.totalorder %s67, %s81
    %p83 = scmp.eq.s32.totalorder %s15, 0
    %p84 = por %p82, %p83
    %s85 = ssub.s32 %s9, %s16
    %p86 = scmp.eq.s32.totalorder %s85, 0
    %s88 = sadd.s32 %s87, 1
    %s89 = scalar_select %p86, %s87, %s88
    %p92 = pneg %p86
    %p93 = scmp.eq.s32.totalorder %s9, 3
    %p94 = por %p92, %p93
    %p95 = scmp.ne.s32.totalorder %s87, %s90
    %p96 = scmp.eq.s32.totalorder %s9, 0
    %p97 = por %p95, %p96
    %p98 = scmp.ne.s32.totalorder %s87, %s90
    %p99 = scmp.eq.s32.totalorder %s14, 3
    %p100 = por %p98, %p99
    %p101 = scmp.ne.s32.totalorder %s90, %s91
    %p102 = scmp.eq.s32.totalorder %s14, 0
    %p103 = por %p101, %p102
    %p104 = scmp.ne.s32.totalorder %s90, %s91
    %p105 = scmp.eq.s32.totalorder %s15, 3
    %p106 = por %p104, %p105
    %p108 = scmp.ne.s32.totalorder %s91, %s107
    %p109 = scmp.eq.s32.totalorder %s15, 0
    %p110 = por %p108, %p109
    %p111 = scmp.le.s32.totalorder 1, %s9
    %p112 = scmp.lt.s32.totalorder %s9, 5
    %p113 = pnand %p111, %p112
    %p114 = pneg %p113
    // Predicated region
    $region9: #{cnn_forward.6} parent=5 // pred_check
      _
    $region10: #{cnn_forward.6} parent=5 // pred_check_branch
      %116 = sbr.rel (%p113) target = $region12
    $region11: #{cnn_forward.6} parent=5 // pred_region
      %s117 = ssub.s32 %s9, 1
      // Predicated region
      $region13: #{cnn_forward.6} parent=11 // pred_check
        %p118 = pneg %p56
      $region14: #{cnn_forward.6} parent=11 // pred_check_branch
        %120 = sbr.rel (%p118) target = $region16
      $region15: #{cnn_forward.6} parent=11 // pred_region
        _
      $region16: #{cnn_forward.6} parent=11 // pred_fallthru
        _
      // Predicated region
      $region17: #{cnn_forward.6} parent=11 // pred_check
        %p121 = pneg %p77
      $region18: #{cnn_forward.6} parent=11 // pred_check_branch
        %123 = sbr.rel (%p121) target = $region20
      $region19: #{cnn_forward.6} parent=11 // pred_region
        _
      $region20: #{cnn_forward.6} parent=11 // pred_fallthru
        _
    $region12: #{cnn_forward.6} parent=5 // pred_fallthru
      _
    %p124 = scmp.lt.s32.totalorder %s9, 4
    // Predicated region
    $region21: #{cnn_forward.6} parent=5 // pred_check
      %p125 = pneg %p124
    $region22: #{cnn_forward.6} parent=5 // pred_check_branch
      %127 = sbr.rel (%p125) target = $region24
    $region23: #{cnn_forward.6} parent=5 // pred_region
      // Predicated region
      $region25: #{cnn_forward.6} parent=23 // pred_check
        %p128 = pneg %p29
      $region26: #{cnn_forward.6} parent=23 // pred_check_branch
        %130 = sbr.rel (%p128) target = $region28
      $region27: #{cnn_forward.6} parent=23 // pred_region
        %s131 = smul.u32 64, %s9
        %p132 = scmp.lt.s32.totalorder %s131, 255
        %s133 = scalar_select %p132, %s131, 255
        %s134 = smul.addr %s133, 4
        %s135 = scalar_lea.vmem %s0, %s134
        %s136 = smul.u32 64, %s9
      $region28: #{cnn_forward.6} parent=23 // pred_fallthru
        _
    $region24: #{cnn_forward.6} parent=5 // pred_fallthru
      _
    %p137 = scmp.le.s32.totalorder 1, %s9
    %p138 = scmp.lt.s32.totalorder %s9, 5
    %p139 = pnand %p137, %p138
    %p140 = pneg %p139
    // Predicated region
    $region29: #{cnn_forward.6} parent=5 // pred_check
      _
    $region30: #{cnn_forward.6} parent=5 // pred_check_branch
      %142 = sbr.rel (%p139) target = $region32
    $region31: #{cnn_forward.6} parent=5 // pred_region
      %s143 = ssub.s32 %s9, 1
      %s144 = smul.u32 64, %s14
      %p145 = scmp.lt.s32.totalorder %s144, 255
      %s146 = scalar_select %p145, %s144, 255
      %s147 = smul.addr %s146, 4
      %s148 = scalar_lea.vmem %s0, %s147
      %p149 = pneg %p35
      %p150 = pneg %p32
      %p151 = pneg %p56
      %p152 = pneg %p53
      %p153 = pneg %p77
      %p154 = pneg %p74
      %p155 = pneg %p103
      %p156 = pneg %p100
      %s157 = smul.u32 64, %s14
      %p158 = scmp.lt.s32.totalorder %s157, 255
      %s159 = scalar_select %p158, %s157, 255
      %s160 = smul.addr %s159, 8
      %s161 = scalar_lea.vmem %s3, %s160
      %s162 = smul.u32 64, %s14
      %p163 = scmp.lt.s32.totalorder %s162, 255
      %s164 = scalar_select %p163, %s162, 255
      %s165 = smul.addr %s164, 4
      %s166 = scalar_lea.vmem %s0, %s165
      %s167 = smul.u32 64, %s14
      %s168 = smul.u32 64, %s14
      %p169 = scmp.lt.s32.totalorder %s168, 255
      %s170 = scalar_select %p169, %s168, 255
      %s171 = smul.addr %s170, 8
      %s172 = scalar_lea.vmem %s3, %s171
      %s173 = smul.u32 64, %s14
      %v175 = vld [vmem:[%s166] sm:$0xf]
      %v176 = vld [vmem:[%s166 + $0x4] sm:$0xf]
      %v177 = vld [vmem:[%s166 + $0x8] sm:$0xf]
      %v178 = vld [vmem:[%s166 + $0xc] sm:$0xf]
      %v179 = vld [vmem:[%s166 + $0x10] sm:$0xf]
      %v180 = vld [vmem:[%s166 + $0x14] sm:$0xf]
      %v181 = vld [vmem:[%s166 + $0x18] sm:$0xf]
      %v182 = vld [vmem:[%s166 + $0x1c] sm:$0xf]
      %v183 = vld [vmem:[%s166 + $0x20] sm:$0xf]
      %v184 = vld [vmem:[%s166 + $0x24] sm:$0xf]
      %v185 = vld [vmem:[%s166 + $0x28] sm:$0xf]
      %v186 = vld [vmem:[%s166 + $0x2c] sm:$0xf]
      %v187 = vld [vmem:[%s166 + $0x30] sm:$0xf]
      %v188 = vld [vmem:[%s166 + $0x34] sm:$0xf]
      %v189 = vld [vmem:[%s166 + $0x38] sm:$0xf]
      %v190 = vld [vmem:[%s166 + $0x3c] sm:$0xf]
      %v191 = vld [vmem:[%s166 + $0x40] sm:$0xf]
      %v192 = vld [vmem:[%s166 + $0x44] sm:$0xf]
      %v193 = vld [vmem:[%s166 + $0x48] sm:$0xf]
      %v194 = vld [vmem:[%s166 + $0x4c] sm:$0xf]
      %v195 = vld [vmem:[%s166 + $0x50] sm:$0xf]
      %v196 = vld [vmem:[%s166 + $0x54] sm:$0xf]
      %v197 = vld [vmem:[%s166 + $0x58] sm:$0xf]
      %v198 = vld [vmem:[%s166 + $0x5c] sm:$0xf]
      %v199 = vld [vmem:[%s166 + $0x60] sm:$0xf]
      %v200 = vld [vmem:[%s166 + $0x64] sm:$0xf]
      %v201 = vld [vmem:[%s166 + $0x68] sm:$0xf]
      %v202 = vld [vmem:[%s166 + $0x6c] sm:$0xf]
      %v203 = vld [vmem:[%s166 + $0x70] sm:$0xf]
      %v204 = vld [vmem:[%s166 + $0x74] sm:$0xf]
      %v205 = vld [vmem:[%s166 + $0x78] sm:$0xf]
      %v206 = vld [vmem:[%s166 + $0x7c] sm:$0xf]
      %v207 = vld [vmem:[%s166 + $0x80] sm:$0xf]
      %v208 = vld [vmem:[%s166 + $0x84] sm:$0xf]
      %v209 = vld [vmem:[%s166 + $0x88] sm:$0xf]
      %v210 = vld [vmem:[%s166 + $0x8c] sm:$0xf]
      %v211 = vld [vmem:[%s166 + $0x90] sm:$0xf]
      %v212 = vld [vmem:[%s166 + $0x94] sm:$0xf]
      %v213 = vld [vmem:[%s166 + $0x98] sm:$0xf]
      %v214 = vld [vmem:[%s166 + $0x9c] sm:$0xf]
      %v215 = vld [vmem:[%s166 + $0xa0] sm:$0xf]
      %v216 = vld [vmem:[%s166 + $0xa4] sm:$0xf]
      %v217 = vld [vmem:[%s166 + $0xa8] sm:$0xf]
      %v218 = vld [vmem:[%s166 + $0xac] sm:$0xf]
      %v219 = vld [vmem:[%s166 + $0xb0] sm:$0xf]
      %v220 = vld [vmem:[%s166 + $0xb4] sm:$0xf]
      %v221 = vld [vmem:[%s166 + $0xb8] sm:$0xf]
      %v222 = vld [vmem:[%s166 + $0xbc] sm:$0xf]
      %v223 = vld [vmem:[%s166 + $0xc0] sm:$0xf]
      %v224 = vld [vmem:[%s166 + $0xc4] sm:$0xf]
      %v225 = vld [vmem:[%s166 + $0xc8] sm:$0xf]
      %v226 = vld [vmem:[%s166 + $0xcc] sm:$0xf]
      %v227 = vld [vmem:[%s166 + $0xd0] sm:$0xf]
      %v228 = vld [vmem:[%s166 + $0xd4] sm:$0xf]
      %v229 = vld [vmem:[%s166 + $0xd8] sm:$0xf]
      %v230 = vld [vmem:[%s166 + $0xdc] sm:$0xf]
      %v231 = vld [vmem:[%s166 + $0xe0] sm:$0xf]
      %v232 = vld [vmem:[%s166 + $0xe4] sm:$0xf]
      %v233 = vld [vmem:[%s166 + $0xe8] sm:$0xf]
      %v234 = vld [vmem:[%s166 + $0xec] sm:$0xf]
      %v235 = vld [vmem:[%s166 + $0xf0] sm:$0xf]
      %v236 = vld [vmem:[%s166 + $0xf4] sm:$0xf]
      %v237 = vld [vmem:[%s166 + $0xf8] sm:$0xf]
      %v238 = vld [vmem:[%s166 + $0xfc] sm:$0xf]
      %v239 = vld [vmem:[%s1] sm:$0xf]
      %v240 = vld [vmem:[%s1 + $0x4] sm:$0xf]
      %v241 = vld [vmem:[%s1 + $0x8] sm:$0xf]
      %v242 = vld [vmem:[%s1 + $0xc] sm:$0xf]
      %v243 = vld [vmem:[%s1 + $0x10] sm:$0xf]
      %v244 = vld [vmem:[%s1 + $0x14] sm:$0xf]
      %v245 = vld [vmem:[%s1 + $0x18] sm:$0xf]
      %v246 = vld [vmem:[%s1 + $0x1c] sm:$0xf]
      %v247 = vld [vmem:[%s1 + $0x20] sm:$0xf]
      %v248 = vld [vmem:[%s1 + $0x24] sm:$0xf]
      %v249 = vld [vmem:[%s1 + $0x28] sm:$0xf]
      %v250 = vld [vmem:[%s1 + $0x2c] sm:$0xf]
      %v251 = vld [vmem:[%s1 + $0x30] sm:$0xf]
      %v252 = vld [vmem:[%s1 + $0x34] sm:$0xf]
      %v253 = vld [vmem:[%s1 + $0x38] sm:$0xf]
      %v254 = vld [vmem:[%s1 + $0x3c] sm:$0xf]
      %v255 = vld [vmem:[%s2] sm:$0x1]
      %v257 = vlaneseq
      %v258 = vshrl.u32 %v257, 7
      %v259 = vsub.s32 0, %v258
      %v260 = vrot.slane %v255, %v259
      %v326 = vunpack.c.l.b16 %v175
      %v327 = vunpack.c.l.b16 %v176
      %v328 = vunpack.c.l.b16 %v177
      %v329 = vunpack.c.l.b16 %v178
      %v330 = vunpack.c.l.b16 %v179
      %v331 = vunpack.c.l.b16 %v180
      %v332 = vunpack.c.l.b16 %v181
      %v333 = vunpack.c.l.b16 %v182
      %v334 = vunpack.c.l.b16 %v183
      %v335 = vunpack.c.l.b16 %v184
      %v336 = vunpack.c.l.b16 %v185
      %v337 = vunpack.c.l.b16 %v186
      %v338 = vunpack.c.l.b16 %v187
      %v339 = vunpack.c.l.b16 %v188
      %v340 = vunpack.c.l.b16 %v189
      %v341 = vunpack.c.l.b16 %v190
      %v342 = vunpack.c.l.b16 %v191
      %v343 = vunpack.c.l.b16 %v192
      %v344 = vunpack.c.l.b16 %v193
      %v345 = vunpack.c.l.b16 %v194
      %v346 = vunpack.c.l.b16 %v195
      %v347 = vunpack.c.l.b16 %v196
      %v348 = vunpack.c.l.b16 %v197
      %v349 = vunpack.c.l.b16 %v198
      %v350 = vunpack.c.l.b16 %v199
      %v351 = vunpack.c.l.b16 %v200
      %v352 = vunpack.c.l.b16 %v201
      %v353 = vunpack.c.l.b16 %v202
      %v354 = vunpack.c.l.b16 %v203
      %v355 = vunpack.c.l.b16 %v204
      %v356 = vunpack.c.l.b16 %v205
      %v357 = vunpack.c.l.b16 %v206
      %v358 = vunpack.c.l.b16 %v207
      %v359 = vunpack.c.l.b16 %v208
      %v360 = vunpack.c.l.b16 %v209
      %v361 = vunpack.c.l.b16 %v210
      %v362 = vunpack.c.l.b16 %v211
      %v363 = vunpack.c.l.b16 %v212
      %v364 = vunpack.c.l.b16 %v213
      %v365 = vunpack.c.l.b16 %v214
      %v366 = vunpack.c.l.b16 %v215
      %v367 = vunpack.c.l.b16 %v216
      %v368 = vunpack.c.l.b16 %v217
      %v369 = vunpack.c.l.b16 %v218
      %v370 = vunpack.c.l.b16 %v219
      %v371 = vunpack.c.l.b16 %v220
      %v372 = vunpack.c.l.b16 %v221
      %v373 = vunpack.c.l.b16 %v222
      %v374 = vunpack.c.l.b16 %v223
      %v375 = vunpack.c.l.b16 %v224
      %v376 = vunpack.c.l.b16 %v225
      %v377 = vunpack.c.l.b16 %v226
      %v378 = vunpack.c.l.b16 %v227
      %v379 = vunpack.c.l.b16 %v228
      %v380 = vunpack.c.l.b16 %v229
      %v381 = vunpack.c.l.b16 %v230
      %v382 = vunpack.c.l.b16 %v231
      %v383 = vunpack.c.l.b16 %v232
      %v384 = vunpack.c.l.b16 %v233
      %v385 = vunpack.c.l.b16 %v234
      %v386 = vunpack.c.l.b16 %v235
      %v387 = vunpack.c.l.b16 %v236
      %v388 = vunpack.c.l.b16 %v237
      %v389 = vunpack.c.l.b16 %v238
      %v390 = vpack.c.b16 %v327, %v326
      %v391 = vpack.c.b16 %v329, %v328
      %v392 = vpack.c.b16 %v331, %v330
      %v393 = vpack.c.b16 %v333, %v332
      %v394 = vpack.c.b16 %v335, %v334
      %v395 = vpack.c.b16 %v337, %v336
      %v396 = vpack.c.b16 %v339, %v338
      %v397 = vpack.c.b16 %v341, %v340
      %v398 = vpack.c.b16 %v343, %v342
      %v399 = vpack.c.b16 %v345, %v344
      %v400 = vpack.c.b16 %v347, %v346
      %v401 = vpack.c.b16 %v349, %v348
      %v402 = vpack.c.b16 %v351, %v350
      %v403 = vpack.c.b16 %v353, %v352
      %v404 = vpack.c.b16 %v355, %v354
      %v405 = vpack.c.b16 %v357, %v356
      %v406 = vpack.c.b16 %v359, %v358
      %v407 = vpack.c.b16 %v361, %v360
      %v408 = vpack.c.b16 %v363, %v362
      %v409 = vpack.c.b16 %v365, %v364
      %v410 = vpack.c.b16 %v367, %v366
      %v411 = vpack.c.b16 %v369, %v368
      %v412 = vpack.c.b16 %v371, %v370
      %v413 = vpack.c.b16 %v373, %v372
      %v414 = vpack.c.b16 %v375, %v374
      %v415 = vpack.c.b16 %v377, %v376
      %v416 = vpack.c.b16 %v379, %v378
      %v417 = vpack.c.b16 %v381, %v380
      %v418 = vpack.c.b16 %v383, %v382
      %v419 = vpack.c.b16 %v385, %v384
      %v420 = vpack.c.b16 %v387, %v386
      %v421 = vpack.c.b16 %v389, %v388
      %v470 = vunpack.c.l.b16 %v239
      %v471 = vunpack.c.l.b16 %v240
      %v472 = vunpack.c.l.b16 %v241
      %v473 = vunpack.c.l.b16 %v242
      %v474 = vunpack.c.l.b16 %v243
      %v475 = vunpack.c.l.b16 %v244
      %v476 = vunpack.c.l.b16 %v245
      %v477 = vunpack.c.l.b16 %v246
      %v478 = vunpack.c.l.b16 %v247
      %v479 = vunpack.c.l.b16 %v248
      %v480 = vunpack.c.l.b16 %v249
      %v481 = vunpack.c.l.b16 %v250
      %v482 = vunpack.c.l.b16 %v251
      %v483 = vunpack.c.l.b16 %v252
      %v484 = vunpack.c.l.b16 %v253
      %v485 = vunpack.c.l.b16 %v254
      %v486 = vpack.c.b16 %v471, %v470
      %v487 = vpack.c.b16 %v473, %v472
      %v488 = vpack.c.b16 %v475, %v474
      %v489 = vpack.c.b16 %v477, %v476
      %v490 = vpack.c.b16 %v479, %v478
      %v491 = vpack.c.b16 %v481, %v480
      %v492 = vpack.c.b16 %v483, %v482
      %v493 = vpack.c.b16 %v485, %v484
      %502 = vmatprep.subr.bf16.mxu0 0
      %503 = vmatpush1.bf16.msra.mxu0 %v493
      %504 = vmatprep.subr.bf16.mxu0 0
      %505 = vmatpush1.bf16.msra.mxu0 %v492
      %506 = vmatprep.subr.bf16.mxu0 0
      %507 = vmatpush1.bf16.msra.mxu0 %v491
      %508 = vmatprep.subr.bf16.mxu0 0
      %509 = vmatpush1.bf16.msra.mxu0 %v490
      %510 = vmatprep.subr.bf16.mxu0 0
      %511 = vmatpush1.bf16.msra.mxu0 %v489
      %512 = vmatprep.subr.bf16.mxu0 0
      %513 = vmatpush1.bf16.msra.mxu0 %v488
      %514 = vmatprep.subr.bf16.mxu0 0
      %515 = vmatpush1.bf16.msra.mxu0 %v487
      %516 = vmatprep.subr.bf16.mxu0 0
      %517 = vmatpush1.bf16.msra.mxu0 %v486
      %518 = vmatprep.subr.bf16.mxu0 0
      %519 = vmatpush2.bf16.msra.mxu0 0
      %520 = vmatprep.subr.bf16.mxu0 0
      %521 = vmatpush2.bf16.msra.mxu0 0
      %522 = vmatprep.subr.bf16.mxu0 0
      %523 = vmatpush2.bf16.msra.mxu0 0
      %524 = vmatprep.subr.bf16.mxu0 0
      %525 = vmatpush2.bf16.msra.mxu0 0
      %526 = vmatprep.subr.bf16.mxu0 0
      %527 = vmatpush2.bf16.msra.mxu0 0
      %528 = vmatprep.subr.bf16.mxu0 0
      %529 = vmatpush2.bf16.msra.mxu0 0
      %530 = vmatprep.subr.bf16.mxu0 0
      %531 = vmatpush2.bf16.msra.mxu0 0
      %532 = vmatprep.subr.bf16.mxu0 0
      %533 = vmatpush2.bf16.msra.mxu0 0
      %534 = vmatprep.mubr.bf16.mxu0 0
      %535 = vmatmul.mubr.bf16.gmra.mxu0 %v390
      %v536 = vpop.f32.mrf.mxu0
      %v537 = vadd.f32 %v260, %v536
      %v538 = vpop.f32.mrf.mxu0
      %v539 = vpop.f32.mrf.mxu0
      %v540 = vadd.f32 %v260, %v539
      %v541 = vpop.f32.mrf.mxu0
      %542 = vmatprep.mubr.bf16.mxu0 0
      %543 = vmatmul.mubr.bf16.gmra.mxu0 %v391
      %v544 = vpop.f32.mrf.mxu0
      %v545 = vadd.f32 %v260, %v544
      %v546 = vpop.f32.mrf.mxu0
      %v547 = vpop.f32.mrf.mxu0
      %v548 = vadd.f32 %v260, %v547
      %v549 = vpop.f32.mrf.mxu0
      %550 = vmatprep.mubr.bf16.mxu0 0
      %551 = vmatmul.mubr.bf16.gmra.mxu0 %v392
      %v552 = vpop.f32.mrf.mxu0
      %v553 = vadd.f32 %v260, %v552
      %v554 = vpop.f32.mrf.mxu0
      %v555 = vpop.f32.mrf.mxu0
      %v556 = vadd.f32 %v260, %v555
      %v557 = vpop.f32.mrf.mxu0
      %558 = vmatprep.mubr.bf16.mxu0 0
      %559 = vmatmul.mubr.bf16.gmra.mxu0 %v393
      %v560 = vpop.f32.mrf.mxu0
      %v561 = vadd.f32 %v260, %v560
      %v562 = vpop.f32.mrf.mxu0
      %v563 = vpop.f32.mrf.mxu0
      %v564 = vadd.f32 %v260, %v563
      %v565 = vpop.f32.mrf.mxu0
      %566 = vmatprep.mubr.bf16.mxu0 0
      %567 = vmatmul.mubr.bf16.gmra.mxu0 %v394
      %v568 = vpop.f32.mrf.mxu0
      %v569 = vadd.f32 %v260, %v568
      %v570 = vpop.f32.mrf.mxu0
      %v571 = vpop.f32.mrf.mxu0
      %v572 = vadd.f32 %v260, %v571
      %v573 = vpop.f32.mrf.mxu0
      %574 = vmatprep.mubr.bf16.mxu0 0
      %575 = vmatmul.mubr.bf16.gmra.mxu0 %v395
      %v576 = vpop.f32.mrf.mxu0
      %v577 = vadd.f32 %v260, %v576
      %v578 = vpop.f32.mrf.mxu0
      %v579 = vpop.f32.mrf.mxu0
      %v580 = vadd.f32 %v260, %v579
      %v581 = vpop.f32.mrf.mxu0
      %582 = vmatprep.mubr.bf16.mxu0 0
      %583 = vmatmul.mubr.bf16.gmra.mxu0 %v396
      %v584 = vpop.f32.mrf.mxu0
      %v585 = vadd.f32 %v260, %v584
      %v586 = vpop.f32.mrf.mxu0
      %v587 = vpop.f32.mrf.mxu0
      %v588 = vadd.f32 %v260, %v587
      %v589 = vpop.f32.mrf.mxu0
      %590 = vmatprep.mubr.bf16.mxu0 0
      %591 = vmatmul.mubr.bf16.gmra.mxu0 %v397
      %v592 = vpop.f32.mrf.mxu0
      %v593 = vadd.f32 %v260, %v592
      %v594 = vpop.f32.mrf.mxu0
      %v595 = vpop.f32.mrf.mxu0
      %v596 = vadd.f32 %v260, %v595
      %v597 = vpop.f32.mrf.mxu0
      %598 = vmatprep.mubr.bf16.mxu0 0
      %599 = vmatmul.mubr.bf16.gmra.mxu0 %v398
      %v600 = vpop.f32.mrf.mxu0
      %v601 = vadd.f32 %v260, %v600
      %v602 = vpop.f32.mrf.mxu0
      %v603 = vpop.f32.mrf.mxu0
      %v604 = vadd.f32 %v260, %v603
      %v605 = vpop.f32.mrf.mxu0
      %606 = vmatprep.mubr.bf16.mxu0 0
      %607 = vmatmul.mubr.bf16.gmra.mxu0 %v399
      %v608 = vpop.f32.mrf.mxu0
      %v609 = vadd.f32 %v260, %v608
      %v610 = vpop.f32.mrf.mxu0
      %v611 = vpop.f32.mrf.mxu0
      %v612 = vadd.f32 %v260, %v611
      %v613 = vpop.f32.mrf.mxu0
      %614 = vmatprep.mubr.bf16.mxu0 0
      %615 = vmatmul.mubr.bf16.gmra.mxu0 %v400
      %v616 = vpop.f32.mrf.mxu0
      %v617 = vadd.f32 %v260, %v616
      %v618 = vpop.f32.mrf.mxu0
      %v619 = vpop.f32.mrf.mxu0
      %v620 = vadd.f32 %v260, %v619
      %v621 = vpop.f32.mrf.mxu0
      %622 = vmatprep.mubr.bf16.mxu0 0
      %623 = vmatmul.mubr.bf16.gmra.mxu0 %v401
      %v624 = vpop.f32.mrf.mxu0
      %v625 = vadd.f32 %v260, %v624
      %v626 = vpop.f32.mrf.mxu0
      %v627 = vpop.f32.mrf.mxu0
      %v628 = vadd.f32 %v260, %v627
      %v629 = vpop.f32.mrf.mxu0
      %630 = vmatprep.mubr.bf16.mxu0 0
      %631 = vmatmul.mubr.bf16.gmra.mxu0 %v402
      %v632 = vpop.f32.mrf.mxu0
      %v633 = vadd.f32 %v260, %v632
      %v634 = vpop.f32.mrf.mxu0
      %v635 = vpop.f32.mrf.mxu0
      %v636 = vadd.f32 %v260, %v635
      %v637 = vpop.f32.mrf.mxu0
      %638 = vmatprep.mubr.bf16.mxu0 0
      %639 = vmatmul.mubr.bf16.gmra.mxu0 %v403
      %v640 = vpop.f32.mrf.mxu0
      %v641 = vadd.f32 %v260, %v640
      %v642 = vpop.f32.mrf.mxu0
      %v643 = vpop.f32.mrf.mxu0
      %v644 = vadd.f32 %v260, %v643
      %v645 = vpop.f32.mrf.mxu0
      %646 = vmatprep.mubr.bf16.mxu0 0
      %647 = vmatmul.mubr.bf16.gmra.mxu0 %v404
      %v648 = vpop.f32.mrf.mxu0
      %v649 = vadd.f32 %v260, %v648
      %v650 = vpop.f32.mrf.mxu0
      %v651 = vpop.f32.mrf.mxu0
      %v652 = vadd.f32 %v260, %v651
      %v653 = vpop.f32.mrf.mxu0
      %654 = vmatprep.mubr.bf16.mxu0 0
      %655 = vmatmul.mubr.bf16.gmra.mxu0 %v405
      %v656 = vpop.f32.mrf.mxu0
      %v657 = vadd.f32 %v260, %v656
      %v658 = vpop.f32.mrf.mxu0
      %v659 = vpop.f32.mrf.mxu0
      %v660 = vadd.f32 %v260, %v659
      %v661 = vpop.f32.mrf.mxu0
      %662 = vmatprep.mubr.bf16.mxu0 0
      %663 = vmatmul.mubr.bf16.gmra.mxu0 %v406
      %v664 = vpop.f32.mrf.mxu0
      %v665 = vadd.f32 %v260, %v664
      %v666 = vpop.f32.mrf.mxu0
      %v667 = vpop.f32.mrf.mxu0
      %v668 = vadd.f32 %v260, %v667
      %v669 = vpop.f32.mrf.mxu0
      %670 = vmatprep.mubr.bf16.mxu0 0
      %671 = vmatmul.mubr.bf16.gmra.mxu0 %v407
      %v672 = vpop.f32.mrf.mxu0
      %v673 = vadd.f32 %v260, %v672
      %v674 = vpop.f32.mrf.mxu0
      %v675 = vpop.f32.mrf.mxu0
      %v676 = vadd.f32 %v260, %v675
      %v677 = vpop.f32.mrf.mxu0
      %678 = vmatprep.mubr.bf16.mxu0 0
      %679 = vmatmul.mubr.bf16.gmra.mxu0 %v408
      %v680 = vpop.f32.mrf.mxu0
      %v681 = vadd.f32 %v260, %v680
      %v682 = vpop.f32.mrf.mxu0
      %v683 = vpop.f32.mrf.mxu0
      %v684 = vadd.f32 %v260, %v683
      %v685 = vpop.f32.mrf.mxu0
      %686 = vmatprep.mubr.bf16.mxu0 0
      %687 = vmatmul.mubr.bf16.gmra.mxu0 %v409
      %v688 = vpop.f32.mrf.mxu0
      %v689 = vadd.f32 %v260, %v688
      %v690 = vpop.f32.mrf.mxu0
      %v691 = vpop.f32.mrf.mxu0
      %v692 = vadd.f32 %v260, %v691
      %v693 = vpop.f32.mrf.mxu0
      %694 = vmatprep.mubr.bf16.mxu0 0
      %695 = vmatmul.mubr.bf16.gmra.mxu0 %v410
      %v696 = vpop.f32.mrf.mxu0
      %v697 = vadd.f32 %v260, %v696
      %v698 = vpop.f32.mrf.mxu0
      %v699 = vpop.f32.mrf.mxu0
      %v700 = vadd.f32 %v260, %v699
      %v701 = vpop.f32.mrf.mxu0
      %702 = vmatprep.mubr.bf16.mxu0 0
      %703 = vmatmul.mubr.bf16.gmra.mxu0 %v411
      %v704 = vpop.f32.mrf.mxu0
      %v705 = vadd.f32 %v260, %v704
      %v706 = vpop.f32.mrf.mxu0
      %v707 = vpop.f32.mrf.mxu0
      %v708 = vadd.f32 %v260, %v707
      %v709 = vpop.f32.mrf.mxu0
      %710 = vmatprep.mubr.bf16.mxu0 0
      %711 = vmatmul.mubr.bf16.gmra.mxu0 %v412
      %v712 = vpop.f32.mrf.mxu0
      %v713 = vadd.f32 %v260, %v712
      %v714 = vpop.f32.mrf.mxu0
      %v715 = vpop.f32.mrf.mxu0
      %v716 = vadd.f32 %v260, %v715
      %v717 = vpop.f32.mrf.mxu0
      %718 = vmatprep.mubr.bf16.mxu0 0
      %719 = vmatmul.mubr.bf16.gmra.mxu0 %v413
      %v720 = vpop.f32.mrf.mxu0
      %v721 = vadd.f32 %v260, %v720
      %v722 = vpop.f32.mrf.mxu0
      %v723 = vpop.f32.mrf.mxu0
      %v724 = vadd.f32 %v260, %v723
      %v725 = vpop.f32.mrf.mxu0
      %726 = vmatprep.mubr.bf16.mxu0 0
      %727 = vmatmul.mubr.bf16.gmra.mxu0 %v414
      %v728 = vpop.f32.mrf.mxu0
      %v729 = vadd.f32 %v260, %v728
      %v730 = vpop.f32.mrf.mxu0
      %v731 = vpop.f32.mrf.mxu0
      %v732 = vadd.f32 %v260, %v731
      %v733 = vpop.f32.mrf.mxu0
      %734 = vmatprep.mubr.bf16.mxu0 0
      %735 = vmatmul.mubr.bf16.gmra.mxu0 %v415
      %v736 = vpop.f32.mrf.mxu0
      %v737 = vadd.f32 %v260, %v736
      %v738 = vpop.f32.mrf.mxu0
      %v739 = vpop.f32.mrf.mxu0
      %v740 = vadd.f32 %v260, %v739
      %v741 = vpop.f32.mrf.mxu0
      %742 = vmatprep.mubr.bf16.mxu0 0
      %743 = vmatmul.mubr.bf16.gmra.mxu0 %v416
      %v744 = vpop.f32.mrf.mxu0
      %v745 = vadd.f32 %v260, %v744
      %v746 = vpop.f32.mrf.mxu0
      %v747 = vpop.f32.mrf.mxu0
      %v748 = vadd.f32 %v260, %v747
      %v749 = vpop.f32.mrf.mxu0
      %750 = vmatprep.mubr.bf16.mxu0 0
      %751 = vmatmul.mubr.bf16.gmra.mxu0 %v417
      %v752 = vpop.f32.mrf.mxu0
      %v753 = vadd.f32 %v260, %v752
      %v754 = vpop.f32.mrf.mxu0
      %v755 = vpop.f32.mrf.mxu0
      %v756 = vadd.f32 %v260, %v755
      %v757 = vpop.f32.mrf.mxu0
      %758 = vmatprep.mubr.bf16.mxu0 0
      %759 = vmatmul.mubr.bf16.gmra.mxu0 %v418
      %v760 = vpop.f32.mrf.mxu0
      %v761 = vadd.f32 %v260, %v760
      %v762 = vpop.f32.mrf.mxu0
      %v763 = vpop.f32.mrf.mxu0
      %v764 = vadd.f32 %v260, %v763
      %v765 = vpop.f32.mrf.mxu0
      %766 = vmatprep.mubr.bf16.mxu0 0
      %767 = vmatmul.mubr.bf16.gmra.mxu0 %v419
      %v768 = vpop.f32.mrf.mxu0
      %v769 = vadd.f32 %v260, %v768
      %v770 = vpop.f32.mrf.mxu0
      %v771 = vpop.f32.mrf.mxu0
      %v772 = vadd.f32 %v260, %v771
      %v773 = vpop.f32.mrf.mxu0
      %774 = vmatprep.mubr.bf16.mxu0 0
      %775 = vmatmul.mubr.bf16.gmra.mxu0 %v420
      %v776 = vpop.f32.mrf.mxu0
      %v777 = vadd.f32 %v260, %v776
      %v778 = vpop.f32.mrf.mxu0
      %v779 = vpop.f32.mrf.mxu0
      %v780 = vadd.f32 %v260, %v779
      %v781 = vpop.f32.mrf.mxu0
      %782 = vmatprep.mubr.bf16.mxu0 0
      %783 = vmatmul.mubr.bf16.gmra.mxu0 %v421
      %v784 = vpop.f32.mrf.mxu0
      %v785 = vadd.f32 %v260, %v784
      %v786 = vpop.f32.mrf.mxu0
      %v787 = vpop.f32.mrf.mxu0
      %v788 = vadd.f32 %v260, %v787
      %v789 = vpop.f32.mrf.mxu0
      %790 = vdwg.mxu0
      %v791 = vmax.f32 %v537, 0.0
      %v792 = vmax.f32 %v540, 0.0
      %v793 = vmax.f32 %v545, 0.0
      %v794 = vmax.f32 %v548, 0.0
      %v795 = vmax.f32 %v553, 0.0
      %v796 = vmax.f32 %v556, 0.0
      %v797 = vmax.f32 %v561, 0.0
      %v798 = vmax.f32 %v564, 0.0
      %v799 = vmax.f32 %v569, 0.0
      %v800 = vmax.f32 %v572, 0.0
      %v801 = vmax.f32 %v577, 0.0
      %v802 = vmax.f32 %v580, 0.0
      %v803 = vmax.f32 %v585, 0.0
      %v804 = vmax.f32 %v588, 0.0
      %v805 = vmax.f32 %v593, 0.0
      %v806 = vmax.f32 %v596, 0.0
      %v807 = vmax.f32 %v601, 0.0
      %v808 = vmax.f32 %v604, 0.0
      %v809 = vmax.f32 %v609, 0.0
      %v810 = vmax.f32 %v612, 0.0
      %v811 = vmax.f32 %v617, 0.0
      %v812 = vmax.f32 %v620, 0.0
      %v813 = vmax.f32 %v625, 0.0
      %v814 = vmax.f32 %v628, 0.0
      %v815 = vmax.f32 %v633, 0.0
      %v816 = vmax.f32 %v636, 0.0
      %v817 = vmax.f32 %v641, 0.0
      %v818 = vmax.f32 %v644, 0.0
      %v819 = vmax.f32 %v649, 0.0
      %v820 = vmax.f32 %v652, 0.0
      %v821 = vmax.f32 %v657, 0.0
      %v822 = vmax.f32 %v660, 0.0
      %v823 = vmax.f32 %v665, 0.0
      %v824 = vmax.f32 %v668, 0.0
      %v825 = vmax.f32 %v673, 0.0
      %v826 = vmax.f32 %v676, 0.0
      %v827 = vmax.f32 %v681, 0.0
      %v828 = vmax.f32 %v684, 0.0
      %v829 = vmax.f32 %v689, 0.0
      %v830 = vmax.f32 %v692, 0.0
      %v831 = vmax.f32 %v697, 0.0
      %v832 = vmax.f32 %v700, 0.0
      %v833 = vmax.f32 %v705, 0.0
      %v834 = vmax.f32 %v708, 0.0
      %v835 = vmax.f32 %v713, 0.0
      %v836 = vmax.f32 %v716, 0.0
      %v837 = vmax.f32 %v721, 0.0
      %v838 = vmax.f32 %v724, 0.0
      %v839 = vmax.f32 %v729, 0.0
      %v840 = vmax.f32 %v732, 0.0
      %v841 = vmax.f32 %v737, 0.0
      %v842 = vmax.f32 %v740, 0.0
      %v843 = vmax.f32 %v745, 0.0
      %v844 = vmax.f32 %v748, 0.0
      %v845 = vmax.f32 %v753, 0.0
      %v846 = vmax.f32 %v756, 0.0
      %v847 = vmax.f32 %v761, 0.0
      %v848 = vmax.f32 %v764, 0.0
      %v849 = vmax.f32 %v769, 0.0
      %v850 = vmax.f32 %v772, 0.0
      %v851 = vmax.f32 %v777, 0.0
      %v852 = vmax.f32 %v780, 0.0
      %v853 = vmax.f32 %v785, 0.0
      %v854 = vmax.f32 %v788, 0.0
      %855 = vst [vmem:[%s172] sm:$0xff] %v791
      %856 = vst [vmem:[%s172 + $0x8] sm:$0xff] %v792
      %857 = vst [vmem:[%s172 + $0x10] sm:$0xff] %v793
      %858 = vst [vmem:[%s172 + $0x18] sm:$0xff] %v794
      %859 = vst [vmem:[%s172 + $0x20] sm:$0xff] %v795
      %860 = vst [vmem:[%s172 + $0x28] sm:$0xff] %v796
      %861 = vst [vmem:[%s172 + $0x30] sm:$0xff] %v797
      %862 = vst [vmem:[%s172 + $0x38] sm:$0xff] %v798
      %863 = vst [vmem:[%s172 + $0x40] sm:$0xff] %v799
      %864 = vst [vmem:[%s172 + $0x48] sm:$0xff] %v800
      %865 = vst [vmem:[%s172 + $0x50] sm:$0xff] %v801
      %866 = vst [vmem:[%s172 + $0x58] sm:$0xff] %v802
      %867 = vst [vmem:[%s172 + $0x60] sm:$0xff] %v803
      %868 = vst [vmem:[%s172 + $0x68] sm:$0xff] %v804
      %869 = vst [vmem:[%s172 + $0x70] sm:$0xff] %v805
      %870 = vst [vmem:[%s172 + $0x78] sm:$0xff] %v806
      %871 = vst [vmem:[%s172 + $0x80] sm:$0xff] %v807
      %872 = vst [vmem:[%s172 + $0x88] sm:$0xff] %v808
      %873 = vst [vmem:[%s172 + $0x90] sm:$0xff] %v809
      %874 = vst [vmem:[%s172 + $0x98] sm:$0xff] %v810
      %875 = vst [vmem:[%s172 + $0xa0] sm:$0xff] %v811
      %876 = vst [vmem:[%s172 + $0xa8] sm:$0xff] %v812
      %877 = vst [vmem:[%s172 + $0xb0] sm:$0xff] %v813
      %878 = vst [vmem:[%s172 + $0xb8] sm:$0xff] %v814
      %879 = vst [vmem:[%s172 + $0xc0] sm:$0xff] %v815
      %880 = vst [vmem:[%s172 + $0xc8] sm:$0xff] %v816
      %881 = vst [vmem:[%s172 + $0xd0] sm:$0xff] %v817
      %882 = vst [vmem:[%s172 + $0xd8] sm:$0xff] %v818
      %883 = vst [vmem:[%s172 + $0xe0] sm:$0xff] %v819
      %884 = vst [vmem:[%s172 + $0xe8] sm:$0xff] %v820
      %885 = vst [vmem:[%s172 + $0xf0] sm:$0xff] %v821
      %886 = vst [vmem:[%s172 + $0xf8] sm:$0xff] %v822
      %887 = vst [vmem:[%s172 + $0x100] sm:$0xff] %v823
      %888 = vst [vmem:[%s172 + $0x108] sm:$0xff] %v824
      %889 = vst [vmem:[%s172 + $0x110] sm:$0xff] %v825
      %890 = vst [vmem:[%s172 + $0x118] sm:$0xff] %v826
      %891 = vst [vmem:[%s172 + $0x120] sm:$0xff] %v827
      %892 = vst [vmem:[%s172 + $0x128] sm:$0xff] %v828
      %893 = vst [vmem:[%s172 + $0x130] sm:$0xff] %v829
      %894 = vst [vmem:[%s172 + $0x138] sm:$0xff] %v830
      %895 = vst [vmem:[%s172 + $0x140] sm:$0xff] %v831
      %896 = vst [vmem:[%s172 + $0x148] sm:$0xff] %v832
      %897 = vst [vmem:[%s172 + $0x150] sm:$0xff] %v833
      %898 = vst [vmem:[%s172 + $0x158] sm:$0xff] %v834
      %899 = vst [vmem:[%s172 + $0x160] sm:$0xff] %v835
      %900 = vst [vmem:[%s172 + $0x168] sm:$0xff] %v836
      %901 = vst [vmem:[%s172 + $0x170] sm:$0xff] %v837
      %902 = vst [vmem:[%s172 + $0x178] sm:$0xff] %v838
      %903 = vst [vmem:[%s172 + $0x180] sm:$0xff] %v839
      %904 = vst [vmem:[%s172 + $0x188] sm:$0xff] %v840
      %905 = vst [vmem:[%s172 + $0x190] sm:$0xff] %v841
      %906 = vst [vmem:[%s172 + $0x198] sm:$0xff] %v842
      %907 = vst [vmem:[%s172 + $0x1a0] sm:$0xff] %v843
      %908 = vst [vmem:[%s172 + $0x1a8] sm:$0xff] %v844
      %909 = vst [vmem:[%s172 + $0x1b0] sm:$0xff] %v845
      %910 = vst [vmem:[%s172 + $0x1b8] sm:$0xff] %v846
      %911 = vst [vmem:[%s172 + $0x1c0] sm:$0xff] %v847
      %912 = vst [vmem:[%s172 + $0x1c8] sm:$0xff] %v848
      %913 = vst [vmem:[%s172 + $0x1d0] sm:$0xff] %v849
      %914 = vst [vmem:[%s172 + $0x1d8] sm:$0xff] %v850
      %915 = vst [vmem:[%s172 + $0x1e0] sm:$0xff] %v851
      %916 = vst [vmem:[%s172 + $0x1e8] sm:$0xff] %v852
      %917 = vst [vmem:[%s172 + $0x1f0] sm:$0xff] %v853
      %918 = vst [vmem:[%s172 + $0x1f8] sm:$0xff] %v854
      %s919 = smul.u32 64, %s14
      %p920 = scmp.lt.s32.totalorder %s919, 255
      %s921 = scalar_select %p920, %s919, 255
      %s922 = smul.addr %s921, 8
      %s923 = scalar_lea.vmem %s3, %s922
      // Predicated region
      $region33: #{cnn_forward.6} parent=31 // pred_check
        %p924 = pneg %p100
      $region34: #{cnn_forward.6} parent=31 // pred_check_branch
        %926 = sbr.rel (%p924) target = $region36
      $region35: #{cnn_forward.6} parent=31 // pred_region
        %s927 = smul.u32 64, %s14
      $region36: #{cnn_forward.6} parent=31 // pred_fallthru
        _
    $region32: #{cnn_forward.6} parent=5 // pred_fallthru
      _
    %p928 = scmp.le.s32.totalorder 2, %s9
    // Predicated region
    $region37: #{cnn_forward.6} parent=5 // pred_check
      %p929 = pneg %p928
    $region38: #{cnn_forward.6} parent=5 // pred_check_branch
      %931 = sbr.rel (%p929) target = $region40
    $region39: #{cnn_forward.6} parent=5 // pred_region
      %s932 = ssub.s32 %s9, 2
      // Predicated region
      $region41: #{cnn_forward.6} parent=39 // pred_check
        %p933 = pneg %p106
      $region42: #{cnn_forward.6} parent=39 // pred_check_branch
        %935 = sbr.rel (%p933) target = $region44
      $region43: #{cnn_forward.6} parent=39 // pred_region
        %s936 = smul.u32 64, %s15
        %p937 = scmp.lt.s32.totalorder %s936, 255
        %s938 = scalar_select %p937, %s936, 255
        %s939 = smul.addr %s938, 8
        %s940 = scalar_lea.vmem %s3, %s939
      $region44: #{cnn_forward.6} parent=39 // pred_fallthru
        _
    $region40: #{cnn_forward.6} parent=5 // pred_fallthru
      _
  $region6: #{cnn_forward.6} parent=0 // loop_footer
    %s13 = sadd.s32 1, %s9
  $region7: #{cnn_forward.6} parent=0 // loop_footer_branch
    %8 = sbr.rel target = $region3
  $region8: #{cnn_forward.6} parent=0 // loop_exit
    _

// kernel: cnn_forward.7
$region0: #{cnn_forward.7}
  #allocation0 [shape = 'u32[]', space=smem, size = 0x4, offset = 0x4, fixed_abs, tag = 'smem constant byte address 0x4 - core index']
  #allocation1 [shape = 'u32[144,128]{1,0:T(1,128)}', space=vmem, size = 0x12000, scoped, tag = 'internal scratch']
  %s0 = inlined_call_operand.vmem [shape: bf16[1536,512], index: 0, kind: input, shape index: {}]
  %s1 = inlined_call_operand.vmem [shape: bf16[512,128], index: 1, kind: input, shape index: {}]
  %s2 = inlined_call_operand.vmem [shape: f32[1,128], index: 2, kind: input, shape index: {}]
  %s3 = inlined_call_operand.vmem [shape: f32[1536,128], index: 3, kind: output, shape index: {}]
  %s4 = sld [smem:[#allocation0]]
  $region45: #{cnn_forward.7} parent=0
    _
  %s6 = ssub.s32 1, %s4
  %s7 = scalar_select 0, %s6, %s4
  loop: start=0, step=1, limit=5
  $region2: #{cnn_forward.7} parent=0 // loop_pre_header
    _
  $region3: #{cnn_forward.7} parent=0 // loop_header
    %s9 = sphi 0, %s13
    %p10 = scmp.ge.s32.totalorder %s9, 5
    %s19 = sphi 0, %s21
    %s22 = sphi 0, %s19
    %s23 = sphi 0, %s22
    %s39 = sphi 0, %s23
    %s43 = sphi 0, %s43
    %s45 = sphi 0, %s43
    %s46 = sphi 0, %s45
    %s60 = sphi 0, %s46
    %s64 = sphi 0, %s64
    %s66 = sphi 0, %s64
    %s67 = sphi 0, %s66
    %s81 = sphi 0, %s67
    %s87 = sphi 0, %s89
    %s90 = sphi 0, %s87
    %s91 = sphi 0, %s90
    %s107 = sphi 0, %s91
  $region4: #{cnn_forward.7} parent=0 // loop_header_branch
    %12 = sbr.rel (%p10) target = $region8
  $region5: #{cnn_forward.7} parent=0 // loop_body
    %s14 = ssub.s32 %s9, 1
    %s15 = ssub.s32 %s9, 2
    %s16 = sadd.s32 %s9, 1
    %s17 = ssub.s32 %s9, %s16
    %p18 = scmp.eq.s32.totalorder %s17, 0
    %s20 = sadd.s32 %s19, 1
    %s21 = scalar_select %p18, %s19, %s20
    %p24 = pneg %p18
    %p25 = scmp.eq.s32.totalorder %s9, 2
    %p26 = por %p24, %p25
    %p27 = scmp.ne.s32.totalorder %s19, %s22
    %p28 = scmp.eq.s32.totalorder %s9, 0
    %p29 = por %p27, %p28
    %p30 = scmp.ne.s32.totalorder %s19, %s22
    %p31 = scmp.eq.s32.totalorder %s14, 2
    %p32 = por %p30, %p31
    %p33 = scmp.ne.s32.totalorder %s22, %s23
    %p34 = scmp.eq.s32.totalorder %s14, 0
    %p35 = por %p33, %p34
    %p36 = scmp.ne.s32.totalorder %s22, %s23
    %p37 = scmp.eq.s32.totalorder %s15, 2
    %p38 = por %p36, %p37
    %p40 = scmp.ne.s32.totalorder %s23, %s39
    %p41 = scmp.eq.s32.totalorder %s15, 0
    %p42 = por %p40, %p41
    %s44 = sadd.s32 %s43, 1
    %p47 = scmp.eq.s32.totalorder %s9, 2
    %p48 = scmp.ne.s32.totalorder %s43, %s45
    %p49 = scmp.eq.s32.totalorder %s9, 0
    %p50 = por %p48, %p49
    %p51 = scmp.ne.s32.totalorder %s43, %s45
    %p52 = scmp.eq.s32.totalorder %s14, 2
    %p53 = por %p51, %p52
    %p54 = scmp.ne.s32.totalorder %s45, %s46
    %p55 = scmp.eq.s32.totalorder %s14, 0
    %p56 = por %p54, %p55
    %p57 = scmp.ne.s32.totalorder %s45, %s46
    %p58 = scmp.eq.s32.totalorder %s15, 2
    %p59 = por %p57, %p58
    %p61 = scmp.ne.s32.totalorder %s46, %s60
    %p62 = scmp.eq.s32.totalorder %s15, 0
    %p63 = por %p61, %p62
    %s65 = sadd.s32 %s64, 1
    %p68 = scmp.eq.s32.totalorder %s9, 2
    %p69 = scmp.ne.s32.totalorder %s64, %s66
    %p70 = scmp.eq.s32.totalorder %s9, 0
    %p71 = por %p69, %p70
    %p72 = scmp.ne.s32.totalorder %s64, %s66
    %p73 = scmp.eq.s32.totalorder %s14, 2
    %p74 = por %p72, %p73
    %p75 = scmp.ne.s32.totalorder %s66, %s67
    %p76 = scmp.eq.s32.totalorder %s14, 0
    %p77 = por %p75, %p76
    %p78 = scmp.ne.s32.totalorder %s66, %s67
    %p79 = scmp.eq.s32.totalorder %s15, 2
    %p80 = por %p78, %p79
    %p82 = scmp.ne.s32.totalorder %s67, %s81
    %p83 = scmp.eq.s32.totalorder %s15, 0
    %p84 = por %p82, %p83
    %s85 = ssub.s32 %s9, %s16
    %p86 = scmp.eq.s32.totalorder %s85, 0
    %s88 = sadd.s32 %s87, 1
    %s89 = scalar_select %p86, %s87, %s88
    %p92 = pneg %p86
    %p93 = scmp.eq.s32.totalorder %s9, 2
    %p94 = por %p92, %p93
    %p95 = scmp.ne.s32.totalorder %s87, %s90
    %p96 = scmp.eq.s32.totalorder %s9, 0
    %p97 = por %p95, %p96
    %p98 = scmp.ne.s32.totalorder %s87, %s90
    %p99 = scmp.eq.s32.totalorder %s14, 2
    %p100 = por %p98, %p99
    %p101 = scmp.ne.s32.totalorder %s90, %s91
    %p102 = scmp.eq.s32.totalorder %s14, 0
    %p103 = por %p101, %p102
    %p104 = scmp.ne.s32.totalorder %s90, %s91
    %p105 = scmp.eq.s32.totalorder %s15, 2
    %p106 = por %p104, %p105
    %p108 = scmp.ne.s32.totalorder %s91, %s107
    %p109 = scmp.eq.s32.totalorder %s15, 0
    %p110 = por %p108, %p109
    %p111 = scmp.le.s32.totalorder 1, %s9
    %p112 = scmp.lt.s32.totalorder %s9, 4
    %p113 = pnand %p111, %p112
    %p114 = pneg %p113
    // Predicated region
    $region9: #{cnn_forward.7} parent=5 // pred_check
      _
    $region10: #{cnn_forward.7} parent=5 // pred_check_branch
      %116 = sbr.rel (%p113) target = $region12
    $region11: #{cnn_forward.7} parent=5 // pred_region
      %s117 = ssub.s32 %s9, 1
      // Predicated region
      $region13: #{cnn_forward.7} parent=11 // pred_check
        %p118 = pneg %p56
      $region14: #{cnn_forward.7} parent=11 // pred_check_branch
        %120 = sbr.rel (%p118) target = $region16
      $region15: #{cnn_forward.7} parent=11 // pred_region
        _
      $region16: #{cnn_forward.7} parent=11 // pred_fallthru
        _
      // Predicated region
      $region17: #{cnn_forward.7} parent=11 // pred_check
        %p121 = pneg %p77
      $region18: #{cnn_forward.7} parent=11 // pred_check_branch
        %123 = sbr.rel (%p121) target = $region20
      $region19: #{cnn_forward.7} parent=11 // pred_region
        _
      $region20: #{cnn_forward.7} parent=11 // pred_fallthru
        _
    $region12: #{cnn_forward.7} parent=5 // pred_fallthru
      _
    %p124 = scmp.lt.s32.totalorder %s9, 3
    // Predicated region
    $region21: #{cnn_forward.7} parent=5 // pred_check
      %p125 = pneg %p124
    $region22: #{cnn_forward.7} parent=5 // pred_check_branch
      %127 = sbr.rel (%p125) target = $region24
    $region23: #{cnn_forward.7} parent=5 // pred_region
      // Predicated region
      $region25: #{cnn_forward.7} parent=23 // pred_check
        %p128 = pneg %p29
      $region26: #{cnn_forward.7} parent=23 // pred_check_branch
        %130 = sbr.rel (%p128) target = $region28
      $region27: #{cnn_forward.7} parent=23 // pred_region
        %s131 = smul.u32 64, %s9
        %p132 = scmp.lt.s32.totalorder %s131, 191
        %s133 = scalar_select %p132, %s131, 191
        %s134 = smul.addr %s133, 4
        %s135 = smul.addr %s134, 4
        %s136 = scalar_lea.vmem %s0, %s135
        %s137 = smul.u32 64, %s9
      $region28: #{cnn_forward.7} parent=23 // pred_fallthru
        _
    $region24: #{cnn_forward.7} parent=5 // pred_fallthru
      _
    %p138 = scmp.le.s32.totalorder 1, %s9
    %p139 = scmp.lt.s32.totalorder %s9, 4
    %p140 = pnand %p138, %p139
    %p141 = pneg %p140
    // Predicated region
    $region29: #{cnn_forward.7} parent=5 // pred_check
      _
    $region30: #{cnn_forward.7} parent=5 // pred_check_branch
      %143 = sbr.rel (%p140) target = $region32
    $region31: #{cnn_forward.7} parent=5 // pred_region
      %s144 = ssub.s32 %s9, 1
      %s145 = smul.u32 64, %s14
      %p146 = scmp.lt.s32.totalorder %s145, 191
      %s147 = scalar_select %p146, %s145, 191
      %s148 = smul.addr %s147, 4
      %s149 = smul.addr %s148, 4
      %s150 = scalar_lea.vmem %s0, %s149
      %p151 = pneg %p35
      %p152 = pneg %p32
      %p153 = pneg %p56
      %p154 = pneg %p53
      %p155 = pneg %p77
      %p156 = pneg %p74
      %p157 = pneg %p103
      %p158 = pneg %p100
      %s159 = smul.u32 64, %s14
      %p160 = scmp.lt.s32.totalorder %s159, 191
      %s161 = scalar_select %p160, %s159, 191
      %s162 = smul.addr %s161, 8
      %s163 = scalar_lea.vmem %s3, %s162
      %s164 = smul.u32 64, %s14
      %p165 = scmp.lt.s32.totalorder %s164, 191
      %s166 = scalar_select %p165, %s164, 191
      %s167 = smul.addr %s166, 4
      %s168 = smul.addr %s167, 4
      %s169 = scalar_lea.vmem %s0, %s168
      %s170 = smul.u32 64, %s14
      %s171 = smul.u32 64, %s14
      %p172 = scmp.lt.s32.totalorder %s171, 191
      %s173 = scalar_select %p172, %s171, 191
      %s174 = smul.addr %s173, 8
      %s175 = scalar_lea.vmem %s3, %s174
      %s176 = smul.u32 64, %s14
      %v178 = vld [vmem:[%s169] sm:$0xff]
      %v179 = vld [vmem:[%s169 + $0x8] sm:$0xff]
      %v180 = vld [vmem:[%s169 + $0x10] sm:$0xff]
      %v181 = vld [vmem:[%s169 + $0x18] sm:$0xff]
      %v182 = vld [vmem:[%s169 + $0x20] sm:$0xff]
      %v183 = vld [vmem:[%s169 + $0x28] sm:$0xff]
      %v184 = vld [vmem:[%s169 + $0x30] sm:$0xff]
      %v185 = vld [vmem:[%s169 + $0x38] sm:$0xff]
      %v186 = vld [vmem:[%s169 + $0x40] sm:$0xff]
      %v187 = vld [vmem:[%s169 + $0x48] sm:$0xff]
      %v188 = vld [vmem:[%s169 + $0x50] sm:$0xff]
      %v189 = vld [vmem:[%s169 + $0x58] sm:$0xff]
      %v190 = vld [vmem:[%s169 + $0x60] sm:$0xff]
      %v191 = vld [vmem:[%s169 + $0x68] sm:$0xff]
      %v192 = vld [vmem:[%s169 + $0x70] sm:$0xff]
      %v193 = vld [vmem:[%s169 + $0x78] sm:$0xff]
      %v194 = vld [vmem:[%s169 + $0x80] sm:$0xff]
      %v195 = vld [vmem:[%s169 + $0x88] sm:$0xff]
      %v196 = vld [vmem:[%s169 + $0x90] sm:$0xff]
      %v197 = vld [vmem:[%s169 + $0x98] sm:$0xff]
      %v198 = vld [vmem:[%s169 + $0xa0] sm:$0xff]
      %v199 = vld [vmem:[%s169 + $0xa8] sm:$0xff]
      %v200 = vld [vmem:[%s169 + $0xb0] sm:$0xff]
      %v201 = vld [vmem:[%s169 + $0xb8] sm:$0xff]
      %v202 = vld [vmem:[%s169 + $0xc0] sm:$0xff]
      %v203 = vld [vmem:[%s169 + $0xc8] sm:$0xff]
      %v204 = vld [vmem:[%s169 + $0xd0] sm:$0xff]
      %v205 = vld [vmem:[%s169 + $0xd8] sm:$0xff]
      %v206 = vld [vmem:[%s169 + $0xe0] sm:$0xff]
      %v207 = vld [vmem:[%s169 + $0xe8] sm:$0xff]
      %v208 = vld [vmem:[%s169 + $0xf0] sm:$0xff]
      %v209 = vld [vmem:[%s169 + $0xf8] sm:$0xff]
      %v210 = vld [vmem:[%s169 + $0x100] sm:$0xff]
      %v211 = vld [vmem:[%s169 + $0x108] sm:$0xff]
      %v212 = vld [vmem:[%s169 + $0x110] sm:$0xff]
      %v213 = vld [vmem:[%s169 + $0x118] sm:$0xff]
      %v214 = vld [vmem:[%s169 + $0x120] sm:$0xff]
      %v215 = vld [vmem:[%s169 + $0x128] sm:$0xff]
      %v216 = vld [vmem:[%s169 + $0x130] sm:$0xff]
      %v217 = vld [vmem:[%s169 + $0x138] sm:$0xff]
      %v218 = vld [vmem:[%s169 + $0x140] sm:$0xff]
      %v219 = vld [vmem:[%s169 + $0x148] sm:$0xff]
      %v220 = vld [vmem:[%s169 + $0x150] sm:$0xff]
      %v221 = vld [vmem:[%s169 + $0x158] sm:$0xff]
      %v222 = vld [vmem:[%s169 + $0x160] sm:$0xff]
      %v223 = vld [vmem:[%s169 + $0x168] sm:$0xff]
      %v224 = vld [vmem:[%s169 + $0x170] sm:$0xff]
      %v225 = vld [vmem:[%s169 + $0x178] sm:$0xff]
      %v226 = vld [vmem:[%s169 + $0x180] sm:$0xff]
      %v227 = vld [vmem:[%s169 + $0x188] sm:$0xff]
      %v228 = vld [vmem:[%s169 + $0x190] sm:$0xff]
      %v229 = vld [vmem:[%s169 + $0x198] sm:$0xff]
      %v230 = vld [vmem:[%s169 + $0x1a0] sm:$0xff]
      %v231 = vld [vmem:[%s169 + $0x1a8] sm:$0xff]
      %v232 = vld [vmem:[%s169 + $0x1b0] sm:$0xff]
      %v233 = vld [vmem:[%s169 + $0x1b8] sm:$0xff]
      %v234 = vld [vmem:[%s169 + $0x1c0] sm:$0xff]
      %v235 = vld [vmem:[%s169 + $0x1c8] sm:$0xff]
      %v236 = vld [vmem:[%s169 + $0x1d0] sm:$0xff]
      %v237 = vld [vmem:[%s169 + $0x1d8] sm:$0xff]
      %v238 = vld [vmem:[%s169 + $0x1e0] sm:$0xff]
      %v239 = vld [vmem:[%s169 + $0x1e8] sm:$0xff]
      %v240 = vld [vmem:[%s169 + $0x1f0] sm:$0xff]
      %v241 = vld [vmem:[%s169 + $0x1f8] sm:$0xff]
      %v242 = vld [vmem:[%s169 + $0x200] sm:$0xff]
      %v243 = vld [vmem:[%s169 + $0x208] sm:$0xff]
      %v244 = vld [vmem:[%s169 + $0x210] sm:$0xff]
      %v245 = vld [vmem:[%s169 + $0x218] sm:$0xff]
      %v246 = vld [vmem:[%s169 + $0x220] sm:$0xff]
      %v247 = vld [vmem:[%s169 + $0x228] sm:$0xff]
      %v248 = vld [vmem:[%s169 + $0x230] sm:$0xff]
      %v249 = vld [vmem:[%s169 + $0x238] sm:$0xff]
      %v250 = vld [vmem:[%s169 + $0x240] sm:$0xff]
      %v251 = vld [vmem:[%s169 + $0x248] sm:$0xff]
      %v252 = vld [vmem:[%s169 + $0x250] sm:$0xff]
      %v253 = vld [vmem:[%s169 + $0x258] sm:$0xff]
      %v254 = vld [vmem:[%s169 + $0x260] sm:$0xff]
      %v255 = vld [vmem:[%s169 + $0x268] sm:$0xff]
      %v256 = vld [vmem:[%s169 + $0x270] sm:$0xff]
      %v257 = vld [vmem:[%s169 + $0x278] sm:$0xff]
      %v258 = vld [vmem:[%s169 + $0x280] sm:$0xff]
      %v259 = vld [vmem:[%s169 + $0x288] sm:$0xff]
      %v260 = vld [vmem:[%s169 + $0x290] sm:$0xff]
      %v261 = vld [vmem:[%s169 + $0x298] sm:$0xff]
      %v262 = vld [vmem:[%s169 + $0x2a0] sm:$0xff]
      %v263 = vld [vmem:[%s169 + $0x2a8] sm:$0xff]
      %v264 = vld [vmem:[%s169 + $0x2b0] sm:$0xff]
      %v265 = vld [vmem:[%s169 + $0x2b8] sm:$0xff]
      %v266 = vld [vmem:[%s169 + $0x2c0] sm:$0xff]
      %v267 = vld [vmem:[%s169 + $0x2c8] sm:$0xff]
      %v268 = vld [vmem:[%s169 + $0x2d0] sm:$0xff]
      %v269 = vld [vmem:[%s169 + $0x2d8] sm:$0xff]
      %v270 = vld [vmem:[%s169 + $0x2e0] sm:$0xff]
      %v271 = vld [vmem:[%s169 + $0x2e8] sm:$0xff]
      %v272 = vld [vmem:[%s169 + $0x2f0] sm:$0xff]
      %v273 = vld [vmem:[%s169 + $0x2f8] sm:$0xff]
      %v274 = vld [vmem:[%s169 + $0x300] sm:$0xff]
      %v275 = vld [vmem:[%s169 + $0x308] sm:$0xff]
      %v276 = vld [vmem:[%s169 + $0x310] sm:$0xff]
      %v277 = vld [vmem:[%s169 + $0x318] sm:$0xff]
      %v278 = vld [vmem:[%s169 + $0x320] sm:$0xff]
      %v279 = vld [vmem:[%s169 + $0x328] sm:$0xff]
      %v280 = vld [vmem:[%s169 + $0x330] sm:$0xff]
      %v281 = vld [vmem:[%s169 + $0x338] sm:$0xff]
      %v282 = vld [vmem:[%s169 + $0x340] sm:$0xff]
      %v283 = vld [vmem:[%s169 + $0x348] sm:$0xff]
      %v284 = vld [vmem:[%s169 + $0x350] sm:$0xff]
      %v285 = vld [vmem:[%s169 + $0x358] sm:$0xff]
      %v286 = vld [vmem:[%s169 + $0x360] sm:$0xff]
      %v287 = vld [vmem:[%s169 + $0x368] sm:$0xff]
      %v288 = vld [vmem:[%s169 + $0x370] sm:$0xff]
      %v289 = vld [vmem:[%s169 + $0x378] sm:$0xff]
      %v290 = vld [vmem:[%s169 + $0x380] sm:$0xff]
      %v291 = vld [vmem:[%s169 + $0x388] sm:$0xff]
      %v292 = vld [vmem:[%s169 + $0x390] sm:$0xff]
      %v293 = vld [vmem:[%s169 + $0x398] sm:$0xff]
      %v294 = vld [vmem:[%s169 + $0x3a0] sm:$0xff]
      %v295 = vld [vmem:[%s169 + $0x3a8] sm:$0xff]
      %v296 = vld [vmem:[%s169 + $0x3b0] sm:$0xff]
      %v297 = vld [vmem:[%s169 + $0x3b8] sm:$0xff]
      %v298 = vld [vmem:[%s169 + $0x3c0] sm:$0xff]
      %v299 = vld [vmem:[%s169 + $0x3c8] sm:$0xff]
      %v300 = vld [vmem:[%s169 + $0x3d0] sm:$0xff]
      %v301 = vld [vmem:[%s169 + $0x3d8] sm:$0xff]
      %v302 = vld [vmem:[%s169 + $0x3e0] sm:$0xff]
      %v303 = vld [vmem:[%s169 + $0x3e8] sm:$0xff]
      %v304 = vld [vmem:[%s169 + $0x3f0] sm:$0xff]
      %v305 = vld [vmem:[%s169 + $0x3f8] sm:$0xff]
      %v306 = vld [vmem:[%s1] sm:$0xf]
      %v307 = vld [vmem:[%s1 + $0x4] sm:$0xf]
      %v308 = vld [vmem:[%s1 + $0x8] sm:$0xf]
      %v309 = vld [vmem:[%s1 + $0xc] sm:$0xf]
      %v310 = vld [vmem:[%s1 + $0x10] sm:$0xf]
      %v311 = vld [vmem:[%s1 + $0x14] sm:$0xf]
      %v312 = vld [vmem:[%s1 + $0x18] sm:$0xf]
      %v313 = vld [vmem:[%s1 + $0x1c] sm:$0xf]
      %v314 = vld [vmem:[%s1 + $0x20] sm:$0xf]
      %v315 = vld [vmem:[%s1 + $0x24] sm:$0xf]
      %v316 = vld [vmem:[%s1 + $0x28] sm:$0xf]
      %v317 = vld [vmem:[%s1 + $0x2c] sm:$0xf]
      %v318 = vld [vmem:[%s1 + $0x30] sm:$0xf]
      %v319 = vld [vmem:[%s1 + $0x34] sm:$0xf]
      %v320 = vld [vmem:[%s1 + $0x38] sm:$0xf]
      %v321 = vld [vmem:[%s1 + $0x3c] sm:$0xf]
      %v322 = vld [vmem:[%s1 + $0x40] sm:$0xf]
      %v323 = vld [vmem:[%s1 + $0x44] sm:$0xf]
      %v324 = vld [vmem:[%s1 + $0x48] sm:$0xf]
      %v325 = vld [vmem:[%s1 + $0x4c] sm:$0xf]
      %v326 = vld [vmem:[%s1 + $0x50] sm:$0xf]
      %v327 = vld [vmem:[%s1 + $0x54] sm:$0xf]
      %v328 = vld [vmem:[%s1 + $0x58] sm:$0xf]
      %v329 = vld [vmem:[%s1 + $0x5c] sm:$0xf]
      %v330 = vld [vmem:[%s1 + $0x60] sm:$0xf]
      %v331 = vld [vmem:[%s1 + $0x64] sm:$0xf]
      %v332 = vld [vmem:[%s1 + $0x68] sm:$0xf]
      %v333 = vld [vmem:[%s1 + $0x6c] sm:$0xf]
      %v334 = vld [vmem:[%s1 + $0x70] sm:$0xf]
      %v335 = vld [vmem:[%s1 + $0x74] sm:$0xf]
      %v336 = vld [vmem:[%s1 + $0x78] sm:$0xf]
      %v337 = vld [vmem:[%s1 + $0x7c] sm:$0xf]
      %v338 = vld [vmem:[%s1 + $0x80] sm:$0xf]
      %v339 = vld [vmem:[%s1 + $0x84] sm:$0xf]
      %v340 = vld [vmem:[%s1 + $0x88] sm:$0xf]
      %v341 = vld [vmem:[%s1 + $0x8c] sm:$0xf]
      %v342 = vld [vmem:[%s1 + $0x90] sm:$0xf]
      %v343 = vld [vmem:[%s1 + $0x94] sm:$0xf]
      %v344 = vld [vmem:[%s1 + $0x98] sm:$0xf]
      %v345 = vld [vmem:[%s1 + $0x9c] sm:$0xf]
      %v346 = vld [vmem:[%s1 + $0xa0] sm:$0xf]
      %v347 = vld [vmem:[%s1 + $0xa4] sm:$0xf]
      %v348 = vld [vmem:[%s1 + $0xa8] sm:$0xf]
      %v349 = vld [vmem:[%s1 + $0xac] sm:$0xf]
      %v350 = vld [vmem:[%s1 + $0xb0] sm:$0xf]
      %v351 = vld [vmem:[%s1 + $0xb4] sm:$0xf]
      %v352 = vld [vmem:[%s1 + $0xb8] sm:$0xf]
      %v353 = vld [vmem:[%s1 + $0xbc] sm:$0xf]
      %v354 = vld [vmem:[%s1 + $0xc0] sm:$0xf]
      %v355 = vld [vmem:[%s1 + $0xc4] sm:$0xf]
      %v356 = vld [vmem:[%s1 + $0xc8] sm:$0xf]
      %v357 = vld [vmem:[%s1 + $0xcc] sm:$0xf]
      %v358 = vld [vmem:[%s1 + $0xd0] sm:$0xf]
      %v359 = vld [vmem:[%s1 + $0xd4] sm:$0xf]
      %v360 = vld [vmem:[%s1 + $0xd8] sm:$0xf]
      %v361 = vld [vmem:[%s1 + $0xdc] sm:$0xf]
      %v362 = vld [vmem:[%s1 + $0xe0] sm:$0xf]
      %v363 = vld [vmem:[%s1 + $0xe4] sm:$0xf]
      %v364 = vld [vmem:[%s1 + $0xe8] sm:$0xf]
      %v365 = vld [vmem:[%s1 + $0xec] sm:$0xf]
      %v366 = vld [vmem:[%s1 + $0xf0] sm:$0xf]
      %v367 = vld [vmem:[%s1 + $0xf4] sm:$0xf]
      %v368 = vld [vmem:[%s1 + $0xf8] sm:$0xf]
      %v369 = vld [vmem:[%s1 + $0xfc] sm:$0xf]
      %v370 = vld [vmem:[%s2] sm:$0x1]
      %v372 = vlaneseq
      %v373 = vshrl.u32 %v372, 7
      %v374 = vsub.s32 0, %v373
      %v375 = vrot.slane %v370, %v374
      %v505 = vunpack.c.l.b16 %v178
      %v506 = vunpack.c.h.b16 %v178
      %v507 = vunpack.c.l.b16 %v179
      %v508 = vunpack.c.h.b16 %v179
      %v509 = vunpack.c.l.b16 %v180
      %v510 = vunpack.c.h.b16 %v180
      %v511 = vunpack.c.l.b16 %v181
      %v512 = vunpack.c.h.b16 %v181
      %v513 = vunpack.c.l.b16 %v182
      %v514 = vunpack.c.h.b16 %v182
      %v515 = vunpack.c.l.b16 %v183
      %v516 = vunpack.c.h.b16 %v183
      %v517 = vunpack.c.l.b16 %v184
      %v518 = vunpack.c.h.b16 %v184
      %v519 = vunpack.c.l.b16 %v185
      %v520 = vunpack.c.h.b16 %v185
      %v521 = vunpack.c.l.b16 %v186
      %v522 = vunpack.c.h.b16 %v186
      %v523 = vunpack.c.l.b16 %v187
      %v524 = vunpack.c.h.b16 %v187
      %v525 = vunpack.c.l.b16 %v188
      %v526 = vunpack.c.h.b16 %v188
      %v527 = vunpack.c.l.b16 %v189
      %v528 = vunpack.c.h.b16 %v189
      %v529 = vunpack.c.l.b16 %v190
      %v530 = vunpack.c.h.b16 %v190
      %v531 = vunpack.c.l.b16 %v191
      %v532 = vunpack.c.h.b16 %v191
      %v533 = vunpack.c.l.b16 %v192
      %v534 = vunpack.c.h.b16 %v192
      %v535 = vunpack.c.l.b16 %v193
      %v536 = vunpack.c.h.b16 %v193
      %v537 = vunpack.c.l.b16 %v194
      %v538 = vunpack.c.h.b16 %v194
      %v539 = vunpack.c.l.b16 %v195
      %v540 = vunpack.c.h.b16 %v195
      %v541 = vunpack.c.l.b16 %v196
      %v542 = vunpack.c.h.b16 %v196
      %v543 = vunpack.c.l.b16 %v197
      %v544 = vunpack.c.h.b16 %v197
      %v545 = vunpack.c.l.b16 %v198
      %v546 = vunpack.c.h.b16 %v198
      %v547 = vunpack.c.l.b16 %v199
      %v548 = vunpack.c.h.b16 %v199
      %v549 = vunpack.c.l.b16 %v200
      %v550 = vunpack.c.h.b16 %v200
      %v551 = vunpack.c.l.b16 %v201
      %v552 = vunpack.c.h.b16 %v201
      %v553 = vunpack.c.l.b16 %v202
      %v554 = vunpack.c.h.b16 %v202
      %v555 = vunpack.c.l.b16 %v203
      %v556 = vunpack.c.h.b16 %v203
      %v557 = vunpack.c.l.b16 %v204
      %v558 = vunpack.c.h.b16 %v204
      %v559 = vunpack.c.l.b16 %v205
      %v560 = vunpack.c.h.b16 %v205
      %v561 = vunpack.c.l.b16 %v206
      %v562 = vunpack.c.h.b16 %v206
      %v563 = vunpack.c.l.b16 %v207
      %v564 = vunpack.c.h.b16 %v207
      %v565 = vunpack.c.l.b16 %v208
      %v566 = vunpack.c.h.b16 %v208
      %v567 = vunpack.c.l.b16 %v209
      %v568 = vunpack.c.h.b16 %v209
      %v569 = vunpack.c.l.b16 %v210
      %v570 = vunpack.c.h.b16 %v210
      %v571 = vunpack.c.l.b16 %v211
      %v572 = vunpack.c.h.b16 %v211
      %v573 = vunpack.c.l.b16 %v212
      %v574 = vunpack.c.h.b16 %v212
      %v575 = vunpack.c.l.b16 %v213
      %v576 = vunpack.c.h.b16 %v213
      %v577 = vunpack.c.l.b16 %v214
      %v578 = vunpack.c.h.b16 %v214
      %v579 = vunpack.c.l.b16 %v215
      %v580 = vunpack.c.h.b16 %v215
      %v581 = vunpack.c.l.b16 %v216
      %v582 = vunpack.c.h.b16 %v216
      %v583 = vunpack.c.l.b16 %v217
      %v584 = vunpack.c.h.b16 %v217
      %v585 = vunpack.c.l.b16 %v218
      %v586 = vunpack.c.h.b16 %v218
      %v587 = vunpack.c.l.b16 %v219
      %v588 = vunpack.c.h.b16 %v219
      %v589 = vunpack.c.l.b16 %v220
      %v590 = vunpack.c.h.b16 %v220
      %v591 = vunpack.c.l.b16 %v221
      %v592 = vunpack.c.h.b16 %v221
      %v593 = vunpack.c.l.b16 %v222
      %v594 = vunpack.c.h.b16 %v222
      %v595 = vunpack.c.l.b16 %v223
      %v596 = vunpack.c.h.b16 %v223
      %v597 = vunpack.c.l.b16 %v224
      %v598 = vunpack.c.h.b16 %v224
      %v599 = vunpack.c.l.b16 %v225
      %v600 = vunpack.c.h.b16 %v225
      %v601 = vunpack.c.l.b16 %v226
      %v602 = vunpack.c.h.b16 %v226
      %v603 = vunpack.c.l.b16 %v227
      %v604 = vunpack.c.h.b16 %v227
      %v605 = vunpack.c.l.b16 %v228
      %v606 = vunpack.c.h.b16 %v228
      %v607 = vunpack.c.l.b16 %v229
      %v608 = vunpack.c.h.b16 %v229
      %v609 = vunpack.c.l.b16 %v230
      %v610 = vunpack.c.h.b16 %v230
      %v611 = vunpack.c.l.b16 %v231
      %v612 = vunpack.c.h.b16 %v231
      %v613 = vunpack.c.l.b16 %v232
      %v614 = vunpack.c.h.b16 %v232
      %v615 = vunpack.c.l.b16 %v233
      %v616 = vunpack.c.h.b16 %v233
      %v617 = vunpack.c.l.b16 %v234
      %v618 = vunpack.c.h.b16 %v234
      %v619 = vunpack.c.l.b16 %v235
      %v620 = vunpack.c.h.b16 %v235
      %v621 = vunpack.c.l.b16 %v236
      %v622 = vunpack.c.h.b16 %v236
      %v623 = vunpack.c.l.b16 %v237
      %v624 = vunpack.c.h.b16 %v237
      %v625 = vunpack.c.l.b16 %v238
      %v626 = vunpack.c.h.b16 %v238
      %v627 = vunpack.c.l.b16 %v239
      %v628 = vunpack.c.h.b16 %v239
      %v629 = vunpack.c.l.b16 %v240
      %v630 = vunpack.c.h.b16 %v240
      %v631 = vunpack.c.l.b16 %v241
      %v632 = vunpack.c.h.b16 %v241
      %v633 = vunpack.c.l.b16 %v242
      %v634 = vunpack.c.h.b16 %v242
      %v635 = vunpack.c.l.b16 %v243
      %v636 = vunpack.c.h.b16 %v243
      %v637 = vunpack.c.l.b16 %v244
      %v638 = vunpack.c.h.b16 %v244
      %v639 = vunpack.c.l.b16 %v245
      %v640 = vunpack.c.h.b16 %v245
      %v641 = vunpack.c.l.b16 %v246
      %v642 = vunpack.c.h.b16 %v246
      %v643 = vunpack.c.l.b16 %v247
      %v644 = vunpack.c.h.b16 %v247
      %v645 = vunpack.c.l.b16 %v248
      %v646 = vunpack.c.h.b16 %v248
      %v647 = vunpack.c.l.b16 %v249
      %v648 = vunpack.c.h.b16 %v249
      %v649 = vunpack.c.l.b16 %v250
      %v650 = vunpack.c.h.b16 %v250
      %v651 = vunpack.c.l.b16 %v251
      %v652 = vunpack.c.h.b16 %v251
      %v653 = vunpack.c.l.b16 %v252
      %v654 = vunpack.c.h.b16 %v252
      %v655 = vunpack.c.l.b16 %v253
      %v656 = vunpack.c.h.b16 %v253
      %v657 = vunpack.c.l.b16 %v254
      %v658 = vunpack.c.h.b16 %v254
      %v659 = vunpack.c.l.b16 %v255
      %v660 = vunpack.c.h.b16 %v255
      %v661 = vunpack.c.l.b16 %v256
      %v662 = vunpack.c.h.b16 %v256
      %v663 = vunpack.c.l.b16 %v257
      %v664 = vunpack.c.h.b16 %v257
      %v665 = vunpack.c.l.b16 %v258
      %v666 = vunpack.c.h.b16 %v258
      %v667 = vunpack.c.l.b16 %v259
      %v668 = vunpack.c.h.b16 %v259
      %v669 = vunpack.c.l.b16 %v260
      %v670 = vunpack.c.h.b16 %v260
      %v671 = vunpack.c.l.b16 %v261
      %v672 = vunpack.c.h.b16 %v261
      %v673 = vunpack.c.l.b16 %v262
      %v674 = vunpack.c.h.b16 %v262
      %v675 = vunpack.c.l.b16 %v263
      %v676 = vunpack.c.h.b16 %v263
      %v677 = vunpack.c.l.b16 %v264
      %v678 = vunpack.c.h.b16 %v264
      %v679 = vunpack.c.l.b16 %v265
      %v680 = vunpack.c.h.b16 %v265
      %v681 = vunpack.c.l.b16 %v266
      %v682 = vunpack.c.h.b16 %v266
      %v683 = vunpack.c.l.b16 %v267
      %v684 = vunpack.c.h.b16 %v267
      %v685 = vunpack.c.l.b16 %v268
      %v686 = vunpack.c.h.b16 %v268
      %v687 = vunpack.c.l.b16 %v269
      %v688 = vunpack.c.h.b16 %v269
      %v689 = vunpack.c.l.b16 %v270
      %v690 = vunpack.c.h.b16 %v270
      %v691 = vunpack.c.l.b16 %v271
      %v692 = vunpack.c.h.b16 %v271
      %v693 = vunpack.c.l.b16 %v272
      %v694 = vunpack.c.h.b16 %v272
      %v695 = vunpack.c.l.b16 %v273
      %v696 = vunpack.c.h.b16 %v273
      %v697 = vunpack.c.l.b16 %v274
      %v698 = vunpack.c.h.b16 %v274
      %v699 = vunpack.c.l.b16 %v275
      %v700 = vunpack.c.h.b16 %v275
      %v701 = vunpack.c.l.b16 %v276
      %v702 = vunpack.c.h.b16 %v276
      %v703 = vunpack.c.l.b16 %v277
      %v704 = vunpack.c.h.b16 %v277
      %v705 = vunpack.c.l.b16 %v278
      %v706 = vunpack.c.h.b16 %v278
      %v707 = vunpack.c.l.b16 %v279
      %v708 = vunpack.c.h.b16 %v279
      %v709 = vunpack.c.l.b16 %v280
      %v710 = vunpack.c.h.b16 %v280
      %v711 = vunpack.c.l.b16 %v281
      %v712 = vunpack.c.h.b16 %v281
      %v713 = vunpack.c.l.b16 %v282
      %v714 = vunpack.c.h.b16 %v282
      %v715 = vunpack.c.l.b16 %v283
      %v716 = vunpack.c.h.b16 %v283
      %v717 = vunpack.c.l.b16 %v284
      %v718 = vunpack.c.h.b16 %v284
      %v719 = vunpack.c.l.b16 %v285
      %v720 = vunpack.c.h.b16 %v285
      %v721 = vunpack.c.l.b16 %v286
      %v722 = vunpack.c.h.b16 %v286
      %v723 = vunpack.c.l.b16 %v287
      %v724 = vunpack.c.h.b16 %v287
      %v725 = vunpack.c.l.b16 %v288
      %v726 = vunpack.c.h.b16 %v288
      %v727 = vunpack.c.l.b16 %v289
      %v728 = vunpack.c.h.b16 %v289
      %v729 = vunpack.c.l.b16 %v290
      %v730 = vunpack.c.h.b16 %v290
      %v731 = vunpack.c.l.b16 %v291
      %v732 = vunpack.c.h.b16 %v291
      %v733 = vunpack.c.l.b16 %v292
      %v734 = vunpack.c.h.b16 %v292
      %v735 = vunpack.c.l.b16 %v293
      %v736 = vunpack.c.h.b16 %v293
      %v737 = vunpack.c.l.b16 %v294
      %v738 = vunpack.c.h.b16 %v294
      %v739 = vunpack.c.l.b16 %v295
      %v740 = vunpack.c.h.b16 %v295
      %v741 = vunpack.c.l.b16 %v296
      %v742 = vunpack.c.h.b16 %v296
      %v743 = vunpack.c.l.b16 %v297
      %v744 = vunpack.c.h.b16 %v297
      %v745 = vunpack.c.l.b16 %v298
      %v746 = vunpack.c.h.b16 %v298
      %v747 = vunpack.c.l.b16 %v299
      %v748 = vunpack.c.h.b16 %v299
      %v749 = vunpack.c.l.b16 %v300
      %v750 = vunpack.c.h.b16 %v300
      %v751 = vunpack.c.l.b16 %v301
      %v752 = vunpack.c.h.b16 %v301
      %v753 = vunpack.c.l.b16 %v302
      %v754 = vunpack.c.h.b16 %v302
      %v755 = vunpack.c.l.b16 %v303
      %v756 = vunpack.c.h.b16 %v303
      %v757 = vunpack.c.l.b16 %v304
      %v758 = vunpack.c.h.b16 %v304
      %v759 = vunpack.c.l.b16 %v305
      %v760 = vunpack.c.h.b16 %v305
      %v761 = vpack.c.b16 %v509, %v505
      %v762 = vpack.c.b16 %v510, %v506
      %v763 = vpack.c.b16 %v511, %v507
      %v764 = vpack.c.b16 %v512, %v508
      %v765 = vpack.c.b16 %v517, %v513
      %v766 = vpack.c.b16 %v518, %v514
      %v767 = vpack.c.b16 %v519, %v515
      %v768 = vpack.c.b16 %v520, %v516
      %v769 = vpack.c.b16 %v525, %v521
      %v770 = vpack.c.b16 %v526, %v522
      %v771 = vpack.c.b16 %v527, %v523
      %v772 = vpack.c.b16 %v528, %v524
      %v773 = vpack.c.b16 %v533, %v529
      %v774 = vpack.c.b16 %v534, %v530
      %v775 = vpack.c.b16 %v535, %v531
      %v776 = vpack.c.b16 %v536, %v532
      %v777 = vpack.c.b16 %v541, %v537
      %v778 = vpack.c.b16 %v542, %v538
      %v779 = vpack.c.b16 %v543, %v539
      %v780 = vpack.c.b16 %v544, %v540
      %v781 = vpack.c.b16 %v549, %v545
      %v782 = vpack.c.b16 %v550, %v546
      %v783 = vpack.c.b16 %v551, %v547
      %v784 = vpack.c.b16 %v552, %v548
      %v785 = vpack.c.b16 %v557, %v553
      %v786 = vpack.c.b16 %v558, %v554
      %v787 = vpack.c.b16 %v559, %v555
      %v788 = vpack.c.b16 %v560, %v556
      %v789 = vpack.c.b16 %v565, %v561
      %v790 = vpack.c.b16 %v566, %v562
      %v791 = vpack.c.b16 %v567, %v563
      %v792 = vpack.c.b16 %v568, %v564
      %v793 = vpack.c.b16 %v573, %v569
      %v794 = vpack.c.b16 %v574, %v570
      %v795 = vpack.c.b16 %v575, %v571
      %v796 = vpack.c.b16 %v576, %v572
      %v797 = vpack.c.b16 %v581, %v577
      %v798 = vpack.c.b16 %v582, %v578
      %v799 = vpack.c.b16 %v583, %v579
      %v800 = vpack.c.b16 %v584, %v580
      %v801 = vpack.c.b16 %v589, %v585
      %v802 = vpack.c.b16 %v590, %v586
      %v803 = vpack.c.b16 %v591, %v587
      %v804 = vpack.c.b16 %v592, %v588
      %v805 = vpack.c.b16 %v597, %v593
      %v806 = vpack.c.b16 %v598, %v594
      %v807 = vpack.c.b16 %v599, %v595
      %v808 = vpack.c.b16 %v600, %v596
      %v809 = vpack.c.b16 %v605, %v601
      %v810 = vpack.c.b16 %v606, %v602
      %v811 = vpack.c.b16 %v607, %v603
      %v812 = vpack.c.b16 %v608, %v604
      %v813 = vpack.c.b16 %v613, %v609
      %v814 = vpack.c.b16 %v614, %v610
      %v815 = vpack.c.b16 %v615, %v611
      %v816 = vpack.c.b16 %v616, %v612
      %v817 = vpack.c.b16 %v621, %v617
      %v818 = vpack.c.b16 %v622, %v618
      %v819 = vpack.c.b16 %v623, %v619
      %v820 = vpack.c.b16 %v624, %v620
      %v821 = vpack.c.b16 %v629, %v625
      %v822 = vpack.c.b16 %v630, %v626
      %v823 = vpack.c.b16 %v631, %v627
      %v824 = vpack.c.b16 %v632, %v628
      %v825 = vpack.c.b16 %v637, %v633
      %v826 = vpack.c.b16 %v638, %v634
      %v827 = vpack.c.b16 %v639, %v635
      %v828 = vpack.c.b16 %v640, %v636
      %v829 = vpack.c.b16 %v645, %v641
      %v830 = vpack.c.b16 %v646, %v642
      %v831 = vpack.c.b16 %v647, %v643
      %v832 = vpack.c.b16 %v648, %v644
      %v833 = vpack.c.b16 %v653, %v649
      %v834 = vpack.c.b16 %v654, %v650
      %v835 = vpack.c.b16 %v655, %v651
      %v836 = vpack.c.b16 %v656, %v652
      %v837 = vpack.c.b16 %v661, %v657
      %v838 = vpack.c.b16 %v662, %v658
      %v839 = vpack.c.b16 %v663, %v659
      %v840 = vpack.c.b16 %v664, %v660
      %v841 = vpack.c.b16 %v669, %v665
      %v842 = vpack.c.b16 %v670, %v666
      %v843 = vpack.c.b16 %v671, %v667
      %v844 = vpack.c.b16 %v672, %v668
      %v845 = vpack.c.b16 %v677, %v673
      %v846 = vpack.c.b16 %v678, %v674
      %v847 = vpack.c.b16 %v679, %v675
      %v848 = vpack.c.b16 %v680, %v676
      %v849 = vpack.c.b16 %v685, %v681
      %v850 = vpack.c.b16 %v686, %v682
      %v851 = vpack.c.b16 %v687, %v683
      %v852 = vpack.c.b16 %v688, %v684
      %v853 = vpack.c.b16 %v693, %v689
      %v854 = vpack.c.b16 %v694, %v690
      %v855 = vpack.c.b16 %v695, %v691
      %v856 = vpack.c.b16 %v696, %v692
      %v857 = vpack.c.b16 %v701, %v697
      %v858 = vpack.c.b16 %v702, %v698
      %v859 = vpack.c.b16 %v703, %v699
      %v860 = vpack.c.b16 %v704, %v700
      %v861 = vpack.c.b16 %v709, %v705
      %v862 = vpack.c.b16 %v710, %v706
      %v863 = vpack.c.b16 %v711, %v707
      %v864 = vpack.c.b16 %v712, %v708
      %v865 = vpack.c.b16 %v717, %v713
      %v866 = vpack.c.b16 %v718, %v714
      %v867 = vpack.c.b16 %v719, %v715
      %v868 = vpack.c.b16 %v720, %v716
      %v869 = vpack.c.b16 %v725, %v721
      %v870 = vpack.c.b16 %v726, %v722
      %v871 = vpack.c.b16 %v727, %v723
      %v872 = vpack.c.b16 %v728, %v724
      %v873 = vpack.c.b16 %v733, %v729
      %v874 = vpack.c.b16 %v734, %v730
      %v875 = vpack.c.b16 %v735, %v731
      %v876 = vpack.c.b16 %v736, %v732
      %v877 = vpack.c.b16 %v741, %v737
      %v878 = vpack.c.b16 %v742, %v738
      %v879 = vpack.c.b16 %v743, %v739
      %v880 = vpack.c.b16 %v744, %v740
      %v881 = vpack.c.b16 %v749, %v745
      %v882 = vpack.c.b16 %v750, %v746
      %v883 = vpack.c.b16 %v751, %v747
      %v884 = vpack.c.b16 %v752, %v748
      %v885 = vpack.c.b16 %v757, %v753
      %v886 = vpack.c.b16 %v758, %v754
      %v887 = vpack.c.b16 %v759, %v755
      %v888 = vpack.c.b16 %v760, %v756
      %v1081 = vunpack.c.l.b16 %v306
      %v1082 = vunpack.c.l.b16 %v307
      %v1083 = vunpack.c.l.b16 %v308
      %v1084 = vunpack.c.l.b16 %v309
      %v1085 = vunpack.c.l.b16 %v310
      %v1086 = vunpack.c.l.b16 %v311
      %v1087 = vunpack.c.l.b16 %v312
      %v1088 = vunpack.c.l.b16 %v313
      %v1089 = vunpack.c.l.b16 %v314
      %v1090 = vunpack.c.l.b16 %v315
      %v1091 = vunpack.c.l.b16 %v316
      %v1092 = vunpack.c.l.b16 %v317
      %v1093 = vunpack.c.l.b16 %v318
      %v1094 = vunpack.c.l.b16 %v319
      %v1095 = vunpack.c.l.b16 %v320
      %v1096 = vunpack.c.l.b16 %v321
      %v1097 = vunpack.c.l.b16 %v322
      %v1098 = vunpack.c.l.b16 %v323
      %v1099 = vunpack.c.l.b16 %v324
      %v1100 = vunpack.c.l.b16 %v325
      %v1101 = vunpack.c.l.b16 %v326
      %v1102 = vunpack.c.l.b16 %v327
      %v1103 = vunpack.c.l.b16 %v328
      %v1104 = vunpack.c.l.b16 %v329
      %v1105 = vunpack.c.l.b16 %v330
      %v1106 = vunpack.c.l.b16 %v331
      %v1107 = vunpack.c.l.b16 %v332
      %v1108 = vunpack.c.l.b16 %v333
      %v1109 = vunpack.c.l.b16 %v334
      %v1110 = vunpack.c.l.b16 %v335
      %v1111 = vunpack.c.l.b16 %v336
      %v1112 = vunpack.c.l.b16 %v337
      %v1113 = vunpack.c.l.b16 %v338
      %v1114 = vunpack.c.l.b16 %v339
      %v1115 = vunpack.c.l.b16 %v340
      %v1116 = vunpack.c.l.b16 %v341
      %v1117 = vunpack.c.l.b16 %v342
      %v1118 = vunpack.c.l.b16 %v343
      %v1119 = vunpack.c.l.b16 %v344
      %v1120 = vunpack.c.l.b16 %v345
      %v1121 = vunpack.c.l.b16 %v346
      %v1122 = vunpack.c.l.b16 %v347
      %v1123 = vunpack.c.l.b16 %v348
      %v1124 = vunpack.c.l.b16 %v349
      %v1125 = vunpack.c.l.b16 %v350
      %v1126 = vunpack.c.l.b16 %v351
      %v1127 = vunpack.c.l.b16 %v352
      %v1128 = vunpack.c.l.b16 %v353
      %v1129 = vunpack.c.l.b16 %v354
      %v1130 = vunpack.c.l.b16 %v355
      %v1131 = vunpack.c.l.b16 %v356
      %v1132 = vunpack.c.l.b16 %v357
      %v1133 = vunpack.c.l.b16 %v358
      %v1134 = vunpack.c.l.b16 %v359
      %v1135 = vunpack.c.l.b16 %v360
      %v1136 = vunpack.c.l.b16 %v361
      %v1137 = vunpack.c.l.b16 %v362
      %v1138 = vunpack.c.l.b16 %v363
      %v1139 = vunpack.c.l.b16 %v364
      %v1140 = vunpack.c.l.b16 %v365
      %v1141 = vunpack.c.l.b16 %v366
      %v1142 = vunpack.c.l.b16 %v367
      %v1143 = vunpack.c.l.b16 %v368
      %v1144 = vunpack.c.l.b16 %v369
      %v1145 = vpack.c.b16 %v1082, %v1081
      %v1146 = vpack.c.b16 %v1084, %v1083
      %v1147 = vpack.c.b16 %v1086, %v1085
      %v1148 = vpack.c.b16 %v1088, %v1087
      %v1149 = vpack.c.b16 %v1090, %v1089
      %v1150 = vpack.c.b16 %v1092, %v1091
      %v1151 = vpack.c.b16 %v1094, %v1093
      %v1152 = vpack.c.b16 %v1096, %v1095
      %v1153 = vpack.c.b16 %v1098, %v1097
      %v1154 = vpack.c.b16 %v1100, %v1099
      %v1155 = vpack.c.b16 %v1102, %v1101
      %v1156 = vpack.c.b16 %v1104, %v1103
      %v1157 = vpack.c.b16 %v1106, %v1105
      %v1158 = vpack.c.b16 %v1108, %v1107
      %v1159 = vpack.c.b16 %v1110, %v1109
      %v1160 = vpack.c.b16 %v1112, %v1111
      %v1161 = vpack.c.b16 %v1114, %v1113
      %v1162 = vpack.c.b16 %v1116, %v1115
      %v1163 = vpack.c.b16 %v1118, %v1117
      %v1164 = vpack.c.b16 %v1120, %v1119
      %v1165 = vpack.c.b16 %v1122, %v1121
      %v1166 = vpack.c.b16 %v1124, %v1123
      %v1167 = vpack.c.b16 %v1126, %v1125
      %v1168 = vpack.c.b16 %v1128, %v1127
      %v1169 = vpack.c.b16 %v1130, %v1129
      %v1170 = vpack.c.b16 %v1132, %v1131
      %v1171 = vpack.c.b16 %v1134, %v1133
      %v1172 = vpack.c.b16 %v1136, %v1135
      %v1173 = vpack.c.b16 %v1138, %v1137
      %v1174 = vpack.c.b16 %v1140, %v1139
      %v1175 = vpack.c.b16 %v1142, %v1141
      %v1176 = vpack.c.b16 %v1144, %v1143
      %1209 = vmatprep.subr.bf16.mxu0 0
      %1210 = vmatpush1.bf16.msra.mxu0 %v1152
      %1211 = vmatprep.subr.bf16.mxu0 0
      %1212 = vmatpush1.bf16.msra.mxu0 %v1151
      %1213 = vmatprep.subr.bf16.mxu0 0
      %1214 = vmatpush1.bf16.msra.mxu0 %v1150
      %1215 = vmatprep.subr.bf16.mxu0 0
      %1216 = vmatpush1.bf16.msra.mxu0 %v1149
      %1217 = vmatprep.subr.bf16.mxu0 0
      %1218 = vmatpush1.bf16.msra.mxu0 %v1148
      %1219 = vmatprep.subr.bf16.mxu0 0
      %1220 = vmatpush1.bf16.msra.mxu0 %v1147
      %1221 = vmatprep.subr.bf16.mxu0 0
      %1222 = vmatpush1.bf16.msra.mxu0 %v1146
      %1223 = vmatprep.subr.bf16.mxu0 0
      %1224 = vmatpush1.bf16.msra.mxu0 %v1145
      %1225 = vmatprep.subr.bf16.mxu0 0
      %1226 = vmatpush2.bf16.msra.mxu0 %v1160
      %1227 = vmatprep.subr.bf16.mxu0 0
      %1228 = vmatpush2.bf16.msra.mxu0 %v1159
      %1229 = vmatprep.subr.bf16.mxu0 0
      %1230 = vmatpush2.bf16.msra.mxu0 %v1158
      %1231 = vmatprep.subr.bf16.mxu0 0
      %1232 = vmatpush2.bf16.msra.mxu0 %v1157
      %1233 = vmatprep.subr.bf16.mxu0 0
      %1234 = vmatpush2.bf16.msra.mxu0 %v1156
      %1235 = vmatprep.subr.bf16.mxu0 0
      %1236 = vmatpush2.bf16.msra.mxu0 %v1155
      %1237 = vmatprep.subr.bf16.mxu0 0
      %1238 = vmatpush2.bf16.msra.mxu0 %v1154
      %1239 = vmatprep.subr.bf16.mxu0 0
      %1240 = vmatpush2.bf16.msra.mxu0 %v1153
      %1241 = vmatprep.mubr.bf16.mxu0 %v762
      %1242 = vmatmul.mubr.bf16.gmra.mxu0 %v761
      %v1243 = vpop.f32.mrf.mxu0
      %v1244 = vadd.f32 %v375, %v1243
      %v1245 = vpop.f32.mrf.mxu0
      %v1246 = vpop.f32.mrf.mxu0
      %v1247 = vadd.f32 %v375, %v1246
      %v1248 = vpop.f32.mrf.mxu0
      %1249 = vmatprep.mubr.bf16.mxu0 %v766
      %1250 = vmatmul.mubr.bf16.gmra.mxu0 %v765
      %v1251 = vpop.f32.mrf.mxu0
      %v1252 = vadd.f32 %v375, %v1251
      %v1253 = vpop.f32.mrf.mxu0
      %v1254 = vpop.f32.mrf.mxu0
      %v1255 = vadd.f32 %v375, %v1254
      %v1256 = vpop.f32.mrf.mxu0
      %1257 = vmatprep.mubr.bf16.mxu0 %v770
      %1258 = vmatmul.mubr.bf16.gmra.mxu0 %v769
      %v1259 = vpop.f32.mrf.mxu0
      %v1260 = vadd.f32 %v375, %v1259
      %v1261 = vpop.f32.mrf.mxu0
      %v1262 = vpop.f32.mrf.mxu0
      %v1263 = vadd.f32 %v375, %v1262
      %v1264 = vpop.f32.mrf.mxu0
      %1265 = vmatprep.mubr.bf16.mxu0 %v774
      %1266 = vmatmul.mubr.bf16.gmra.mxu0 %v773
      %v1267 = vpop.f32.mrf.mxu0
      %v1268 = vadd.f32 %v375, %v1267
      %v1269 = vpop.f32.mrf.mxu0
      %v1270 = vpop.f32.mrf.mxu0
      %v1271 = vadd.f32 %v375, %v1270
      %v1272 = vpop.f32.mrf.mxu0
      %1273 = vmatprep.mubr.bf16.mxu0 %v778
      %1274 = vmatmul.mubr.bf16.gmra.mxu0 %v777
      %v1275 = vpop.f32.mrf.mxu0
      %v1276 = vadd.f32 %v375, %v1275
      %v1277 = vpop.f32.mrf.mxu0
      %v1278 = vpop.f32.mrf.mxu0
      %v1279 = vadd.f32 %v375, %v1278
      %v1280 = vpop.f32.mrf.mxu0
      %1281 = vmatprep.mubr.bf16.mxu0 %v782
      %1282 = vmatmul.mubr.bf16.gmra.mxu0 %v781
      %v1283 = vpop.f32.mrf.mxu0
      %v1284 = vadd.f32 %v375, %v1283
      %v1285 = vpop.f32.mrf.mxu0
      %v1286 = vpop.f32.mrf.mxu0
      %v1287 = vadd.f32 %v375, %v1286
      %v1288 = vpop.f32.mrf.mxu0
      %1289 = vmatprep.mubr.bf16.mxu0 %v786
      %1290 = vmatmul.mubr.bf16.gmra.mxu0 %v785
      %v1291 = vpop.f32.mrf.mxu0
      %v1292 = vadd.f32 %v375, %v1291
      %v1293 = vpop.f32.mrf.mxu0
      %v1294 = vpop.f32.mrf.mxu0
      %v1295 = vadd.f32 %v375, %v1294
      %v1296 = vpop.f32.mrf.mxu0
      %1297 = vmatprep.mubr.bf16.mxu0 %v790
      %1298 = vmatmul.mubr.bf16.gmra.mxu0 %v789
      %v1299 = vpop.f32.mrf.mxu0
      %v1300 = vadd.f32 %v375, %v1299
      %v1301 = vpop.f32.mrf.mxu0
      %v1302 = vpop.f32.mrf.mxu0
      %v1303 = vadd.f32 %v375, %v1302
      %v1304 = vpop.f32.mrf.mxu0
      %1305 = vmatprep.mubr.bf16.mxu0 %v794
      %1306 = vmatmul.mubr.bf16.gmra.mxu0 %v793
      %v1307 = vpop.f32.mrf.mxu0
      %v1308 = vadd.f32 %v375, %v1307
      %v1309 = vpop.f32.mrf.mxu0
      %v1310 = vpop.f32.mrf.mxu0
      %v1311 = vadd.f32 %v375, %v1310
      %v1312 = vpop.f32.mrf.mxu0
      %1313 = vmatprep.mubr.bf16.mxu0 %v798
      %1314 = vmatmul.mubr.bf16.gmra.mxu0 %v797
      %v1315 = vpop.f32.mrf.mxu0
      %v1316 = vadd.f32 %v375, %v1315
      %v1317 = vpop.f32.mrf.mxu0
      %v1318 = vpop.f32.mrf.mxu0
      %v1319 = vadd.f32 %v375, %v1318
      %v1320 = vpop.f32.mrf.mxu0
      %1321 = vmatprep.mubr.bf16.mxu0 %v802
      %1322 = vmatmul.mubr.bf16.gmra.mxu0 %v801
      %v1323 = vpop.f32.mrf.mxu0
      %v1324 = vadd.f32 %v375, %v1323
      %v1325 = vpop.f32.mrf.mxu0
      %v1326 = vpop.f32.mrf.mxu0
      %v1327 = vadd.f32 %v375, %v1326
      %v1328 = vpop.f32.mrf.mxu0
      %1329 = vmatprep.mubr.bf16.mxu0 %v806
      %1330 = vmatmul.mubr.bf16.gmra.mxu0 %v805
      %v1331 = vpop.f32.mrf.mxu0
      %v1332 = vadd.f32 %v375, %v1331
      %v1333 = vpop.f32.mrf.mxu0
      %v1334 = vpop.f32.mrf.mxu0
      %v1335 = vadd.f32 %v375, %v1334
      %v1336 = vpop.f32.mrf.mxu0
      %1337 = vmatprep.mubr.bf16.mxu0 %v810
      %1338 = vmatmul.mubr.bf16.gmra.mxu0 %v809
      %v1339 = vpop.f32.mrf.mxu0
      %v1340 = vadd.f32 %v375, %v1339
      %v1341 = vpop.f32.mrf.mxu0
      %v1342 = vpop.f32.mrf.mxu0
      %v1343 = vadd.f32 %v375, %v1342
      %v1344 = vpop.f32.mrf.mxu0
      %1345 = vmatprep.mubr.bf16.mxu0 %v814
      %1346 = vmatmul.mubr.bf16.gmra.mxu0 %v813
      %v1347 = vpop.f32.mrf.mxu0
      %v1348 = vadd.f32 %v375, %v1347
      %v1349 = vpop.f32.mrf.mxu0
      %v1350 = vpop.f32.mrf.mxu0
      %v1351 = vadd.f32 %v375, %v1350
      %v1352 = vpop.f32.mrf.mxu0
      %1353 = vmatprep.mubr.bf16.mxu0 %v818
      %1354 = vmatmul.mubr.bf16.gmra.mxu0 %v817
      %v1355 = vpop.f32.mrf.mxu0
      %v1356 = vadd.f32 %v375, %v1355
      %v1357 = vpop.f32.mrf.mxu0
      %v1358 = vpop.f32.mrf.mxu0
      %v1359 = vadd.f32 %v375, %v1358
      %v1360 = vpop.f32.mrf.mxu0
      %1361 = vmatprep.mubr.bf16.mxu0 %v822
      %1362 = vmatmul.mubr.bf16.gmra.mxu0 %v821
      %v1363 = vpop.f32.mrf.mxu0
      %v1364 = vadd.f32 %v375, %v1363
      %v1365 = vpop.f32.mrf.mxu0
      %v1366 = vpop.f32.mrf.mxu0
      %v1367 = vadd.f32 %v375, %v1366
      %v1368 = vpop.f32.mrf.mxu0
      %1369 = vmatprep.mubr.bf16.mxu0 %v826
      %1370 = vmatmul.mubr.bf16.gmra.mxu0 %v825
      %v1371 = vpop.f32.mrf.mxu0
      %v1372 = vadd.f32 %v375, %v1371
      %v1373 = vpop.f32.mrf.mxu0
      %v1374 = vpop.f32.mrf.mxu0
      %v1375 = vadd.f32 %v375, %v1374
      %v1376 = vpop.f32.mrf.mxu0
      %1377 = vmatprep.mubr.bf16.mxu0 %v830
      %1378 = vmatmul.mubr.bf16.gmra.mxu0 %v829
      %v1379 = vpop.f32.mrf.mxu0
      %v1380 = vadd.f32 %v375, %v1379
      %v1381 = vpop.f32.mrf.mxu0
      %v1382 = vpop.f32.mrf.mxu0
      %v1383 = vadd.f32 %v375, %v1382
      %v1384 = vpop.f32.mrf.mxu0
      %1385 = vmatprep.mubr.bf16.mxu0 %v834
      %1386 = vmatmul.mubr.bf16.gmra.mxu0 %v833
      %v1387 = vpop.f32.mrf.mxu0
      %v1388 = vadd.f32 %v375, %v1387
      %v1389 = vpop.f32.mrf.mxu0
      %v1390 = vpop.f32.mrf.mxu0
      %v1391 = vadd.f32 %v375, %v1390
      %v1392 = vpop.f32.mrf.mxu0
      %1393 = vmatprep.mubr.bf16.mxu0 %v838
      %1394 = vmatmul.mubr.bf16.gmra.mxu0 %v837
      %v1395 = vpop.f32.mrf.mxu0
      %v1396 = vadd.f32 %v375, %v1395
      %v1397 = vpop.f32.mrf.mxu0
      %v1398 = vpop.f32.mrf.mxu0
      %v1399 = vadd.f32 %v375, %v1398
      %v1400 = vpop.f32.mrf.mxu0
      %1401 = vmatprep.mubr.bf16.mxu0 %v842
      %1402 = vmatmul.mubr.bf16.gmra.mxu0 %v841
      %v1403 = vpop.f32.mrf.mxu0
      %v1404 = vadd.f32 %v375, %v1403
      %v1405 = vpop.f32.mrf.mxu0
      %v1406 = vpop.f32.mrf.mxu0
      %v1407 = vadd.f32 %v375, %v1406
      %v1408 = vpop.f32.mrf.mxu0
      %1409 = vmatprep.mubr.bf16.mxu0 %v846
      %1410 = vmatmul.mubr.bf16.gmra.mxu0 %v845
      %v1411 = vpop.f32.mrf.mxu0
      %v1412 = vadd.f32 %v375, %v1411
      %v1413 = vpop.f32.mrf.mxu0
      %v1414 = vpop.f32.mrf.mxu0
      %v1415 = vadd.f32 %v375, %v1414
      %v1416 = vpop.f32.mrf.mxu0
      %1417 = vmatprep.mubr.bf16.mxu0 %v850
      %1418 = vmatmul.mubr.bf16.gmra.mxu0 %v849
      %v1419 = vpop.f32.mrf.mxu0
      %v1420 = vadd.f32 %v375, %v1419
      %v1421 = vpop.f32.mrf.mxu0
      %v1422 = vpop.f32.mrf.mxu0
      %v1423 = vadd.f32 %v375, %v1422
      %v1424 = vpop.f32.mrf.mxu0
      %1425 = vmatprep.mubr.bf16.mxu0 %v854
      %1426 = vmatmul.mubr.bf16.gmra.mxu0 %v853
      %v1427 = vpop.f32.mrf.mxu0
      %v1428 = vadd.f32 %v375, %v1427
      %v1429 = vpop.f32.mrf.mxu0
      %v1430 = vpop.f32.mrf.mxu0
      %v1431 = vadd.f32 %v375, %v1430
      %v1432 = vpop.f32.mrf.mxu0
      %1433 = vmatprep.mubr.bf16.mxu0 %v858
      %1434 = vmatmul.mubr.bf16.gmra.mxu0 %v857
      %v1435 = vpop.f32.mrf.mxu0
      %v1436 = vadd.f32 %v375, %v1435
      %v1437 = vpop.f32.mrf.mxu0
      %v1438 = vpop.f32.mrf.mxu0
      %v1439 = vadd.f32 %v375, %v1438
      %v1440 = vpop.f32.mrf.mxu0
      %1441 = vmatprep.mubr.bf16.mxu0 %v862
      %1442 = vmatmul.mubr.bf16.gmra.mxu0 %v861
      %v1443 = vpop.f32.mrf.mxu0
      %v1444 = vadd.f32 %v375, %v1443
      %v1445 = vpop.f32.mrf.mxu0
      %v1446 = vpop.f32.mrf.mxu0
      %v1447 = vadd.f32 %v375, %v1446
      %v1448 = vpop.f32.mrf.mxu0
      %1449 = vmatprep.mubr.bf16.mxu0 %v866
      %1450 = vmatmul.mubr.bf16.gmra.mxu0 %v865
      %v1451 = vpop.f32.mrf.mxu0
      %v1452 = vadd.f32 %v375, %v1451
      %v1453 = vpop.f32.mrf.mxu0
      %v1454 = vpop.f32.mrf.mxu0
      %v1455 = vadd.f32 %v375, %v1454
      %v1456 = vpop.f32.mrf.mxu0
      %1457 = vmatprep.mubr.bf16.mxu0 %v870
      %1458 = vmatmul.mubr.bf16.gmra.mxu0 %v869
      %v1459 = vpop.f32.mrf.mxu0
      %v1460 = vadd.f32 %v375, %v1459
      %v1461 = vpop.f32.mrf.mxu0
      %v1462 = vpop.f32.mrf.mxu0
      %v1463 = vadd.f32 %v375, %v1462
      %v1464 = vpop.f32.mrf.mxu0
      %1465 = vmatprep.mubr.bf16.mxu0 %v874
      %1466 = vmatmul.mubr.bf16.gmra.mxu0 %v873
      %v1467 = vpop.f32.mrf.mxu0
      %v1468 = vadd.f32 %v375, %v1467
      %v1469 = vpop.f32.mrf.mxu0
      %v1470 = vpop.f32.mrf.mxu0
      %v1471 = vadd.f32 %v375, %v1470
      %v1472 = vpop.f32.mrf.mxu0
      %1473 = vmatprep.mubr.bf16.mxu0 %v878
      %1474 = vmatmul.mubr.bf16.gmra.mxu0 %v877
      %v1475 = vpop.f32.mrf.mxu0
      %v1476 = vadd.f32 %v375, %v1475
      %v1477 = vpop.f32.mrf.mxu0
      %v1478 = vpop.f32.mrf.mxu0
      %v1479 = vadd.f32 %v375, %v1478
      %v1480 = vpop.f32.mrf.mxu0
      %1481 = vmatprep.mubr.bf16.mxu0 %v882
      %1482 = vmatmul.mubr.bf16.gmra.mxu0 %v881
      %v1483 = vpop.f32.mrf.mxu0
      %v1484 = vadd.f32 %v375, %v1483
      %v1485 = vpop.f32.mrf.mxu0
      %v1486 = vpop.f32.mrf.mxu0
      %v1487 = vadd.f32 %v375, %v1486
      %v1488 = vpop.f32.mrf.mxu0
      %1489 = vmatprep.mubr.bf16.mxu0 %v886
      %1490 = vmatmul.mubr.bf16.gmra.mxu0 %v885
      %v1491 = vpop.f32.mrf.mxu0
      %v1492 = vadd.f32 %v375, %v1491
      %v1493 = vpop.f32.mrf.mxu0
      %v1494 = vpop.f32.mrf.mxu0
      %v1495 = vadd.f32 %v375, %v1494
      %v1496 = vpop.f32.mrf.mxu0
      %1497 = vdwg.mxu0
      %1498 = vmatprep.subr.bf16.mxu0 0
      %1499 = vmatpush1.bf16.msra.mxu0 %v1168
      %1500 = vmatprep.subr.bf16.mxu0 0
      %1501 = vmatpush1.bf16.msra.mxu0 %v1167
      %1502 = vmatprep.subr.bf16.mxu0 0
      %1503 = vmatpush1.bf16.msra.mxu0 %v1166
      %1504 = vmatprep.subr.bf16.mxu0 0
      %1505 = vmatpush1.bf16.msra.mxu0 %v1165
      %1506 = vmatprep.subr.bf16.mxu0 0
      %1507 = vmatpush1.bf16.msra.mxu0 %v1164
      %1508 = vmatprep.subr.bf16.mxu0 0
      %1509 = vmatpush1.bf16.msra.mxu0 %v1163
      %1510 = vmatprep.subr.bf16.mxu0 0
      %1511 = vmatpush1.bf16.msra.mxu0 %v1162
      %1512 = vmatprep.subr.bf16.mxu0 0
      %1513 = vmatpush1.bf16.msra.mxu0 %v1161
      %1514 = vmatprep.subr.bf16.mxu0 0
      %1515 = vmatpush2.bf16.msra.mxu0 %v1176
      %1516 = vmatprep.subr.bf16.mxu0 0
      %1517 = vmatpush2.bf16.msra.mxu0 %v1175
      %1518 = vmatprep.subr.bf16.mxu0 0
      %1519 = vmatpush2.bf16.msra.mxu0 %v1174
      %1520 = vmatprep.subr.bf16.mxu0 0
      %1521 = vmatpush2.bf16.msra.mxu0 %v1173
      %1522 = vmatprep.subr.bf16.mxu0 0
      %1523 = vmatpush2.bf16.msra.mxu0 %v1172
      %1524 = vmatprep.subr.bf16.mxu0 0
      %1525 = vmatpush2.bf16.msra.mxu0 %v1171
      %1526 = vmatprep.subr.bf16.mxu0 0
      %1527 = vmatpush2.bf16.msra.mxu0 %v1170
      %1528 = vmatprep.subr.bf16.mxu0 0
      %1529 = vmatpush2.bf16.msra.mxu0 %v1169
      %1530 = vmatprep.mubr.bf16.mxu0 %v764
      %1531 = vmatmul.mubr.bf16.gmra.mxu0 %v763
      %v1532 = vpop.f32.mrf.mxu0
      %v1533 = vadd.f32 %v1244, %v1532
      %v1534 = vpop.f32.mrf.mxu0
      %v1535 = vpop.f32.mrf.mxu0
      %v1536 = vadd.f32 %v1247, %v1535
      %v1537 = vpop.f32.mrf.mxu0
      %1538 = vmatprep.mubr.bf16.mxu0 %v768
      %1539 = vmatmul.mubr.bf16.gmra.mxu0 %v767
      %v1540 = vpop.f32.mrf.mxu0
      %v1541 = vadd.f32 %v1252, %v1540
      %v1542 = vpop.f32.mrf.mxu0
      %v1543 = vpop.f32.mrf.mxu0
      %v1544 = vadd.f32 %v1255, %v1543
      %v1545 = vpop.f32.mrf.mxu0
      %1546 = vmatprep.mubr.bf16.mxu0 %v772
      %1547 = vmatmul.mubr.bf16.gmra.mxu0 %v771
      %v1548 = vpop.f32.mrf.mxu0
      %v1549 = vadd.f32 %v1260, %v1548
      %v1550 = vpop.f32.mrf.mxu0
      %v1551 = vpop.f32.mrf.mxu0
      %v1552 = vadd.f32 %v1263, %v1551
      %v1553 = vpop.f32.mrf.mxu0
      %1554 = vmatprep.mubr.bf16.mxu0 %v776
      %1555 = vmatmul.mubr.bf16.gmra.mxu0 %v775
      %v1556 = vpop.f32.mrf.mxu0
      %v1557 = vadd.f32 %v1268, %v1556
      %v1558 = vpop.f32.mrf.mxu0
      %v1559 = vpop.f32.mrf.mxu0
      %v1560 = vadd.f32 %v1271, %v1559
      %v1561 = vpop.f32.mrf.mxu0
      %1562 = vmatprep.mubr.bf16.mxu0 %v780
      %1563 = vmatmul.mubr.bf16.gmra.mxu0 %v779
      %v1564 = vpop.f32.mrf.mxu0
      %v1565 = vadd.f32 %v1276, %v1564
      %v1566 = vpop.f32.mrf.mxu0
      %v1567 = vpop.f32.mrf.mxu0
      %v1568 = vadd.f32 %v1279, %v1567
      %v1569 = vpop.f32.mrf.mxu0
      %1570 = vmatprep.mubr.bf16.mxu0 %v784
      %1571 = vmatmul.mubr.bf16.gmra.mxu0 %v783
      %v1572 = vpop.f32.mrf.mxu0
      %v1573 = vadd.f32 %v1284, %v1572
      %v1574 = vpop.f32.mrf.mxu0
      %v1575 = vpop.f32.mrf.mxu0
      %v1576 = vadd.f32 %v1287, %v1575
      %v1577 = vpop.f32.mrf.mxu0
      %1578 = vmatprep.mubr.bf16.mxu0 %v788
      %1579 = vmatmul.mubr.bf16.gmra.mxu0 %v787
      %v1580 = vpop.f32.mrf.mxu0
      %v1581 = vadd.f32 %v1292, %v1580
      %v1582 = vpop.f32.mrf.mxu0
      %v1583 = vpop.f32.mrf.mxu0
      %v1584 = vadd.f32 %v1295, %v1583
      %v1585 = vpop.f32.mrf.mxu0
      %1586 = vmatprep.mubr.bf16.mxu0 %v792
      %1587 = vmatmul.mubr.bf16.gmra.mxu0 %v791
      %v1588 = vpop.f32.mrf.mxu0
      %v1589 = vadd.f32 %v1300, %v1588
      %v1590 = vpop.f32.mrf.mxu0
      %v1591 = vpop.f32.mrf.mxu0
      %v1592 = vadd.f32 %v1303, %v1591
      %v1593 = vpop.f32.mrf.mxu0
      %1594 = vmatprep.mubr.bf16.mxu0 %v796
      %1595 = vmatmul.mubr.bf16.gmra.mxu0 %v795
      %v1596 = vpop.f32.mrf.mxu0
      %v1597 = vadd.f32 %v1308, %v1596
      %v1598 = vpop.f32.mrf.mxu0
      %v1599 = vpop.f32.mrf.mxu0
      %v1600 = vadd.f32 %v1311, %v1599
      %v1601 = vpop.f32.mrf.mxu0
      %1602 = vmatprep.mubr.bf16.mxu0 %v800
      %1603 = vmatmul.mubr.bf16.gmra.mxu0 %v799
      %v1604 = vpop.f32.mrf.mxu0
      %v1605 = vadd.f32 %v1316, %v1604
      %v1606 = vpop.f32.mrf.mxu0
      %v1607 = vpop.f32.mrf.mxu0
      %v1608 = vadd.f32 %v1319, %v1607
      %v1609 = vpop.f32.mrf.mxu0
      %1610 = vmatprep.mubr.bf16.mxu0 %v804
      %1611 = vmatmul.mubr.bf16.gmra.mxu0 %v803
      %v1612 = vpop.f32.mrf.mxu0
      %v1613 = vadd.f32 %v1324, %v1612
      %v1614 = vpop.f32.mrf.mxu0
      %v1615 = vpop.f32.mrf.mxu0
      %v1616 = vadd.f32 %v1327, %v1615
      %v1617 = vpop.f32.mrf.mxu0
      %1618 = vmatprep.mubr.bf16.mxu0 %v808
      %1619 = vmatmul.mubr.bf16.gmra.mxu0 %v807
      %v1620 = vpop.f32.mrf.mxu0
      %v1621 = vadd.f32 %v1332, %v1620
      %v1622 = vpop.f32.mrf.mxu0
      %v1623 = vpop.f32.mrf.mxu0
      %v1624 = vadd.f32 %v1335, %v1623
      %v1625 = vpop.f32.mrf.mxu0
      %1626 = vmatprep.mubr.bf16.mxu0 %v812
      %1627 = vmatmul.mubr.bf16.gmra.mxu0 %v811
      %v1628 = vpop.f32.mrf.mxu0
      %v1629 = vadd.f32 %v1340, %v1628
      %v1630 = vpop.f32.mrf.mxu0
      %v1631 = vpop.f32.mrf.mxu0
      %v1632 = vadd.f32 %v1343, %v1631
      %v1633 = vpop.f32.mrf.mxu0
      %1634 = vmatprep.mubr.bf16.mxu0 %v816
      %1635 = vmatmul.mubr.bf16.gmra.mxu0 %v815
      %v1636 = vpop.f32.mrf.mxu0
      %v1637 = vadd.f32 %v1348, %v1636
      %v1638 = vpop.f32.mrf.mxu0
      %v1639 = vpop.f32.mrf.mxu0
      %v1640 = vadd.f32 %v1351, %v1639
      %v1641 = vpop.f32.mrf.mxu0
      %1642 = vmatprep.mubr.bf16.mxu0 %v820
      %1643 = vmatmul.mubr.bf16.gmra.mxu0 %v819
      %v1644 = vpop.f32.mrf.mxu0
      %v1645 = vadd.f32 %v1356, %v1644
      %v1646 = vpop.f32.mrf.mxu0
      %v1647 = vpop.f32.mrf.mxu0
      %v1648 = vadd.f32 %v1359, %v1647
      %v1649 = vpop.f32.mrf.mxu0
      %1650 = vmatprep.mubr.bf16.mxu0 %v824
      %1651 = vmatmul.mubr.bf16.gmra.mxu0 %v823
      %v1652 = vpop.f32.mrf.mxu0
      %v1653 = vadd.f32 %v1364, %v1652
      %v1654 = vpop.f32.mrf.mxu0
      %v1655 = vpop.f32.mrf.mxu0
      %v1656 = vadd.f32 %v1367, %v1655
      %v1657 = vpop.f32.mrf.mxu0
      %1658 = vmatprep.mubr.bf16.mxu0 %v828
      %1659 = vmatmul.mubr.bf16.gmra.mxu0 %v827
      %v1660 = vpop.f32.mrf.mxu0
      %v1661 = vadd.f32 %v1372, %v1660
      %v1662 = vpop.f32.mrf.mxu0
      %v1663 = vpop.f32.mrf.mxu0
      %v1664 = vadd.f32 %v1375, %v1663
      %v1665 = vpop.f32.mrf.mxu0
      %1666 = vmatprep.mubr.bf16.mxu0 %v832
      %1667 = vmatmul.mubr.bf16.gmra.mxu0 %v831
      %v1668 = vpop.f32.mrf.mxu0
      %v1669 = vadd.f32 %v1380, %v1668
      %v1670 = vpop.f32.mrf.mxu0
      %v1671 = vpop.f32.mrf.mxu0
      %v1672 = vadd.f32 %v1383, %v1671
      %v1673 = vpop.f32.mrf.mxu0
      %1674 = vmatprep.mubr.bf16.mxu0 %v836
      %1675 = vmatmul.mubr.bf16.gmra.mxu0 %v835
      %v1676 = vpop.f32.mrf.mxu0
      %v1677 = vadd.f32 %v1388, %v1676
      %v1678 = vpop.f32.mrf.mxu0
      %v1679 = vpop.f32.mrf.mxu0
      %v1680 = vadd.f32 %v1391, %v1679
      %v1681 = vpop.f32.mrf.mxu0
      %1682 = vmatprep.mubr.bf16.mxu0 %v840
      %1683 = vmatmul.mubr.bf16.gmra.mxu0 %v839
      %v1684 = vpop.f32.mrf.mxu0
      %v1685 = vadd.f32 %v1396, %v1684
      %v1686 = vpop.f32.mrf.mxu0
      %v1687 = vpop.f32.mrf.mxu0
      %v1688 = vadd.f32 %v1399, %v1687
      %v1689 = vpop.f32.mrf.mxu0
      %1690 = vmatprep.mubr.bf16.mxu0 %v844
      %1691 = vmatmul.mubr.bf16.gmra.mxu0 %v843
      %v1692 = vpop.f32.mrf.mxu0
      %v1693 = vadd.f32 %v1404, %v1692
      %v1694 = vpop.f32.mrf.mxu0
      %v1695 = vpop.f32.mrf.mxu0
      %v1696 = vadd.f32 %v1407, %v1695
      %v1697 = vpop.f32.mrf.mxu0
      %1698 = vmatprep.mubr.bf16.mxu0 %v848
      %1699 = vmatmul.mubr.bf16.gmra.mxu0 %v847
      %v1700 = vpop.f32.mrf.mxu0
      %v1701 = vadd.f32 %v1412, %v1700
      %v1702 = vpop.f32.mrf.mxu0
      %v1703 = vpop.f32.mrf.mxu0
      %v1704 = vadd.f32 %v1415, %v1703
      %v1705 = vpop.f32.mrf.mxu0
      %1706 = vmatprep.mubr.bf16.mxu0 %v852
      %1707 = vmatmul.mubr.bf16.gmra.mxu0 %v851
      %v1708 = vpop.f32.mrf.mxu0
      %v1709 = vadd.f32 %v1420, %v1708
      %v1710 = vpop.f32.mrf.mxu0
      %v1711 = vpop.f32.mrf.mxu0
      %v1712 = vadd.f32 %v1423, %v1711
      %v1713 = vpop.f32.mrf.mxu0
      %1714 = vmatprep.mubr.bf16.mxu0 %v856
      %1715 = vmatmul.mubr.bf16.gmra.mxu0 %v855
      %v1716 = vpop.f32.mrf.mxu0
      %v1717 = vadd.f32 %v1428, %v1716
      %v1718 = vpop.f32.mrf.mxu0
      %v1719 = vpop.f32.mrf.mxu0
      %v1720 = vadd.f32 %v1431, %v1719
      %v1721 = vpop.f32.mrf.mxu0
      %1722 = vmatprep.mubr.bf16.mxu0 %v860
      %1723 = vmatmul.mubr.bf16.gmra.mxu0 %v859
      %v1724 = vpop.f32.mrf.mxu0
      %v1725 = vadd.f32 %v1436, %v1724
      %v1726 = vpop.f32.mrf.mxu0
      %v1727 = vpop.f32.mrf.mxu0
      %v1728 = vadd.f32 %v1439, %v1727
      %v1729 = vpop.f32.mrf.mxu0
      %1730 = vmatprep.mubr.bf16.mxu0 %v864
      %1731 = vmatmul.mubr.bf16.gmra.mxu0 %v863
      %v1732 = vpop.f32.mrf.mxu0
      %v1733 = vadd.f32 %v1444, %v1732
      %v1734 = vpop.f32.mrf.mxu0
      %v1735 = vpop.f32.mrf.mxu0
      %v1736 = vadd.f32 %v1447, %v1735
      %v1737 = vpop.f32.mrf.mxu0
      %1738 = vmatprep.mubr.bf16.mxu0 %v868
      %1739 = vmatmul.mubr.bf16.gmra.mxu0 %v867
      %v1740 = vpop.f32.mrf.mxu0
      %v1741 = vadd.f32 %v1452, %v1740
      %v1742 = vpop.f32.mrf.mxu0
      %v1743 = vpop.f32.mrf.mxu0
      %v1744 = vadd.f32 %v1455, %v1743
      %v1745 = vpop.f32.mrf.mxu0
      %1746 = vmatprep.mubr.bf16.mxu0 %v872
      %1747 = vmatmul.mubr.bf16.gmra.mxu0 %v871
      %v1748 = vpop.f32.mrf.mxu0
      %v1749 = vadd.f32 %v1460, %v1748
      %v1750 = vpop.f32.mrf.mxu0
      %v1751 = vpop.f32.mrf.mxu0
      %v1752 = vadd.f32 %v1463, %v1751
      %v1753 = vpop.f32.mrf.mxu0
      %1754 = vmatprep.mubr.bf16.mxu0 %v876
      %1755 = vmatmul.mubr.bf16.gmra.mxu0 %v875
      %v1756 = vpop.f32.mrf.mxu0
      %v1757 = vadd.f32 %v1468, %v1756
      %v1758 = vpop.f32.mrf.mxu0
      %v1759 = vpop.f32.mrf.mxu0
      %v1760 = vadd.f32 %v1471, %v1759
      %v1761 = vpop.f32.mrf.mxu0
      %1762 = vmatprep.mubr.bf16.mxu0 %v880
      %1763 = vmatmul.mubr.bf16.gmra.mxu0 %v879
      %v1764 = vpop.f32.mrf.mxu0
      %v1765 = vadd.f32 %v1476, %v1764
      %v1766 = vpop.f32.mrf.mxu0
      %v1767 = vpop.f32.mrf.mxu0
      %v1768 = vadd.f32 %v1479, %v1767
      %v1769 = vpop.f32.mrf.mxu0
      %1770 = vmatprep.mubr.bf16.mxu0 %v884
      %1771 = vmatmul.mubr.bf16.gmra.mxu0 %v883
      %v1772 = vpop.f32.mrf.mxu0
      %v1773 = vadd.f32 %v1484, %v1772
      %v1774 = vpop.f32.mrf.mxu0
      %v1775 = vpop.f32.mrf.mxu0
      %v1776 = vadd.f32 %v1487, %v1775
      %v1777 = vpop.f32.mrf.mxu0
      %1778 = vmatprep.mubr.bf16.mxu0 %v888
      %1779 = vmatmul.mubr.bf16.gmra.mxu0 %v887
      %v1780 = vpop.f32.mrf.mxu0
      %v1781 = vadd.f32 %v1492, %v1780
      %v1782 = vpop.f32.mrf.mxu0
      %v1783 = vpop.f32.mrf.mxu0
      %v1784 = vadd.f32 %v1495, %v1783
      %v1785 = vpop.f32.mrf.mxu0
      %1786 = vdwg.mxu0
      %v1787 = vmax.f32 %v1533, 0.0
      %v1788 = vmax.f32 %v1536, 0.0
      %v1789 = vmax.f32 %v1541, 0.0
      %v1790 = vmax.f32 %v1544, 0.0
      %v1791 = vmax.f32 %v1549, 0.0
      %v1792 = vmax.f32 %v1552, 0.0
      %v1793 = vmax.f32 %v1557, 0.0
      %v1794 = vmax.f32 %v1560, 0.0
      %v1795 = vmax.f32 %v1565, 0.0
      %v1796 = vmax.f32 %v1568, 0.0
      %v1797 = vmax.f32 %v1573, 0.0
      %v1798 = vmax.f32 %v1576, 0.0
      %v1799 = vmax.f32 %v1581, 0.0
      %v1800 = vmax.f32 %v1584, 0.0
      %v1801 = vmax.f32 %v1589, 0.0
      %v1802 = vmax.f32 %v1592, 0.0
      %v1803 = vmax.f32 %v1597, 0.0
      %v1804 = vmax.f32 %v1600, 0.0
      %v1805 = vmax.f32 %v1605, 0.0
      %v1806 = vmax.f32 %v1608, 0.0
      %v1807 = vmax.f32 %v1613, 0.0
      %v1808 = vmax.f32 %v1616, 0.0
      %v1809 = vmax.f32 %v1621, 0.0
      %v1810 = vmax.f32 %v1624, 0.0
      %v1811 = vmax.f32 %v1629, 0.0
      %v1812 = vmax.f32 %v1632, 0.0
      %v1813 = vmax.f32 %v1637, 0.0
      %v1814 = vmax.f32 %v1640, 0.0
      %v1815 = vmax.f32 %v1645, 0.0
      %v1816 = vmax.f32 %v1648, 0.0
      %v1817 = vmax.f32 %v1653, 0.0
      %v1818 = vmax.f32 %v1656, 0.0
      %v1819 = vmax.f32 %v1661, 0.0
      %v1820 = vmax.f32 %v1664, 0.0
      %v1821 = vmax.f32 %v1669, 0.0
      %v1822 = vmax.f32 %v1672, 0.0
      %v1823 = vmax.f32 %v1677, 0.0
      %v1824 = vmax.f32 %v1680, 0.0
      %v1825 = vmax.f32 %v1685, 0.0
      %v1826 = vmax.f32 %v1688, 0.0
      %v1827 = vmax.f32 %v1693, 0.0
      %v1828 = vmax.f32 %v1696, 0.0
      %v1829 = vmax.f32 %v1701, 0.0
      %v1830 = vmax.f32 %v1704, 0.0
      %v1831 = vmax.f32 %v1709, 0.0
      %v1832 = vmax.f32 %v1712, 0.0
      %v1833 = vmax.f32 %v1717, 0.0
      %v1834 = vmax.f32 %v1720, 0.0
      %v1835 = vmax.f32 %v1725, 0.0
      %v1836 = vmax.f32 %v1728, 0.0
      %v1837 = vmax.f32 %v1733, 0.0
      %v1838 = vmax.f32 %v1736, 0.0
      %v1839 = vmax.f32 %v1741, 0.0
      %v1840 = vmax.f32 %v1744, 0.0
      %v1841 = vmax.f32 %v1749, 0.0
      %v1842 = vmax.f32 %v1752, 0.0
      %v1843 = vmax.f32 %v1757, 0.0
      %v1844 = vmax.f32 %v1760, 0.0
      %v1845 = vmax.f32 %v1765, 0.0
      %v1846 = vmax.f32 %v1768, 0.0
      %v1847 = vmax.f32 %v1773, 0.0
      %v1848 = vmax.f32 %v1776, 0.0
      %v1849 = vmax.f32 %v1781, 0.0
      %v1850 = vmax.f32 %v1784, 0.0
      %1851 = vst [vmem:[%s175] sm:$0xff] %v1787
      %1852 = vst [vmem:[%s175 + $0x8] sm:$0xff] %v1788
      %1853 = vst [vmem:[%s175 + $0x10] sm:$0xff] %v1789
      %1854 = vst [vmem:[%s175 + $0x18] sm:$0xff] %v1790
      %1855 = vst [vmem:[%s175 + $0x20] sm:$0xff] %v1791
      %1856 = vst [vmem:[%s175 + $0x28] sm:$0xff] %v1792
      %1857 = vst [vmem:[%s175 + $0x30] sm:$0xff] %v1793
      %1858 = vst [vmem:[%s175 + $0x38] sm:$0xff] %v1794
      %1859 = vst [vmem:[%s175 + $0x40] sm:$0xff] %v1795
      %1860 = vst [vmem:[%s175 + $0x48] sm:$0xff] %v1796
      %1861 = vst [vmem:[%s175 + $0x50] sm:$0xff] %v1797
      %1862 = vst [vmem:[%s175 + $0x58] sm:$0xff] %v1798
      %1863 = vst [vmem:[%s175 + $0x60] sm:$0xff] %v1799
      %1864 = vst [vmem:[%s175 + $0x68] sm:$0xff] %v1800
      %1865 = vst [vmem:[%s175 + $0x70] sm:$0xff] %v1801
      %1866 = vst [vmem:[%s175 + $0x78] sm:$0xff] %v1802
      %1867 = vst [vmem:[%s175 + $0x80] sm:$0xff] %v1803
      %1868 = vst [vmem:[%s175 + $0x88] sm:$0xff] %v1804
      %1869 = vst [vmem:[%s175 + $0x90] sm:$0xff] %v1805
      %1870 = vst [vmem:[%s175 + $0x98] sm:$0xff] %v1806
      %1871 = vst [vmem:[%s175 + $0xa0] sm:$0xff] %v1807
      %1872 = vst [vmem:[%s175 + $0xa8] sm:$0xff] %v1808
      %1873 = vst [vmem:[%s175 + $0xb0] sm:$0xff] %v1809
      %1874 = vst [vmem:[%s175 + $0xb8] sm:$0xff] %v1810
      %1875 = vst [vmem:[%s175 + $0xc0] sm:$0xff] %v1811
      %1876 = vst [vmem:[%s175 + $0xc8] sm:$0xff] %v1812
      %1877 = vst [vmem:[%s175 + $0xd0] sm:$0xff] %v1813
      %1878 = vst [vmem:[%s175 + $0xd8] sm:$0xff] %v1814
      %1879 = vst [vmem:[%s175 + $0xe0] sm:$0xff] %v1815
      %1880 = vst [vmem:[%s175 + $0xe8] sm:$0xff] %v1816
      %1881 = vst [vmem:[%s175 + $0xf0] sm:$0xff] %v1817
      %1882 = vst [vmem:[%s175 + $0xf8] sm:$0xff] %v1818
      %1883 = vst [vmem:[%s175 + $0x100] sm:$0xff] %v1819
      %1884 = vst [vmem:[%s175 + $0x108] sm:$0xff] %v1820
      %1885 = vst [vmem:[%s175 + $0x110] sm:$0xff] %v1821
      %1886 = vst [vmem:[%s175 + $0x118] sm:$0xff] %v1822
      %1887 = vst [vmem:[%s175 + $0x120] sm:$0xff] %v1823
      %1888 = vst [vmem:[%s175 + $0x128] sm:$0xff] %v1824
      %1889 = vst [vmem:[%s175 + $0x130] sm:$0xff] %v1825
      %1890 = vst [vmem:[%s175 + $0x138] sm:$0xff] %v1826
      %1891 = vst [vmem:[%s175 + $0x140] sm:$0xff] %v1827
      %1892 = vst [vmem:[%s175 + $0x148] sm:$0xff] %v1828
      %1893 = vst [vmem:[%s175 + $0x150] sm:$0xff] %v1829
      %1894 = vst [vmem:[%s175 + $0x158] sm:$0xff] %v1830
      %1895 = vst [vmem:[%s175 + $0x160] sm:$0xff] %v1831
      %1896 = vst [vmem:[%s175 + $0x168] sm:$0xff] %v1832
      %1897 = vst [vmem:[%s175 + $0x170] sm:$0xff] %v1833
      %1898 = vst [vmem:[%s175 + $0x178] sm:$0xff] %v1834
      %1899 = vst [vmem:[%s175 + $0x180] sm:$0xff] %v1835
      %1900 = vst [vmem:[%s175 + $0x188] sm:$0xff] %v1836
      %1901 = vst [vmem:[%s175 + $0x190] sm:$0xff] %v1837
      %1902 = vst [vmem:[%s175 + $0x198] sm:$0xff] %v1838
      %1903 = vst [vmem:[%s175 + $0x1a0] sm:$0xff] %v1839
      %1904 = vst [vmem:[%s175 + $0x1a8] sm:$0xff] %v1840
      %1905 = vst [vmem:[%s175 + $0x1b0] sm:$0xff] %v1841
      %1906 = vst [vmem:[%s175 + $0x1b8] sm:$0xff] %v1842
      %1907 = vst [vmem:[%s175 + $0x1c0] sm:$0xff] %v1843
      %1908 = vst [vmem:[%s175 + $0x1c8] sm:$0xff] %v1844
      %1909 = vst [vmem:[%s175 + $0x1d0] sm:$0xff] %v1845
      %1910 = vst [vmem:[%s175 + $0x1d8] sm:$0xff] %v1846
      %1911 = vst [vmem:[%s175 + $0x1e0] sm:$0xff] %v1847
      %1912 = vst [vmem:[%s175 + $0x1e8] sm:$0xff] %v1848
      %1913 = vst [vmem:[%s175 + $0x1f0] sm:$0xff] %v1849
      %1914 = vst [vmem:[%s175 + $0x1f8] sm:$0xff] %v1850
      %s1915 = smul.u32 64, %s14
      %p1916 = scmp.lt.s32.totalorder %s1915, 191
      %s1917 = scalar_select %p1916, %s1915, 191
      %s1918 = smul.addr %s1917, 8
      %s1919 = scalar_lea.vmem %s3, %s1918
      // Predicated region
      $region33: #{cnn_forward.7} parent=31 // pred_check
        %p1920 = pneg %p100
      $region34: #{cnn_forward.7} parent=31 // pred_check_branch
        %1922 = sbr.rel (%p1920) target = $region36
      $region35: #{cnn_forward.7} parent=31 // pred_region
        %s1923 = smul.u32 64, %s14
      $region36: #{cnn_forward.7} parent=31 // pred_fallthru
        _
    $region32: #{cnn_forward.7} parent=5 // pred_fallthru
      _
    %p1924 = scmp.le.s32.totalorder 2, %s9
    // Predicated region
    $region37: #{cnn_forward.7} parent=5 // pred_check
      %p1925 = pneg %p1924
    $region38: #{cnn_forward.7} parent=5 // pred_check_branch
      %1927 = sbr.rel (%p1925) target = $region40
    $region39: #{cnn_forward.7} parent=5 // pred_region
      %s1928 = ssub.s32 %s9, 2
      // Predicated region
      $region41: #{cnn_forward.7} parent=39 // pred_check
        %p1929 = pneg %p106
      $region42: #{cnn_forward.7} parent=39 // pred_check_branch
        %1931 = sbr.rel (%p1929) target = $region44
      $region43: #{cnn_forward.7} parent=39 // pred_region
        %s1932 = smul.u32 64, %s15
        %p1933 = scmp.lt.s32.totalorder %s1932, 191
        %s1934 = scalar_select %p1933, %s1932, 191
        %s1935 = smul.addr %s1934, 8
        %s1936 = scalar_lea.vmem %s3, %s1935
      $region44: #{cnn_forward.7} parent=39 // pred_fallthru
        _
    $region40: #{cnn_forward.7} parent=5 // pred_fallthru
      _
  $region6: #{cnn_forward.7} parent=0 // loop_footer
    %s13 = sadd.s32 1, %s9
  $region7: #{cnn_forward.7} parent=0 // loop_footer_branch
    %8 = sbr.rel target = $region3
  $region8: #{cnn_forward.7} parent=0 // loop_exit
    _

// kernel: cnn_forward.8
$region0: #{cnn_forward.8}
  #allocation0 [shape = 'u32[]', space=smem, size = 0x4, offset = 0x4, fixed_abs, tag = 'smem constant byte address 0x4 - core index']
  #allocation1 [shape = 'u32[144,128]{1,0:T(1,128)}', space=vmem, size = 0x12000, scoped, tag = 'internal scratch']
  %s0 = inlined_call_operand.vmem [shape: f32[24,2,12,256], index: 0, kind: input, shape index: {}]
  %s1 = inlined_call_operand.vmem [shape: f32[24,12,128], index: 1, kind: output, shape index: {}]
  %s2 = sld [smem:[#allocation0]]
  $region14: #{cnn_forward.8} parent=0
    _
  %s4 = ssub.s32 1, %s2
  %s5 = scalar_select 0, %s4, %s2
  // Predicated region
  $region2: #{cnn_forward.8} parent=0 // pred_check
    _
  $region3: #{cnn_forward.8} parent=0 // pred_check_branch
    %7 = sbr.rel (0) target = $region5
  $region4: #{cnn_forward.8} parent=0 // pred_region
    _
  $region5: #{cnn_forward.8} parent=0 // pred_fallthru
    _
  %v8 = vld [vmem:[%s0] sm:$0xff]
  %v9 = vld [vmem:[%s0 + $0x8] sm:$0xff]
  %v10 = vld [vmem:[%s0 + $0x10] sm:$0xf]
  %v11 = vld [vmem:[%s0 + $0x18] sm:$0xf]
  %v12 = vld [vmem:[%s0 + $0x20] sm:$0xff]
  %v13 = vld [vmem:[%s0 + $0x28] sm:$0xff]
  %v14 = vld [vmem:[%s0 + $0x30] sm:$0xf]
  %v15 = vld [vmem:[%s0 + $0x38] sm:$0xf]
  %v16 = vld [vmem:[%s0 + $0x40] sm:$0xff]
  %v17 = vld [vmem:[%s0 + $0x48] sm:$0xff]
  %v18 = vld [vmem:[%s0 + $0x50] sm:$0xf]
  %v19 = vld [vmem:[%s0 + $0x58] sm:$0xf]
  %v20 = vld [vmem:[%s0 + $0x60] sm:$0xff]
  %v21 = vld [vmem:[%s0 + $0x68] sm:$0xff]
  %v22 = vld [vmem:[%s0 + $0x70] sm:$0xf]
  %v23 = vld [vmem:[%s0 + $0x78] sm:$0xf]
  %v24 = vld [vmem:[%s0 + $0x80] sm:$0xff]
  %v25 = vld [vmem:[%s0 + $0x88] sm:$0xff]
  %v26 = vld [vmem:[%s0 + $0x90] sm:$0xf]
  %v27 = vld [vmem:[%s0 + $0x98] sm:$0xf]
  %v28 = vld [vmem:[%s0 + $0xa0] sm:$0xff]
  %v29 = vld [vmem:[%s0 + $0xa8] sm:$0xff]
  %v30 = vld [vmem:[%s0 + $0xb0] sm:$0xf]
  %v31 = vld [vmem:[%s0 + $0xb8] sm:$0xf]
  %v32 = vld [vmem:[%s0 + $0xc0] sm:$0xff]
  %v33 = vld [vmem:[%s0 + $0xc8] sm:$0xff]
  %v34 = vld [vmem:[%s0 + $0xd0] sm:$0xf]
  %v35 = vld [vmem:[%s0 + $0xd8] sm:$0xf]
  %v36 = vld [vmem:[%s0 + $0xe0] sm:$0xff]
  %v37 = vld [vmem:[%s0 + $0xe8] sm:$0xff]
  %v38 = vld [vmem:[%s0 + $0xf0] sm:$0xf]
  %v39 = vld [vmem:[%s0 + $0xf8] sm:$0xf]
  %v40 = vld [vmem:[%s0 + $0x100] sm:$0xff]
  %v41 = vld [vmem:[%s0 + $0x108] sm:$0xff]
  %v42 = vld [vmem:[%s0 + $0x110] sm:$0xf]
  %v43 = vld [vmem:[%s0 + $0x118] sm:$0xf]
  %v44 = vld [vmem:[%s0 + $0x120] sm:$0xff]
  %v45 = vld [vmem:[%s0 + $0x128] sm:$0xff]
  %v46 = vld [vmem:[%s0 + $0x130] sm:$0xf]
  %v47 = vld [vmem:[%s0 + $0x138] sm:$0xf]
  %v48 = vld [vmem:[%s0 + $0x140] sm:$0xff]
  %v49 = vld [vmem:[%s0 + $0x148] sm:$0xff]
  %v50 = vld [vmem:[%s0 + $0x150] sm:$0xf]
  %v51 = vld [vmem:[%s0 + $0x158] sm:$0xf]
  %v52 = vld [vmem:[%s0 + $0x160] sm:$0xff]
  %v53 = vld [vmem:[%s0 + $0x168] sm:$0xff]
  %v54 = vld [vmem:[%s0 + $0x170] sm:$0xf]
  %v55 = vld [vmem:[%s0 + $0x178] sm:$0xf]
  %v56 = vld [vmem:[%s0 + $0x180] sm:$0xff]
  %v57 = vld [vmem:[%s0 + $0x188] sm:$0xff]
  %v58 = vld [vmem:[%s0 + $0x190] sm:$0xf]
  %v59 = vld [vmem:[%s0 + $0x198] sm:$0xf]
  %v60 = vld [vmem:[%s0 + $0x1a0] sm:$0xff]
  %v61 = vld [vmem:[%s0 + $0x1a8] sm:$0xff]
  %v62 = vld [vmem:[%s0 + $0x1b0] sm:$0xf]
  %v63 = vld [vmem:[%s0 + $0x1b8] sm:$0xf]
  %v64 = vld [vmem:[%s0 + $0x1c0] sm:$0xff]
  %v65 = vld [vmem:[%s0 + $0x1c8] sm:$0xff]
  %v66 = vld [vmem:[%s0 + $0x1d0] sm:$0xf]
  %v67 = vld [vmem:[%s0 + $0x1d8] sm:$0xf]
  %v68 = vld [vmem:[%s0 + $0x1e0] sm:$0xff]
  %v69 = vld [vmem:[%s0 + $0x1e8] sm:$0xff]
  %v70 = vld [vmem:[%s0 + $0x1f0] sm:$0xf]
  %v71 = vld [vmem:[%s0 + $0x1f8] sm:$0xf]
  %v72 = vld [vmem:[%s0 + $0x200] sm:$0xff]
  %v73 = vld [vmem:[%s0 + $0x208] sm:$0xff]
  %v74 = vld [vmem:[%s0 + $0x210] sm:$0xf]
  %v75 = vld [vmem:[%s0 + $0x218] sm:$0xf]
  %v76 = vld [vmem:[%s0 + $0x220] sm:$0xff]
  %v77 = vld [vmem:[%s0 + $0x228] sm:$0xff]
  %v78 = vld [vmem:[%s0 + $0x230] sm:$0xf]
  %v79 = vld [vmem:[%s0 + $0x238] sm:$0xf]
  %v80 = vld [vmem:[%s0 + $0x240] sm:$0xff]
  %v81 = vld [vmem:[%s0 + $0x248] sm:$0xff]
  %v82 = vld [vmem:[%s0 + $0x250] sm:$0xf]
  %v83 = vld [vmem:[%s0 + $0x258] sm:$0xf]
  %v84 = vld [vmem:[%s0 + $0x260] sm:$0xff]
  %v85 = vld [vmem:[%s0 + $0x268] sm:$0xff]
  %v86 = vld [vmem:[%s0 + $0x270] sm:$0xf]
  %v87 = vld [vmem:[%s0 + $0x278] sm:$0xf]
  %v88 = vld [vmem:[%s0 + $0x280] sm:$0xff]
  %v89 = vld [vmem:[%s0 + $0x288] sm:$0xff]
  %v90 = vld [vmem:[%s0 + $0x290] sm:$0xf]
  %v91 = vld [vmem:[%s0 + $0x298] sm:$0xf]
  %v92 = vld [vmem:[%s0 + $0x2a0] sm:$0xff]
  %v93 = vld [vmem:[%s0 + $0x2a8] sm:$0xff]
  %v94 = vld [vmem:[%s0 + $0x2b0] sm:$0xf]
  %v95 = vld [vmem:[%s0 + $0x2b8] sm:$0xf]
  %v96 = vld [vmem:[%s0 + $0x2c0] sm:$0xff]
  %v97 = vld [vmem:[%s0 + $0x2c8] sm:$0xff]
  %v98 = vld [vmem:[%s0 + $0x2d0] sm:$0xf]
  %v99 = vld [vmem:[%s0 + $0x2d8] sm:$0xf]
  %v100 = vld [vmem:[%s0 + $0x2e0] sm:$0xff]
  %v101 = vld [vmem:[%s0 + $0x2e8] sm:$0xff]
  %v102 = vld [vmem:[%s0 + $0x2f0] sm:$0xf]
  %v103 = vld [vmem:[%s0 + $0x2f8] sm:$0xf]
  %v104 = vld [vmem:[%s0 + $0x300] sm:$0xff]
  %v105 = vld [vmem:[%s0 + $0x308] sm:$0xff]
  %v106 = vld [vmem:[%s0 + $0x310] sm:$0xf]
  %v107 = vld [vmem:[%s0 + $0x318] sm:$0xf]
  %v108 = vld [vmem:[%s0 + $0x320] sm:$0xff]
  %v109 = vld [vmem:[%s0 + $0x328] sm:$0xff]
  %v110 = vld [vmem:[%s0 + $0x330] sm:$0xf]
  %v111 = vld [vmem:[%s0 + $0x338] sm:$0xf]
  %v112 = vld [vmem:[%s0 + $0x340] sm:$0xff]
  %v113 = vld [vmem:[%s0 + $0x348] sm:$0xff]
  %v114 = vld [vmem:[%s0 + $0x350] sm:$0xf]
  %v115 = vld [vmem:[%s0 + $0x358] sm:$0xf]
  %v116 = vld [vmem:[%s0 + $0x360] sm:$0xff]
  %v117 = vld [vmem:[%s0 + $0x368] sm:$0xff]
  %v118 = vld [vmem:[%s0 + $0x370] sm:$0xf]
  %v119 = vld [vmem:[%s0 + $0x378] sm:$0xf]
  %v120 = vld [vmem:[%s0 + $0x380] sm:$0xff]
  %v121 = vld [vmem:[%s0 + $0x388] sm:$0xff]
  %v122 = vld [vmem:[%s0 + $0x390] sm:$0xf]
  %v123 = vld [vmem:[%s0 + $0x398] sm:$0xf]
  %v124 = vld [vmem:[%s0 + $0x3a0] sm:$0xff]
  %v125 = vld [vmem:[%s0 + $0x3a8] sm:$0xff]
  %v126 = vld [vmem:[%s0 + $0x3b0] sm:$0xf]
  %v127 = vld [vmem:[%s0 + $0x3b8] sm:$0xf]
  %v128 = vld [vmem:[%s0 + $0x3c0] sm:$0xff]
  %v129 = vld [vmem:[%s0 + $0x3c8] sm:$0xff]
  %v130 = vld [vmem:[%s0 + $0x3d0] sm:$0xf]
  %v131 = vld [vmem:[%s0 + $0x3d8] sm:$0xf]
  %v132 = vld [vmem:[%s0 + $0x3e0] sm:$0xff]
  %v133 = vld [vmem:[%s0 + $0x3e8] sm:$0xff]
  %v134 = vld [vmem:[%s0 + $0x3f0] sm:$0xf]
  %v135 = vld [vmem:[%s0 + $0x3f8] sm:$0xf]
  %v136 = vld [vmem:[%s0 + $0x400] sm:$0xff]
  %v137 = vld [vmem:[%s0 + $0x408] sm:$0xff]
  %v138 = vld [vmem:[%s0 + $0x410] sm:$0xf]
  %v139 = vld [vmem:[%s0 + $0x418] sm:$0xf]
  %v140 = vld [vmem:[%s0 + $0x420] sm:$0xff]
  %v141 = vld [vmem:[%s0 + $0x428] sm:$0xff]
  %v142 = vld [vmem:[%s0 + $0x430] sm:$0xf]
  %v143 = vld [vmem:[%s0 + $0x438] sm:$0xf]
  %v144 = vld [vmem:[%s0 + $0x440] sm:$0xff]
  %v145 = vld [vmem:[%s0 + $0x448] sm:$0xff]
  %v146 = vld [vmem:[%s0 + $0x450] sm:$0xf]
  %v147 = vld [vmem:[%s0 + $0x458] sm:$0xf]
  %v148 = vld [vmem:[%s0 + $0x460] sm:$0xff]
  %v149 = vld [vmem:[%s0 + $0x468] sm:$0xff]
  %v150 = vld [vmem:[%s0 + $0x470] sm:$0xf]
  %v151 = vld [vmem:[%s0 + $0x478] sm:$0xf]
  %v152 = vld [vmem:[%s0 + $0x480] sm:$0xff]
  %v153 = vld [vmem:[%s0 + $0x488] sm:$0xff]
  %v154 = vld [vmem:[%s0 + $0x490] sm:$0xf]
  %v155 = vld [vmem:[%s0 + $0x498] sm:$0xf]
  %v156 = vld [vmem:[%s0 + $0x4a0] sm:$0xff]
  %v157 = vld [vmem:[%s0 + $0x4a8] sm:$0xff]
  %v158 = vld [vmem:[%s0 + $0x4b0] sm:$0xf]
  %v159 = vld [vmem:[%s0 + $0x4b8] sm:$0xf]
  %v160 = vld [vmem:[%s0 + $0x4c0] sm:$0xff]
  %v161 = vld [vmem:[%s0 + $0x4c8] sm:$0xff]
  %v162 = vld [vmem:[%s0 + $0x4d0] sm:$0xf]
  %v163 = vld [vmem:[%s0 + $0x4d8] sm:$0xf]
  %v164 = vld [vmem:[%s0 + $0x4e0] sm:$0xff]
  %v165 = vld [vmem:[%s0 + $0x4e8] sm:$0xff]
  %v166 = vld [vmem:[%s0 + $0x4f0] sm:$0xf]
  %v167 = vld [vmem:[%s0 + $0x4f8] sm:$0xf]
  %v168 = vld [vmem:[%s0 + $0x500] sm:$0xff]
  %v169 = vld [vmem:[%s0 + $0x508] sm:$0xff]
  %v170 = vld [vmem:[%s0 + $0x510] sm:$0xf]
  %v171 = vld [vmem:[%s0 + $0x518] sm:$0xf]
  %v172 = vld [vmem:[%s0 + $0x520] sm:$0xff]
  %v173 = vld [vmem:[%s0 + $0x528] sm:$0xff]
  %v174 = vld [vmem:[%s0 + $0x530] sm:$0xf]
  %v175 = vld [vmem:[%s0 + $0x538] sm:$0xf]
  %v176 = vld [vmem:[%s0 + $0x540] sm:$0xff]
  %v177 = vld [vmem:[%s0 + $0x548] sm:$0xff]
  %v178 = vld [vmem:[%s0 + $0x550] sm:$0xf]
  %v179 = vld [vmem:[%s0 + $0x558] sm:$0xf]
  %v180 = vld [vmem:[%s0 + $0x560] sm:$0xff]
  %v181 = vld [vmem:[%s0 + $0x568] sm:$0xff]
  %v182 = vld [vmem:[%s0 + $0x570] sm:$0xf]
  %v183 = vld [vmem:[%s0 + $0x578] sm:$0xf]
  %v184 = vld [vmem:[%s0 + $0x580] sm:$0xff]
  %v185 = vld [vmem:[%s0 + $0x588] sm:$0xff]
  %v186 = vld [vmem:[%s0 + $0x590] sm:$0xf]
  %v187 = vld [vmem:[%s0 + $0x598] sm:$0xf]
  %v188 = vld [vmem:[%s0 + $0x5a0] sm:$0xff]
  %v189 = vld [vmem:[%s0 + $0x5a8] sm:$0xff]
  %v190 = vld [vmem:[%s0 + $0x5b0] sm:$0xf]
  %v191 = vld [vmem:[%s0 + $0x5b8] sm:$0xf]
  %v192 = vld [vmem:[%s0 + $0x5c0] sm:$0xff]
  %v193 = vld [vmem:[%s0 + $0x5c8] sm:$0xff]
  %v194 = vld [vmem:[%s0 + $0x5d0] sm:$0xf]
  %v195 = vld [vmem:[%s0 + $0x5d8] sm:$0xf]
  %v196 = vld [vmem:[%s0 + $0x5e0] sm:$0xff]
  %v197 = vld [vmem:[%s0 + $0x5e8] sm:$0xff]
  %v198 = vld [vmem:[%s0 + $0x5f0] sm:$0xf]
  %v199 = vld [vmem:[%s0 + $0x5f8] sm:$0xf]
  %v200 = vmax.f32 %v8, %v12
  %v201 = vmax.f32 %v9, %v13
  %v202 = vmax.f32 %v10, %v14
  %v203 = vmax.f32 %v11, %v15
  %v204 = vmax.f32 %v16, %v20
  %v205 = vmax.f32 %v17, %v21
  %v206 = vmax.f32 %v18, %v22
  %v207 = vmax.f32 %v19, %v23
  %v208 = vmax.f32 %v24, %v28
  %v209 = vmax.f32 %v25, %v29
  %v210 = vmax.f32 %v26, %v30
  %v211 = vmax.f32 %v27, %v31
  %v212 = vmax.f32 %v32, %v36
  %v213 = vmax.f32 %v33, %v37
  %v214 = vmax.f32 %v34, %v38
  %v215 = vmax.f32 %v35, %v39
  %v216 = vmax.f32 %v40, %v44
  %v217 = vmax.f32 %v41, %v45
  %v218 = vmax.f32 %v42, %v46
  %v219 = vmax.f32 %v43, %v47
  %v220 = vmax.f32 %v48, %v52
  %v221 = vmax.f32 %v49, %v53
  %v222 = vmax.f32 %v50, %v54
  %v223 = vmax.f32 %v51, %v55
  %v224 = vmax.f32 %v56, %v60
  %v225 = vmax.f32 %v57, %v61
  %v226 = vmax.f32 %v58, %v62
  %v227 = vmax.f32 %v59, %v63
  %v228 = vmax.f32 %v64, %v68
  %v229 = vmax.f32 %v65, %v69
  %v230 = vmax.f32 %v66, %v70
  %v231 = vmax.f32 %v67, %v71
  %v232 = vmax.f32 %v72, %v76
  %v233 = vmax.f32 %v73, %v77
  %v234 = vmax.f32 %v74, %v78
  %v235 = vmax.f32 %v75, %v79
  %v236 = vmax.f32 %v80, %v84
  %v237 = vmax.f32 %v81, %v85
  %v238 = vmax.f32 %v82, %v86
  %v239 = vmax.f32 %v83, %v87
  %v240 = vmax.f32 %v88, %v92
  %v241 = vmax.f32 %v89, %v93
  %v242 = vmax.f32 %v90, %v94
  %v243 = vmax.f32 %v91, %v95
  %v244 = vmax.f32 %v96, %v100
  %v245 = vmax.f32 %v97, %v101
  %v246 = vmax.f32 %v98, %v102
  %v247 = vmax.f32 %v99, %v103
  %v248 = vmax.f32 %v104, %v108
  %v249 = vmax.f32 %v105, %v109
  %v250 = vmax.f32 %v106, %v110
  %v251 = vmax.f32 %v107, %v111
  %v252 = vmax.f32 %v112, %v116
  %v253 = vmax.f32 %v113, %v117
  %v254 = vmax.f32 %v114, %v118
  %v255 = vmax.f32 %v115, %v119
  %v256 = vmax.f32 %v120, %v124
  %v257 = vmax.f32 %v121, %v125
  %v258 = vmax.f32 %v122, %v126
  %v259 = vmax.f32 %v123, %v127
  %v260 = vmax.f32 %v128, %v132
  %v261 = vmax.f32 %v129, %v133
  %v262 = vmax.f32 %v130, %v134
  %v263 = vmax.f32 %v131, %v135
  %v264 = vmax.f32 %v136, %v140
  %v265 = vmax.f32 %v137, %v141
  %v266 = vmax.f32 %v138, %v142
  %v267 = vmax.f32 %v139, %v143
  %v268 = vmax.f32 %v144, %v148
  %v269 = vmax.f32 %v145, %v149
  %v270 = vmax.f32 %v146, %v150
  %v271 = vmax.f32 %v147, %v151
  %v272 = vmax.f32 %v152, %v156
  %v273 = vmax.f32 %v153, %v157
  %v274 = vmax.f32 %v154, %v158
  %v275 = vmax.f32 %v155, %v159
  %v276 = vmax.f32 %v160, %v164
  %v277 = vmax.f32 %v161, %v165
  %v278 = vmax.f32 %v162, %v166
  %v279 = vmax.f32 %v163, %v167
  %v280 = vmax.f32 %v168, %v172
  %v281 = vmax.f32 %v169, %v173
  %v282 = vmax.f32 %v170, %v174
  %v283 = vmax.f32 %v171, %v175
  %v284 = vmax.f32 %v176, %v180
  %v285 = vmax.f32 %v177, %v181
  %v286 = vmax.f32 %v178, %v182
  %v287 = vmax.f32 %v179, %v183
  %v288 = vmax.f32 %v184, %v188
  %v289 = vmax.f32 %v185, %v189
  %v290 = vmax.f32 %v186, %v190
  %v291 = vmax.f32 %v187, %v191
  %v292 = vmax.f32 %v192, %v196
  %v293 = vmax.f32 %v193, %v197
  %v294 = vmax.f32 %v194, %v198
  %v295 = vmax.f32 %v195, %v199
  %v296 = vmax.f32 %v200, %v201
  %v297 = vmax.f32 %v202, %v203
  %v298 = vmax.f32 %v204, %v205
  %v299 = vmax.f32 %v206, %v207
  %v300 = vmax.f32 %v208, %v209
  %v301 = vmax.f32 %v210, %v211
  %v302 = vmax.f32 %v212, %v213
  %v303 = vmax.f32 %v214, %v215
  %v304 = vmax.f32 %v216, %v217
  %v305 = vmax.f32 %v218, %v219
  %v306 = vmax.f32 %v220, %v221
  %v307 = vmax.f32 %v222, %v223
  %v308 = vmax.f32 %v224, %v225
  %v309 = vmax.f32 %v226, %v227
  %v310 = vmax.f32 %v228, %v229
  %v311 = vmax.f32 %v230, %v231
  %v312 = vmax.f32 %v232, %v233
  %v313 = vmax.f32 %v234, %v235
  %v314 = vmax.f32 %v236, %v237
  %v315 = vmax.f32 %v238, %v239
  %v316 = vmax.f32 %v240, %v241
  %v317 = vmax.f32 %v242, %v243
  %v318 = vmax.f32 %v244, %v245
  %v319 = vmax.f32 %v246, %v247
  %v320 = vmax.f32 %v248, %v249
  %v321 = vmax.f32 %v250, %v251
  %v322 = vmax.f32 %v252, %v253
  %v323 = vmax.f32 %v254, %v255
  %v324 = vmax.f32 %v256, %v257
  %v325 = vmax.f32 %v258, %v259
  %v326 = vmax.f32 %v260, %v261
  %v327 = vmax.f32 %v262, %v263
  %v328 = vmax.f32 %v264, %v265
  %v329 = vmax.f32 %v266, %v267
  %v330 = vmax.f32 %v268, %v269
  %v331 = vmax.f32 %v270, %v271
  %v332 = vmax.f32 %v272, %v273
  %v333 = vmax.f32 %v274, %v275
  %v334 = vmax.f32 %v276, %v277
  %v335 = vmax.f32 %v278, %v279
  %v336 = vmax.f32 %v280, %v281
  %v337 = vmax.f32 %v282, %v283
  %v338 = vmax.f32 %v284, %v285
  %v339 = vmax.f32 %v286, %v287
  %v340 = vmax.f32 %v288, %v289
  %v341 = vmax.f32 %v290, %v291
  %v342 = vmax.f32 %v292, %v293
  %v343 = vmax.f32 %v294, %v295
  %344 = vst [vmem:[%s1] sm:$0xff] %v296
  %345 = vst [vmem:[%s1 + $0x8] sm:$0xf] %v297
  %346 = vst [vmem:[%s1 + $0x10] sm:$0xff] %v298
  %347 = vst [vmem:[%s1 + $0x18] sm:$0xf] %v299
  %348 = vst [vmem:[%s1 + $0x20] sm:$0xff] %v300
  %349 = vst [vmem:[%s1 + $0x28] sm:$0xf] %v301
  %350 = vst [vmem:[%s1 + $0x30] sm:$0xff] %v302
  %351 = vst [vmem:[%s1 + $0x38] sm:$0xf] %v303
  %352 = vst [vmem:[%s1 + $0x40] sm:$0xff] %v304
  %353 = vst [vmem:[%s1 + $0x48] sm:$0xf] %v305
  %354 = vst [vmem:[%s1 + $0x50] sm:$0xff] %v306
  %355 = vst [vmem:[%s1 + $0x58] sm:$0xf] %v307
  %356 = vst [vmem:[%s1 + $0x60] sm:$0xff] %v308
  %357 = vst [vmem:[%s1 + $0x68] sm:$0xf] %v309
  %358 = vst [vmem:[%s1 + $0x70] sm:$0xff] %v310
  %359 = vst [vmem:[%s1 + $0x78] sm:$0xf] %v311
  %360 = vst [vmem:[%s1 + $0x80] sm:$0xff] %v312
  %361 = vst [vmem:[%s1 + $0x88] sm:$0xf] %v313
  %362 = vst [vmem:[%s1 + $0x90] sm:$0xff] %v314
  %363 = vst [vmem:[%s1 + $0x98] sm:$0xf] %v315
  %364 = vst [vmem:[%s1 + $0xa0] sm:$0xff] %v316
  %365 = vst [vmem:[%s1 + $0xa8] sm:$0xf] %v317
  %366 = vst [vmem:[%s1 + $0xb0] sm:$0xff] %v318
  %367 = vst [vmem:[%s1 + $0xb8] sm:$0xf] %v319
  %368 = vst [vmem:[%s1 + $0xc0] sm:$0xff] %v320
  %369 = vst [vmem:[%s1 + $0xc8] sm:$0xf] %v321
  %370 = vst [vmem:[%s1 + $0xd0] sm:$0xff] %v322
  %371 = vst [vmem:[%s1 + $0xd8] sm:$0xf] %v323
  %372 = vst [vmem:[%s1 + $0xe0] sm:$0xff] %v324
  %373 = vst [vmem:[%s1 + $0xe8] sm:$0xf] %v325
  %374 = vst [vmem:[%s1 + $0xf0] sm:$0xff] %v326
  %375 = vst [vmem:[%s1 + $0xf8] sm:$0xf] %v327
  %376 = vst [vmem:[%s1 + $0x100] sm:$0xff] %v328
  %377 = vst [vmem:[%s1 + $0x108] sm:$0xf] %v329
  %378 = vst [vmem:[%s1 + $0x110] sm:$0xff] %v330
  %379 = vst [vmem:[%s1 + $0x118] sm:$0xf] %v331
  %380 = vst [vmem:[%s1 + $0x120] sm:$0xff] %v332
  %381 = vst [vmem:[%s1 + $0x128] sm:$0xf] %v333
  %382 = vst [vmem:[%s1 + $0x130] sm:$0xff] %v334
  %383 = vst [vmem:[%s1 + $0x138] sm:$0xf] %v335
  %384 = vst [vmem:[%s1 + $0x140] sm:$0xff] %v336
  %385 = vst [vmem:[%s1 + $0x148] sm:$0xf] %v337
  %386 = vst [vmem:[%s1 + $0x150] sm:$0xff] %v338
  %387 = vst [vmem:[%s1 + $0x158] sm:$0xf] %v339
  %388 = vst [vmem:[%s1 + $0x160] sm:$0xff] %v340
  %389 = vst [vmem:[%s1 + $0x168] sm:$0xf] %v341
  %390 = vst [vmem:[%s1 + $0x170] sm:$0xff] %v342
  %391 = vst [vmem:[%s1 + $0x178] sm:$0xf] %v343
  // Predicated region
  $region6: #{cnn_forward.8} parent=0 // pred_check
    _
  $region7: #{cnn_forward.8} parent=0 // pred_check_branch
    %393 = sbr.rel (0) target = $region9
  $region8: #{cnn_forward.8} parent=0 // pred_region
    _
  $region9: #{cnn_forward.8} parent=0 // pred_fallthru
    _
  // Predicated region
  $region10: #{cnn_forward.8} parent=0 // pred_check
    _
  $region11: #{cnn_forward.8} parent=0 // pred_check_branch
    %395 = sbr.rel (0) target = $region13
  $region12: #{cnn_forward.8} parent=0 // pred_region
    _
  $region13: #{cnn_forward.8} parent=0 // pred_fallthru
    _

// kernel: cnn_forward.9
$region0: #{cnn_forward.9}
  #allocation0 [shape = 'u32[]', space=smem, size = 0x4, offset = 0x4, fixed_abs, tag = 'smem constant byte address 0x4 - core index']
  #allocation1 [shape = 'u32[144,128]{1,0:T(1,128)}', space=vmem, size = 0x12000, scoped, tag = 'internal scratch']
  %s0 = inlined_call_operand.vmem [shape: bf16[128,896], index: 0, kind: input, shape index: {}]
  %s1 = inlined_call_operand.vmem [shape: bf16[896,128], index: 1, kind: input, shape index: {}]
  %s2 = inlined_call_operand.vmem [shape: f32[1,128], index: 2, kind: input, shape index: {}]
  %s3 = inlined_call_operand.vmem [shape: f32[128,128], index: 3, kind: output, shape index: {}]
  %s4 = sld [smem:[#allocation0]]
  $region22: #{cnn_forward.9} parent=0
    _
  %s6 = ssub.s32 1, %s4
  %s7 = scalar_select 0, %s6, %s4
  // Predicated region
  $region2: #{cnn_forward.9} parent=0 // pred_check
    _
  $region3: #{cnn_forward.9} parent=0 // pred_check_branch
    %9 = sbr.rel (0) target = $region5
  $region4: #{cnn_forward.9} parent=0 // pred_region
    _
  $region5: #{cnn_forward.9} parent=0 // pred_fallthru
    _
  // Predicated region
  $region6: #{cnn_forward.9} parent=0 // pred_check
    _
  $region7: #{cnn_forward.9} parent=0 // pred_check_branch
    %11 = sbr.rel (0) target = $region9
  $region8: #{cnn_forward.9} parent=0 // pred_region
    _
  $region9: #{cnn_forward.9} parent=0 // pred_fallthru
    _
  // Predicated region
  $region10: #{cnn_forward.9} parent=0 // pred_check
    _
  $region11: #{cnn_forward.9} parent=0 // pred_check_branch
    %13 = sbr.rel (0) target = $region13
  $region12: #{cnn_forward.9} parent=0 // pred_region
    _
  $region13: #{cnn_forward.9} parent=0 // pred_fallthru
    _
  %v15 = vld [vmem:[%s0] sm:$0xff]
  %v16 = vld [vmem:[%s0 + $0x8] sm:$0xff]
  %v17 = vld [vmem:[%s0 + $0x10] sm:$0xff]
  %v18 = vld [vmem:[%s0 + $0x18] sm:$0xf]
  %v19 = vld [vmem:[%s0 + $0x1c] sm:$0xff]
  %v20 = vld [vmem:[%s0 + $0x24] sm:$0xff]
  %v21 = vld [vmem:[%s0 + $0x2c] sm:$0xff]
  %v22 = vld [vmem:[%s0 + $0x34] sm:$0xf]
  %v23 = vld [vmem:[%s0 + $0x38] sm:$0xff]
  %v24 = vld [vmem:[%s0 + $0x40] sm:$0xff]
  %v25 = vld [vmem:[%s0 + $0x48] sm:$0xff]
  %v26 = vld [vmem:[%s0 + $0x50] sm:$0xf]
  %v27 = vld [vmem:[%s0 + $0x54] sm:$0xff]
  %v28 = vld [vmem:[%s0 + $0x5c] sm:$0xff]
  %v29 = vld [vmem:[%s0 + $0x64] sm:$0xff]
  %v30 = vld [vmem:[%s0 + $0x6c] sm:$0xf]
  %v31 = vld [vmem:[%s0 + $0x70] sm:$0xff]
  %v32 = vld [vmem:[%s0 + $0x78] sm:$0xff]
  %v33 = vld [vmem:[%s0 + $0x80] sm:$0xff]
  %v34 = vld [vmem:[%s0 + $0x88] sm:$0xf]
  %v35 = vld [vmem:[%s0 + $0x8c] sm:$0xff]
  %v36 = vld [vmem:[%s0 + $0x94] sm:$0xff]
  %v37 = vld [vmem:[%s0 + $0x9c] sm:$0xff]
  %v38 = vld [vmem:[%s0 + $0xa4] sm:$0xf]
  %v39 = vld [vmem:[%s0 + $0xa8] sm:$0xff]
  %v40 = vld [vmem:[%s0 + $0xb0] sm:$0xff]
  %v41 = vld [vmem:[%s0 + $0xb8] sm:$0xff]
  %v42 = vld [vmem:[%s0 + $0xc0] sm:$0xf]
  %v43 = vld [vmem:[%s0 + $0xc4] sm:$0xff]
  %v44 = vld [vmem:[%s0 + $0xcc] sm:$0xff]
  %v45 = vld [vmem:[%s0 + $0xd4] sm:$0xff]
  %v46 = vld [vmem:[%s0 + $0xdc] sm:$0xf]
  %v47 = vld [vmem:[%s0 + $0xe0] sm:$0xff]
  %v48 = vld [vmem:[%s0 + $0xe8] sm:$0xff]
  %v49 = vld [vmem:[%s0 + $0xf0] sm:$0xff]
  %v50 = vld [vmem:[%s0 + $0xf8] sm:$0xf]
  %v51 = vld [vmem:[%s0 + $0xfc] sm:$0xff]
  %v52 = vld [vmem:[%s0 + $0x104] sm:$0xff]
  %v53 = vld [vmem:[%s0 + $0x10c] sm:$0xff]
  %v54 = vld [vmem:[%s0 + $0x114] sm:$0xf]
  %v55 = vld [vmem:[%s0 + $0x118] sm:$0xff]
  %v56 = vld [vmem:[%s0 + $0x120] sm:$0xff]
  %v57 = vld [vmem:[%s0 + $0x128] sm:$0xff]
  %v58 = vld [vmem:[%s0 + $0x130] sm:$0xf]
  %v59 = vld [vmem:[%s0 + $0x134] sm:$0xff]
  %v60 = vld [vmem:[%s0 + $0x13c] sm:$0xff]
  %v61 = vld [vmem:[%s0 + $0x144] sm:$0xff]
  %v62 = vld [vmem:[%s0 + $0x14c] sm:$0xf]
  %v63 = vld [vmem:[%s0 + $0x150] sm:$0xff]
  %v64 = vld [vmem:[%s0 + $0x158] sm:$0xff]
  %v65 = vld [vmem:[%s0 + $0x160] sm:$0xff]
  %v66 = vld [vmem:[%s0 + $0x168] sm:$0xf]
  %v67 = vld [vmem:[%s0 + $0x16c] sm:$0xff]
  %v68 = vld [vmem:[%s0 + $0x174] sm:$0xff]
  %v69 = vld [vmem:[%s0 + $0x17c] sm:$0xff]
  %v70 = vld [vmem:[%s0 + $0x184] sm:$0xf]
  %v71 = vld [vmem:[%s0 + $0x188] sm:$0xff]
  %v72 = vld [vmem:[%s0 + $0x190] sm:$0xff]
  %v73 = vld [vmem:[%s0 + $0x198] sm:$0xff]
  %v74 = vld [vmem:[%s0 + $0x1a0] sm:$0xf]
  %v75 = vld [vmem:[%s0 + $0x1a4] sm:$0xff]
  %v76 = vld [vmem:[%s0 + $0x1ac] sm:$0xff]
  %v77 = vld [vmem:[%s0 + $0x1b4] sm:$0xff]
  %v78 = vld [vmem:[%s0 + $0x1bc] sm:$0xf]
  %v79 = vld [vmem:[%s1] sm:$0xf]
  %v80 = vld [vmem:[%s1 + $0x4] sm:$0xf]
  %v81 = vld [vmem:[%s1 + $0x8] sm:$0xf]
  %v82 = vld [vmem:[%s1 + $0xc] sm:$0xf]
  %v83 = vld [vmem:[%s1 + $0x10] sm:$0xf]
  %v84 = vld [vmem:[%s1 + $0x14] sm:$0xf]
  %v85 = vld [vmem:[%s1 + $0x18] sm:$0xf]
  %v86 = vld [vmem:[%s1 + $0x1c] sm:$0xf]
  %v87 = vld [vmem:[%s1 + $0x20] sm:$0xf]
  %v88 = vld [vmem:[%s1 + $0x24] sm:$0xf]
  %v89 = vld [vmem:[%s1 + $0x28] sm:$0xf]
  %v90 = vld [vmem:[%s1 + $0x2c] sm:$0xf]
  %v91 = vld [vmem:[%s1 + $0x30] sm:$0xf]
  %v92 = vld [vmem:[%s1 + $0x34] sm:$0xf]
  %v93 = vld [vmem:[%s1 + $0x38] sm:$0xf]
  %v94 = vld [vmem:[%s1 + $0x3c] sm:$0xf]
  %v95 = vld [vmem:[%s1 + $0x40] sm:$0xf]
  %v96 = vld [vmem:[%s1 + $0x44] sm:$0xf]
  %v97 = vld [vmem:[%s1 + $0x48] sm:$0xf]
  %v98 = vld [vmem:[%s1 + $0x4c] sm:$0xf]
  %v99 = vld [vmem:[%s1 + $0x50] sm:$0xf]
  %v100 = vld [vmem:[%s1 + $0x54] sm:$0xf]
  %v101 = vld [vmem:[%s1 + $0x58] sm:$0xf]
  %v102 = vld [vmem:[%s1 + $0x5c] sm:$0xf]
  %v103 = vld [vmem:[%s1 + $0x60] sm:$0xf]
  %v104 = vld [vmem:[%s1 + $0x64] sm:$0xf]
  %v105 = vld [vmem:[%s1 + $0x68] sm:$0xf]
  %v106 = vld [vmem:[%s1 + $0x6c] sm:$0xf]
  %v107 = vld [vmem:[%s1 + $0x70] sm:$0xf]
  %v108 = vld [vmem:[%s1 + $0x74] sm:$0xf]
  %v109 = vld [vmem:[%s1 + $0x78] sm:$0xf]
  %v110 = vld [vmem:[%s1 + $0x7c] sm:$0xf]
  %v111 = vld [vmem:[%s1 + $0x80] sm:$0xf]
  %v112 = vld [vmem:[%s1 + $0x84] sm:$0xf]
  %v113 = vld [vmem:[%s1 + $0x88] sm:$0xf]
  %v114 = vld [vmem:[%s1 + $0x8c] sm:$0xf]
  %v115 = vld [vmem:[%s1 + $0x90] sm:$0xf]
  %v116 = vld [vmem:[%s1 + $0x94] sm:$0xf]
  %v117 = vld [vmem:[%s1 + $0x98] sm:$0xf]
  %v118 = vld [vmem:[%s1 + $0x9c] sm:$0xf]
  %v119 = vld [vmem:[%s1 + $0xa0] sm:$0xf]
  %v120 = vld [vmem:[%s1 + $0xa4] sm:$0xf]
  %v121 = vld [vmem:[%s1 + $0xa8] sm:$0xf]
  %v122 = vld [vmem:[%s1 + $0xac] sm:$0xf]
  %v123 = vld [vmem:[%s1 + $0xb0] sm:$0xf]
  %v124 = vld [vmem:[%s1 + $0xb4] sm:$0xf]
  %v125 = vld [vmem:[%s1 + $0xb8] sm:$0xf]
  %v126 = vld [vmem:[%s1 + $0xbc] sm:$0xf]
  %v127 = vld [vmem:[%s1 + $0xc0] sm:$0xf]
  %v128 = vld [vmem:[%s1 + $0xc4] sm:$0xf]
  %v129 = vld [vmem:[%s1 + $0xc8] sm:$0xf]
  %v130 = vld [vmem:[%s1 + $0xcc] sm:$0xf]
  %v131 = vld [vmem:[%s1 + $0xd0] sm:$0xf]
  %v132 = vld [vmem:[%s1 + $0xd4] sm:$0xf]
  %v133 = vld [vmem:[%s1 + $0xd8] sm:$0xf]
  %v134 = vld [vmem:[%s1 + $0xdc] sm:$0xf]
  %v135 = vld [vmem:[%s1 + $0xe0] sm:$0xf]
  %v136 = vld [vmem:[%s1 + $0xe4] sm:$0xf]
  %v137 = vld [vmem:[%s1 + $0xe8] sm:$0xf]
  %v138 = vld [vmem:[%s1 + $0xec] sm:$0xf]
  %v139 = vld [vmem:[%s1 + $0xf0] sm:$0xf]
  %v140 = vld [vmem:[%s1 + $0xf4] sm:$0xf]
  %v141 = vld [vmem:[%s1 + $0xf8] sm:$0xf]
  %v142 = vld [vmem:[%s1 + $0xfc] sm:$0xf]
  %v143 = vld [vmem:[%s1 + $0x100] sm:$0xf]
  %v144 = vld [vmem:[%s1 + $0x104] sm:$0xf]
  %v145 = vld [vmem:[%s1 + $0x108] sm:$0xf]
  %v146 = vld [vmem:[%s1 + $0x10c] sm:$0xf]
  %v147 = vld [vmem:[%s1 + $0x110] sm:$0xf]
  %v148 = vld [vmem:[%s1 + $0x114] sm:$0xf]
  %v149 = vld [vmem:[%s1 + $0x118] sm:$0xf]
  %v150 = vld [vmem:[%s1 + $0x11c] sm:$0xf]
  %v151 = vld [vmem:[%s1 + $0x120] sm:$0xf]
  %v152 = vld [vmem:[%s1 + $0x124] sm:$0xf]
  %v153 = vld [vmem:[%s1 + $0x128] sm:$0xf]
  %v154 = vld [vmem:[%s1 + $0x12c] sm:$0xf]
  %v155 = vld [vmem:[%s1 + $0x130] sm:$0xf]
  %v156 = vld [vmem:[%s1 + $0x134] sm:$0xf]
  %v157 = vld [vmem:[%s1 + $0x138] sm:$0xf]
  %v158 = vld [vmem:[%s1 + $0x13c] sm:$0xf]
  %v159 = vld [vmem:[%s1 + $0x140] sm:$0xf]
  %v160 = vld [vmem:[%s1 + $0x144] sm:$0xf]
  %v161 = vld [vmem:[%s1 + $0x148] sm:$0xf]
  %v162 = vld [vmem:[%s1 + $0x14c] sm:$0xf]
  %v163 = vld [vmem:[%s1 + $0x150] sm:$0xf]
  %v164 = vld [vmem:[%s1 + $0x154] sm:$0xf]
  %v165 = vld [vmem:[%s1 + $0x158] sm:$0xf]
  %v166 = vld [vmem:[%s1 + $0x15c] sm:$0xf]
  %v167 = vld [vmem:[%s1 + $0x160] sm:$0xf]
  %v168 = vld [vmem:[%s1 + $0x164] sm:$0xf]
  %v169 = vld [vmem:[%s1 + $0x168] sm:$0xf]
  %v170 = vld [vmem:[%s1 + $0x16c] sm:$0xf]
  %v171 = vld [vmem:[%s1 + $0x170] sm:$0xf]
  %v172 = vld [vmem:[%s1 + $0x174] sm:$0xf]
  %v173 = vld [vmem:[%s1 + $0x178] sm:$0xf]
  %v174 = vld [vmem:[%s1 + $0x17c] sm:$0xf]
  %v175 = vld [vmem:[%s1 + $0x180] sm:$0xf]
  %v176 = vld [vmem:[%s1 + $0x184] sm:$0xf]
  %v177 = vld [vmem:[%s1 + $0x188] sm:$0xf]
  %v178 = vld [vmem:[%s1 + $0x18c] sm:$0xf]
  %v179 = vld [vmem:[%s1 + $0x190] sm:$0xf]
  %v180 = vld [vmem:[%s1 + $0x194] sm:$0xf]
  %v181 = vld [vmem:[%s1 + $0x198] sm:$0xf]
  %v182 = vld [vmem:[%s1 + $0x19c] sm:$0xf]
  %v183 = vld [vmem:[%s1 + $0x1a0] sm:$0xf]
  %v184 = vld [vmem:[%s1 + $0x1a4] sm:$0xf]
  %v185 = vld [vmem:[%s1 + $0x1a8] sm:$0xf]
  %v186 = vld [vmem:[%s1 + $0x1ac] sm:$0xf]
  %v187 = vld [vmem:[%s1 + $0x1b0] sm:$0xf]
  %v188 = vld [vmem:[%s1 + $0x1b4] sm:$0xf]
  %v189 = vld [vmem:[%s1 + $0x1b8] sm:$0xf]
  %v190 = vld [vmem:[%s1 + $0x1bc] sm:$0xf]
  %v191 = vld [vmem:[%s2] sm:$0x1]
  %v193 = vlaneseq
  %v194 = vshrl.u32 %v193, 7
  %v195 = vsub.s32 0, %v194
  %v196 = vrot.slane %v191, %v195
  %v262 = vunpack.c.l.b16 %v15
  %v263 = vunpack.c.h.b16 %v15
  %v264 = vunpack.c.l.b16 %v16
  %v265 = vunpack.c.h.b16 %v16
  %v266 = vunpack.c.l.b16 %v17
  %v267 = vunpack.c.h.b16 %v17
  %v268 = vunpack.c.l.b16 %v18
  %v269 = vunpack.c.l.b16 %v19
  %v270 = vunpack.c.h.b16 %v19
  %v271 = vunpack.c.l.b16 %v20
  %v272 = vunpack.c.h.b16 %v20
  %v273 = vunpack.c.l.b16 %v21
  %v274 = vunpack.c.h.b16 %v21
  %v275 = vunpack.c.l.b16 %v22
  %v276 = vunpack.c.l.b16 %v23
  %v277 = vunpack.c.h.b16 %v23
  %v278 = vunpack.c.l.b16 %v24
  %v279 = vunpack.c.h.b16 %v24
  %v280 = vunpack.c.l.b16 %v25
  %v281 = vunpack.c.h.b16 %v25
  %v282 = vunpack.c.l.b16 %v26
  %v283 = vunpack.c.l.b16 %v27
  %v284 = vunpack.c.h.b16 %v27
  %v285 = vunpack.c.l.b16 %v28
  %v286 = vunpack.c.h.b16 %v28
  %v287 = vunpack.c.l.b16 %v29
  %v288 = vunpack.c.h.b16 %v29
  %v289 = vunpack.c.l.b16 %v30
  %v290 = vunpack.c.l.b16 %v31
  %v291 = vunpack.c.h.b16 %v31
  %v292 = vunpack.c.l.b16 %v32
  %v293 = vunpack.c.h.b16 %v32
  %v294 = vunpack.c.l.b16 %v33
  %v295 = vunpack.c.h.b16 %v33
  %v296 = vunpack.c.l.b16 %v34
  %v297 = vunpack.c.l.b16 %v35
  %v298 = vunpack.c.h.b16 %v35
  %v299 = vunpack.c.l.b16 %v36
  %v300 = vunpack.c.h.b16 %v36
  %v301 = vunpack.c.l.b16 %v37
  %v302 = vunpack.c.h.b16 %v37
  %v303 = vunpack.c.l.b16 %v38
  %v304 = vunpack.c.l.b16 %v39
  %v305 = vunpack.c.h.b16 %v39
  %v306 = vunpack.c.l.b16 %v40
  %v307 = vunpack.c.h.b16 %v40
  %v308 = vunpack.c.l.b16 %v41
  %v309 = vunpack.c.h.b16 %v41
  %v310 = vunpack.c.l.b16 %v42
  %v311 = vunpack.c.l.b16 %v43
  %v312 = vunpack.c.h.b16 %v43
  %v313 = vunpack.c.l.b16 %v44
  %v314 = vunpack.c.h.b16 %v44
  %v315 = vunpack.c.l.b16 %v45
  %v316 = vunpack.c.h.b16 %v45
  %v317 = vunpack.c.l.b16 %v46
  %v318 = vunpack.c.l.b16 %v47
  %v319 = vunpack.c.h.b16 %v47
  %v320 = vunpack.c.l.b16 %v48
  %v321 = vunpack.c.h.b16 %v48
  %v322 = vunpack.c.l.b16 %v49
  %v323 = vunpack.c.h.b16 %v49
  %v324 = vunpack.c.l.b16 %v50
  %v325 = vunpack.c.l.b16 %v51
  %v326 = vunpack.c.h.b16 %v51
  %v327 = vunpack.c.l.b16 %v52
  %v328 = vunpack.c.h.b16 %v52
  %v329 = vunpack.c.l.b16 %v53
  %v330 = vunpack.c.h.b16 %v53
  %v331 = vunpack.c.l.b16 %v54
  %v332 = vunpack.c.l.b16 %v55
  %v333 = vunpack.c.h.b16 %v55
  %v334 = vunpack.c.l.b16 %v56
  %v335 = vunpack.c.h.b16 %v56
  %v336 = vunpack.c.l.b16 %v57
  %v337 = vunpack.c.h.b16 %v57
  %v338 = vunpack.c.l.b16 %v58
  %v339 = vunpack.c.l.b16 %v59
  %v340 = vunpack.c.h.b16 %v59
  %v341 = vunpack.c.l.b16 %v60
  %v342 = vunpack.c.h.b16 %v60
  %v343 = vunpack.c.l.b16 %v61
  %v344 = vunpack.c.h.b16 %v61
  %v345 = vunpack.c.l.b16 %v62
  %v346 = vunpack.c.l.b16 %v63
  %v347 = vunpack.c.h.b16 %v63
  %v348 = vunpack.c.l.b16 %v64
  %v349 = vunpack.c.h.b16 %v64
  %v350 = vunpack.c.l.b16 %v65
  %v351 = vunpack.c.h.b16 %v65
  %v352 = vunpack.c.l.b16 %v66
  %v353 = vunpack.c.l.b16 %v67
  %v354 = vunpack.c.h.b16 %v67
  %v355 = vunpack.c.l.b16 %v68
  %v356 = vunpack.c.h.b16 %v68
  %v357 = vunpack.c.l.b16 %v69
  %v358 = vunpack.c.h.b16 %v69
  %v359 = vunpack.c.l.b16 %v70
  %v360 = vunpack.c.l.b16 %v71
  %v361 = vunpack.c.h.b16 %v71
  %v362 = vunpack.c.l.b16 %v72
  %v363 = vunpack.c.h.b16 %v72
  %v364 = vunpack.c.l.b16 %v73
  %v365 = vunpack.c.h.b16 %v73
  %v366 = vunpack.c.l.b16 %v74
  %v367 = vunpack.c.l.b16 %v75
  %v368 = vunpack.c.h.b16 %v75
  %v369 = vunpack.c.l.b16 %v76
  %v370 = vunpack.c.h.b16 %v76
  %v371 = vunpack.c.l.b16 %v77
  %v372 = vunpack.c.h.b16 %v77
  %v373 = vunpack.c.l.b16 %v78
  %v374 = vpack.c.b16 %v269, %v262
  %v375 = vpack.c.b16 %v270, %v263
  %v376 = vpack.c.b16 %v271, %v264
  %v377 = vpack.c.b16 %v272, %v265
  %v378 = vpack.c.b16 %v273, %v266
  %v379 = vpack.c.b16 %v274, %v267
  %v380 = vpack.c.b16 %v275, %v268
  %v381 = vpack.c.b16 %v283, %v276
  %v382 = vpack.c.b16 %v284, %v277
  %v383 = vpack.c.b16 %v285, %v278
  %v384 = vpack.c.b16 %v286, %v279
  %v385 = vpack.c.b16 %v287, %v280
  %v386 = vpack.c.b16 %v288, %v281
  %v387 = vpack.c.b16 %v289, %v282
  %v388 = vpack.c.b16 %v297, %v290
  %v389 = vpack.c.b16 %v298, %v291
  %v390 = vpack.c.b16 %v299, %v292
  %v391 = vpack.c.b16 %v300, %v293
  %v392 = vpack.c.b16 %v301, %v294
  %v393 = vpack.c.b16 %v302, %v295
  %v394 = vpack.c.b16 %v303, %v296
  %v395 = vpack.c.b16 %v311, %v304
  %v396 = vpack.c.b16 %v312, %v305
  %v397 = vpack.c.b16 %v313, %v306
  %v398 = vpack.c.b16 %v314, %v307
  %v399 = vpack.c.b16 %v315, %v308
  %v400 = vpack.c.b16 %v316, %v309
  %v401 = vpack.c.b16 %v317, %v310
  %v402 = vpack.c.b16 %v325, %v318
  %v403 = vpack.c.b16 %v326, %v319
  %v404 = vpack.c.b16 %v327, %v320
  %v405 = vpack.c.b16 %v328, %v321
  %v406 = vpack.c.b16 %v329, %v322
  %v407 = vpack.c.b16 %v330, %v323
  %v408 = vpack.c.b16 %v331, %v324
  %v409 = vpack.c.b16 %v339, %v332
  %v410 = vpack.c.b16 %v340, %v333
  %v411 = vpack.c.b16 %v341, %v334
  %v412 = vpack.c.b16 %v342, %v335
  %v413 = vpack.c.b16 %v343, %v336
  %v414 = vpack.c.b16 %v344, %v337
  %v415 = vpack.c.b16 %v345, %v338
  %v416 = vpack.c.b16 %v353, %v346
  %v417 = vpack.c.b16 %v354, %v347
  %v418 = vpack.c.b16 %v355, %v348
  %v419 = vpack.c.b16 %v356, %v349
  %v420 = vpack.c.b16 %v357, %v350
  %v421 = vpack.c.b16 %v358, %v351
  %v422 = vpack.c.b16 %v359, %v352
  %v423 = vpack.c.b16 %v367, %v360
  %v424 = vpack.c.b16 %v368, %v361
  %v425 = vpack.c.b16 %v369, %v362
  %v426 = vpack.c.b16 %v370, %v363
  %v427 = vpack.c.b16 %v371, %v364
  %v428 = vpack.c.b16 %v372, %v365
  %v429 = vpack.c.b16 %v373, %v366
  %v598 = vunpack.c.l.b16 %v79
  %v599 = vunpack.c.l.b16 %v80
  %v600 = vunpack.c.l.b16 %v81
  %v601 = vunpack.c.l.b16 %v82
  %v602 = vunpack.c.l.b16 %v83
  %v603 = vunpack.c.l.b16 %v84
  %v604 = vunpack.c.l.b16 %v85
  %v605 = vunpack.c.l.b16 %v86
  %v606 = vunpack.c.l.b16 %v87
  %v607 = vunpack.c.l.b16 %v88
  %v608 = vunpack.c.l.b16 %v89
  %v609 = vunpack.c.l.b16 %v90
  %v610 = vunpack.c.l.b16 %v91
  %v611 = vunpack.c.l.b16 %v92
  %v612 = vunpack.c.l.b16 %v93
  %v613 = vunpack.c.l.b16 %v94
  %v614 = vunpack.c.l.b16 %v95
  %v615 = vunpack.c.l.b16 %v96
  %v616 = vunpack.c.l.b16 %v97
  %v617 = vunpack.c.l.b16 %v98
  %v618 = vunpack.c.l.b16 %v99
  %v619 = vunpack.c.l.b16 %v100
  %v620 = vunpack.c.l.b16 %v101
  %v621 = vunpack.c.l.b16 %v102
  %v622 = vunpack.c.l.b16 %v103
  %v623 = vunpack.c.l.b16 %v104
  %v624 = vunpack.c.l.b16 %v105
  %v625 = vunpack.c.l.b16 %v106
  %v626 = vunpack.c.l.b16 %v107
  %v627 = vunpack.c.l.b16 %v108
  %v628 = vunpack.c.l.b16 %v109
  %v629 = vunpack.c.l.b16 %v110
  %v630 = vunpack.c.l.b16 %v111
  %v631 = vunpack.c.l.b16 %v112
  %v632 = vunpack.c.l.b16 %v113
  %v633 = vunpack.c.l.b16 %v114
  %v634 = vunpack.c.l.b16 %v115
  %v635 = vunpack.c.l.b16 %v116
  %v636 = vunpack.c.l.b16 %v117
  %v637 = vunpack.c.l.b16 %v118
  %v638 = vunpack.c.l.b16 %v119
  %v639 = vunpack.c.l.b16 %v120
  %v640 = vunpack.c.l.b16 %v121
  %v641 = vunpack.c.l.b16 %v122
  %v642 = vunpack.c.l.b16 %v123
  %v643 = vunpack.c.l.b16 %v124
  %v644 = vunpack.c.l.b16 %v125
  %v645 = vunpack.c.l.b16 %v126
  %v646 = vunpack.c.l.b16 %v127
  %v647 = vunpack.c.l.b16 %v128
  %v648 = vunpack.c.l.b16 %v129
  %v649 = vunpack.c.l.b16 %v130
  %v650 = vunpack.c.l.b16 %v131
  %v651 = vunpack.c.l.b16 %v132
  %v652 = vunpack.c.l.b16 %v133
  %v653 = vunpack.c.l.b16 %v134
  %v654 = vunpack.c.l.b16 %v135
  %v655 = vunpack.c.l.b16 %v136
  %v656 = vunpack.c.l.b16 %v137
  %v657 = vunpack.c.l.b16 %v138
  %v658 = vunpack.c.l.b16 %v139
  %v659 = vunpack.c.l.b16 %v140
  %v660 = vunpack.c.l.b16 %v141
  %v661 = vunpack.c.l.b16 %v142
  %v662 = vunpack.c.l.b16 %v143
  %v663 = vunpack.c.l.b16 %v144
  %v664 = vunpack.c.l.b16 %v145
  %v665 = vunpack.c.l.b16 %v146
  %v666 = vunpack.c.l.b16 %v147
  %v667 = vunpack.c.l.b16 %v148
  %v668 = vunpack.c.l.b16 %v149
  %v669 = vunpack.c.l.b16 %v150
  %v670 = vunpack.c.l.b16 %v151
  %v671 = vunpack.c.l.b16 %v152
  %v672 = vunpack.c.l.b16 %v153
  %v673 = vunpack.c.l.b16 %v154
  %v674 = vunpack.c.l.b16 %v155
  %v675 = vunpack.c.l.b16 %v156
  %v676 = vunpack.c.l.b16 %v157
  %v677 = vunpack.c.l.b16 %v158
  %v678 = vunpack.c.l.b16 %v159
  %v679 = vunpack.c.l.b16 %v160
  %v680 = vunpack.c.l.b16 %v161
  %v681 = vunpack.c.l.b16 %v162
  %v682 = vunpack.c.l.b16 %v163
  %v683 = vunpack.c.l.b16 %v164
  %v684 = vunpack.c.l.b16 %v165
  %v685 = vunpack.c.l.b16 %v166
  %v686 = vunpack.c.l.b16 %v167
  %v687 = vunpack.c.l.b16 %v168
  %v688 = vunpack.c.l.b16 %v169
  %v689 = vunpack.c.l.b16 %v170
  %v690 = vunpack.c.l.b16 %v171
  %v691 = vunpack.c.l.b16 %v172
  %v692 = vunpack.c.l.b16 %v173
  %v693 = vunpack.c.l.b16 %v174
  %v694 = vunpack.c.l.b16 %v175
  %v695 = vunpack.c.l.b16 %v176
  %v696 = vunpack.c.l.b16 %v177
  %v697 = vunpack.c.l.b16 %v178
  %v698 = vunpack.c.l.b16 %v179
  %v699 = vunpack.c.l.b16 %v180
  %v700 = vunpack.c.l.b16 %v181
  %v701 = vunpack.c.l.b16 %v182
  %v702 = vunpack.c.l.b16 %v183
  %v703 = vunpack.c.l.b16 %v184
  %v704 = vunpack.c.l.b16 %v185
  %v705 = vunpack.c.l.b16 %v186
  %v706 = vunpack.c.l.b16 %v187
  %v707 = vunpack.c.l.b16 %v188
  %v708 = vunpack.c.l.b16 %v189
  %v709 = vunpack.c.l.b16 %v190
  %v710 = vpack.c.b16 %v599, %v598
  %v711 = vpack.c.b16 %v601, %v600
  %v712 = vpack.c.b16 %v603, %v602
  %v713 = vpack.c.b16 %v605, %v604
  %v714 = vpack.c.b16 %v607, %v606
  %v715 = vpack.c.b16 %v609, %v608
  %v716 = vpack.c.b16 %v611, %v610
  %v717 = vpack.c.b16 %v613, %v612
  %v718 = vpack.c.b16 %v615, %v614
  %v719 = vpack.c.b16 %v617, %v616
  %v720 = vpack.c.b16 %v619, %v618
  %v721 = vpack.c.b16 %v621, %v620
  %v722 = vpack.c.b16 %v623, %v622
  %v723 = vpack.c.b16 %v625, %v624
  %v724 = vpack.c.b16 %v627, %v626
  %v725 = vpack.c.b16 %v629, %v628
  %v726 = vpack.c.b16 %v631, %v630
  %v727 = vpack.c.b16 %v633, %v632
  %v728 = vpack.c.b16 %v635, %v634
  %v729 = vpack.c.b16 %v637, %v636
  %v730 = vpack.c.b16 %v639, %v638
  %v731 = vpack.c.b16 %v641, %v640
  %v732 = vpack.c.b16 %v643, %v642
  %v733 = vpack.c.b16 %v645, %v644
  %v734 = vpack.c.b16 %v647, %v646
  %v735 = vpack.c.b16 %v649, %v648
  %v736 = vpack.c.b16 %v651, %v650
  %v737 = vpack.c.b16 %v653, %v652
  %v738 = vpack.c.b16 %v655, %v654
  %v739 = vpack.c.b16 %v657, %v656
  %v740 = vpack.c.b16 %v659, %v658
  %v741 = vpack.c.b16 %v661, %v660
  %v742 = vpack.c.b16 %v663, %v662
  %v743 = vpack.c.b16 %v665, %v664
  %v744 = vpack.c.b16 %v667, %v666
  %v745 = vpack.c.b16 %v669, %v668
  %v746 = vpack.c.b16 %v671, %v670
  %v747 = vpack.c.b16 %v673, %v672
  %v748 = vpack.c.b16 %v675, %v674
  %v749 = vpack.c.b16 %v677, %v676
  %v750 = vpack.c.b16 %v679, %v678
  %v751 = vpack.c.b16 %v681, %v680
  %v752 = vpack.c.b16 %v683, %v682
  %v753 = vpack.c.b16 %v685, %v684
  %v754 = vpack.c.b16 %v687, %v686
  %v755 = vpack.c.b16 %v689, %v688
  %v756 = vpack.c.b16 %v691, %v690
  %v757 = vpack.c.b16 %v693, %v692
  %v758 = vpack.c.b16 %v695, %v694
  %v759 = vpack.c.b16 %v697, %v696
  %v760 = vpack.c.b16 %v699, %v698
  %v761 = vpack.c.b16 %v701, %v700
  %v762 = vpack.c.b16 %v703, %v702
  %v763 = vpack.c.b16 %v705, %v704
  %v764 = vpack.c.b16 %v707, %v706
  %v765 = vpack.c.b16 %v709, %v708
  %822 = vmatprep.subr.bf16.mxu0 0
  %823 = vmatpush1.bf16.msra.mxu0 %v717
  %824 = vmatprep.subr.bf16.mxu0 0
  %825 = vmatpush1.bf16.msra.mxu0 %v716
  %826 = vmatprep.subr.bf16.mxu0 0
  %827 = vmatpush1.bf16.msra.mxu0 %v715
  %828 = vmatprep.subr.bf16.mxu0 0
  %829 = vmatpush1.bf16.msra.mxu0 %v714
  %830 = vmatprep.subr.bf16.mxu0 0
  %831 = vmatpush1.bf16.msra.mxu0 %v713
  %832 = vmatprep.subr.bf16.mxu0 0
  %833 = vmatpush1.bf16.msra.mxu0 %v712
  %834 = vmatprep.subr.bf16.mxu0 0
  %835 = vmatpush1.bf16.msra.mxu0 %v711
  %836 = vmatprep.subr.bf16.mxu0 0
  %837 = vmatpush1.bf16.msra.mxu0 %v710
  %838 = vmatprep.subr.bf16.mxu0 0
  %839 = vmatpush2.bf16.msra.mxu0 %v725
  %840 = vmatprep.subr.bf16.mxu0 0
  %841 = vmatpush2.bf16.msra.mxu0 %v724
  %842 = vmatprep.subr.bf16.mxu0 0
  %843 = vmatpush2.bf16.msra.mxu0 %v723
  %844 = vmatprep.subr.bf16.mxu0 0
  %845 = vmatpush2.bf16.msra.mxu0 %v722
  %846 = vmatprep.subr.bf16.mxu0 0
  %847 = vmatpush2.bf16.msra.mxu0 %v721
  %848 = vmatprep.subr.bf16.mxu0 0
  %849 = vmatpush2.bf16.msra.mxu0 %v720
  %850 = vmatprep.subr.bf16.mxu0 0
  %851 = vmatpush2.bf16.msra.mxu0 %v719
  %852 = vmatprep.subr.bf16.mxu0 0
  %853 = vmatpush2.bf16.msra.mxu0 %v718
  %854 = vmatprep.mubr.bf16.mxu0 %v375
  %855 = vmatmul.mubr.bf16.gmra.mxu0 %v374
  %v856 = vpop.f32.mrf.mxu0
  %v857 = vadd.f32 %v196, %v856
  %v858 = vpop.f32.mrf.mxu0
  %v859 = vpop.f32.mrf.mxu0
  %v860 = vadd.f32 %v196, %v859
  %v861 = vpop.f32.mrf.mxu0
  %862 = vmatprep.mubr.bf16.mxu0 %v382
  %863 = vmatmul.mubr.bf16.gmra.mxu0 %v381
  %v864 = vpop.f32.mrf.mxu0
  %v865 = vadd.f32 %v196, %v864
  %v866 = vpop.f32.mrf.mxu0
  %v867 = vpop.f32.mrf.mxu0
  %v868 = vadd.f32 %v196, %v867
  %v869 = vpop.f32.mrf.mxu0
  %870 = vmatprep.mubr.bf16.mxu0 %v389
  %871 = vmatmul.mubr.bf16.gmra.mxu0 %v388
  %v872 = vpop.f32.mrf.mxu0
  %v873 = vadd.f32 %v196, %v872
  %v874 = vpop.f32.mrf.mxu0
  %v875 = vpop.f32.mrf.mxu0
  %v876 = vadd.f32 %v196, %v875
  %v877 = vpop.f32.mrf.mxu0
  %878 = vmatprep.mubr.bf16.mxu0 %v396
  %879 = vmatmul.mubr.bf16.gmra.mxu0 %v395
  %v880 = vpop.f32.mrf.mxu0
  %v881 = vadd.f32 %v196, %v880
  %v882 = vpop.f32.mrf.mxu0
  %v883 = vpop.f32.mrf.mxu0
  %v884 = vadd.f32 %v196, %v883
  %v885 = vpop.f32.mrf.mxu0
  %886 = vmatprep.mubr.bf16.mxu0 %v403
  %887 = vmatmul.mubr.bf16.gmra.mxu0 %v402
  %v888 = vpop.f32.mrf.mxu0
  %v889 = vadd.f32 %v196, %v888
  %v890 = vpop.f32.mrf.mxu0
  %v891 = vpop.f32.mrf.mxu0
  %v892 = vadd.f32 %v196, %v891
  %v893 = vpop.f32.mrf.mxu0
  %894 = vmatprep.mubr.bf16.mxu0 %v410
  %895 = vmatmul.mubr.bf16.gmra.mxu0 %v409
  %v896 = vpop.f32.mrf.mxu0
  %v897 = vadd.f32 %v196, %v896
  %v898 = vpop.f32.mrf.mxu0
  %v899 = vpop.f32.mrf.mxu0
  %v900 = vadd.f32 %v196, %v899
  %v901 = vpop.f32.mrf.mxu0
  %902 = vmatprep.mubr.bf16.mxu0 %v417
  %903 = vmatmul.mubr.bf16.gmra.mxu0 %v416
  %v904 = vpop.f32.mrf.mxu0
  %v905 = vadd.f32 %v196, %v904
  %v906 = vpop.f32.mrf.mxu0
  %v907 = vpop.f32.mrf.mxu0
  %v908 = vadd.f32 %v196, %v907
  %v909 = vpop.f32.mrf.mxu0
  %910 = vmatprep.mubr.bf16.mxu0 %v424
  %911 = vmatmul.mubr.bf16.gmra.mxu0 %v423
  %v912 = vpop.f32.mrf.mxu0
  %v913 = vadd.f32 %v196, %v912
  %v914 = vpop.f32.mrf.mxu0
  %v915 = vpop.f32.mrf.mxu0
  %v916 = vadd.f32 %v196, %v915
  %v917 = vpop.f32.mrf.mxu0
  %918 = vdwg.mxu0
  %919 = vmatprep.subr.bf16.mxu0 0
  %920 = vmatpush1.bf16.msra.mxu0 %v733
  %921 = vmatprep.subr.bf16.mxu0 0
  %922 = vmatpush1.bf16.msra.mxu0 %v732
  %923 = vmatprep.subr.bf16.mxu0 0
  %924 = vmatpush1.bf16.msra.mxu0 %v731
  %925 = vmatprep.subr.bf16.mxu0 0
  %926 = vmatpush1.bf16.msra.mxu0 %v730
  %927 = vmatprep.subr.bf16.mxu0 0
  %928 = vmatpush1.bf16.msra.mxu0 %v729
  %929 = vmatprep.subr.bf16.mxu0 0
  %930 = vmatpush1.bf16.msra.mxu0 %v728
  %931 = vmatprep.subr.bf16.mxu0 0
  %932 = vmatpush1.bf16.msra.mxu0 %v727
  %933 = vmatprep.subr.bf16.mxu0 0
  %934 = vmatpush1.bf16.msra.mxu0 %v726
  %935 = vmatprep.subr.bf16.mxu0 0
  %936 = vmatpush2.bf16.msra.mxu0 %v741
  %937 = vmatprep.subr.bf16.mxu0 0
  %938 = vmatpush2.bf16.msra.mxu0 %v740
  %939 = vmatprep.subr.bf16.mxu0 0
  %940 = vmatpush2.bf16.msra.mxu0 %v739
  %941 = vmatprep.subr.bf16.mxu0 0
  %942 = vmatpush2.bf16.msra.mxu0 %v738
  %943 = vmatprep.subr.bf16.mxu0 0
  %944 = vmatpush2.bf16.msra.mxu0 %v737
  %945 = vmatprep.subr.bf16.mxu0 0
  %946 = vmatpush2.bf16.msra.mxu0 %v736
  %947 = vmatprep.subr.bf16.mxu0 0
  %948 = vmatpush2.bf16.msra.mxu0 %v735
  %949 = vmatprep.subr.bf16.mxu0 0
  %950 = vmatpush2.bf16.msra.mxu0 %v734
  %951 = vmatprep.mubr.bf16.mxu0 %v377
  %952 = vmatmul.mubr.bf16.gmra.mxu0 %v376
  %v953 = vpop.f32.mrf.mxu0
  %v954 = vadd.f32 %v857, %v953
  %v955 = vpop.f32.mrf.mxu0
  %v956 = vpop.f32.mrf.mxu0
  %v957 = vadd.f32 %v860, %v956
  %v958 = vpop.f32.mrf.mxu0
  %959 = vmatprep.mubr.bf16.mxu0 %v384
  %960 = vmatmul.mubr.bf16.gmra.mxu0 %v383
  %v961 = vpop.f32.mrf.mxu0
  %v962 = vadd.f32 %v865, %v961
  %v963 = vpop.f32.mrf.mxu0
  %v964 = vpop.f32.mrf.mxu0
  %v965 = vadd.f32 %v868, %v964
  %v966 = vpop.f32.mrf.mxu0
  %967 = vmatprep.mubr.bf16.mxu0 %v391
  %968 = vmatmul.mubr.bf16.gmra.mxu0 %v390
  %v969 = vpop.f32.mrf.mxu0
  %v970 = vadd.f32 %v873, %v969
  %v971 = vpop.f32.mrf.mxu0
  %v972 = vpop.f32.mrf.mxu0
  %v973 = vadd.f32 %v876, %v972
  %v974 = vpop.f32.mrf.mxu0
  %975 = vmatprep.mubr.bf16.mxu0 %v398
  %976 = vmatmul.mubr.bf16.gmra.mxu0 %v397
  %v977 = vpop.f32.mrf.mxu0
  %v978 = vadd.f32 %v881, %v977
  %v979 = vpop.f32.mrf.mxu0
  %v980 = vpop.f32.mrf.mxu0
  %v981 = vadd.f32 %v884, %v980
  %v982 = vpop.f32.mrf.mxu0
  %983 = vmatprep.mubr.bf16.mxu0 %v405
  %984 = vmatmul.mubr.bf16.gmra.mxu0 %v404
  %v985 = vpop.f32.mrf.mxu0
  %v986 = vadd.f32 %v889, %v985
  %v987 = vpop.f32.mrf.mxu0
  %v988 = vpop.f32.mrf.mxu0
  %v989 = vadd.f32 %v892, %v988
  %v990 = vpop.f32.mrf.mxu0
  %991 = vmatprep.mubr.bf16.mxu0 %v412
  %992 = vmatmul.mubr.bf16.gmra.mxu0 %v411
  %v993 = vpop.f32.mrf.mxu0
  %v994 = vadd.f32 %v897, %v993
  %v995 = vpop.f32.mrf.mxu0
  %v996 = vpop.f32.mrf.mxu0
  %v997 = vadd.f32 %v900, %v996
  %v998 = vpop.f32.mrf.mxu0
  %999 = vmatprep.mubr.bf16.mxu0 %v419
  %1000 = vmatmul.mubr.bf16.gmra.mxu0 %v418
  %v1001 = vpop.f32.mrf.mxu0
  %v1002 = vadd.f32 %v905, %v1001
  %v1003 = vpop.f32.mrf.mxu0
  %v1004 = vpop.f32.mrf.mxu0
  %v1005 = vadd.f32 %v908, %v1004
  %v1006 = vpop.f32.mrf.mxu0
  %1007 = vmatprep.mubr.bf16.mxu0 %v426
  %1008 = vmatmul.mubr.bf16.gmra.mxu0 %v425
  %v1009 = vpop.f32.mrf.mxu0
  %v1010 = vadd.f32 %v913, %v1009
  %v1011 = vpop.f32.mrf.mxu0
  %v1012 = vpop.f32.mrf.mxu0
  %v1013 = vadd.f32 %v916, %v1012
  %v1014 = vpop.f32.mrf.mxu0
  %1015 = vdwg.mxu0
  %1016 = vmatprep.subr.bf16.mxu0 0
  %1017 = vmatpush1.bf16.msra.mxu0 %v749
  %1018 = vmatprep.subr.bf16.mxu0 0
  %1019 = vmatpush1.bf16.msra.mxu0 %v748
  %1020 = vmatprep.subr.bf16.mxu0 0
  %1021 = vmatpush1.bf16.msra.mxu0 %v747
  %1022 = vmatprep.subr.bf16.mxu0 0
  %1023 = vmatpush1.bf16.msra.mxu0 %v746
  %1024 = vmatprep.subr.bf16.mxu0 0
  %1025 = vmatpush1.bf16.msra.mxu0 %v745
  %1026 = vmatprep.subr.bf16.mxu0 0
  %1027 = vmatpush1.bf16.msra.mxu0 %v744
  %1028 = vmatprep.subr.bf16.mxu0 0
  %1029 = vmatpush1.bf16.msra.mxu0 %v743
  %1030 = vmatprep.subr.bf16.mxu0 0
  %1031 = vmatpush1.bf16.msra.mxu0 %v742
  %1032 = vmatprep.subr.bf16.mxu0 0
  %1033 = vmatpush2.bf16.msra.mxu0 %v757
  %1034 = vmatprep.subr.bf16.mxu0 0
  %1035 = vmatpush2.bf16.msra.mxu0 %v756
  %1036 = vmatprep.subr.bf16.mxu0 0
  %1037 = vmatpush2.bf16.msra.mxu0 %v755
  %1038 = vmatprep.subr.bf16.mxu0 0
  %1039 = vmatpush2.bf16.msra.mxu0 %v754
  %1040 = vmatprep.subr.bf16.mxu0 0
  %1041 = vmatpush2.bf16.msra.mxu0 %v753
  %1042 = vmatprep.subr.bf16.mxu0 0
  %1043 = vmatpush2.bf16.msra.mxu0 %v752
  %1044 = vmatprep.subr.bf16.mxu0 0
  %1045 = vmatpush2.bf16.msra.mxu0 %v751
  %1046 = vmatprep.subr.bf16.mxu0 0
  %1047 = vmatpush2.bf16.msra.mxu0 %v750
  %1048 = vmatprep.mubr.bf16.mxu0 %v379
  %1049 = vmatmul.mubr.bf16.gmra.mxu0 %v378
  %v1050 = vpop.f32.mrf.mxu0
  %v1051 = vadd.f32 %v954, %v1050
  %v1052 = vpop.f32.mrf.mxu0
  %v1053 = vpop.f32.mrf.mxu0
  %v1054 = vadd.f32 %v957, %v1053
  %v1055 = vpop.f32.mrf.mxu0
  %1056 = vmatprep.mubr.bf16.mxu0 %v386
  %1057 = vmatmul.mubr.bf16.gmra.mxu0 %v385
  %v1058 = vpop.f32.mrf.mxu0
  %v1059 = vadd.f32 %v962, %v1058
  %v1060 = vpop.f32.mrf.mxu0
  %v1061 = vpop.f32.mrf.mxu0
  %v1062 = vadd.f32 %v965, %v1061
  %v1063 = vpop.f32.mrf.mxu0
  %1064 = vmatprep.mubr.bf16.mxu0 %v393
  %1065 = vmatmul.mubr.bf16.gmra.mxu0 %v392
  %v1066 = vpop.f32.mrf.mxu0
  %v1067 = vadd.f32 %v970, %v1066
  %v1068 = vpop.f32.mrf.mxu0
  %v1069 = vpop.f32.mrf.mxu0
  %v1070 = vadd.f32 %v973, %v1069
  %v1071 = vpop.f32.mrf.mxu0
  %1072 = vmatprep.mubr.bf16.mxu0 %v400
  %1073 = vmatmul.mubr.bf16.gmra.mxu0 %v399
  %v1074 = vpop.f32.mrf.mxu0
  %v1075 = vadd.f32 %v978, %v1074
  %v1076 = vpop.f32.mrf.mxu0
  %v1077 = vpop.f32.mrf.mxu0
  %v1078 = vadd.f32 %v981, %v1077
  %v1079 = vpop.f32.mrf.mxu0
  %1080 = vmatprep.mubr.bf16.mxu0 %v407
  %1081 = vmatmul.mubr.bf16.gmra.mxu0 %v406
  %v1082 = vpop.f32.mrf.mxu0
  %v1083 = vadd.f32 %v986, %v1082
  %v1084 = vpop.f32.mrf.mxu0
  %v1085 = vpop.f32.mrf.mxu0
  %v1086 = vadd.f32 %v989, %v1085
  %v1087 = vpop.f32.mrf.mxu0
  %1088 = vmatprep.mubr.bf16.mxu0 %v414
  %1089 = vmatmul.mubr.bf16.gmra.mxu0 %v413
  %v1090 = vpop.f32.mrf.mxu0
  %v1091 = vadd.f32 %v994, %v1090
  %v1092 = vpop.f32.mrf.mxu0
  %v1093 = vpop.f32.mrf.mxu0
  %v1094 = vadd.f32 %v997, %v1093
  %v1095 = vpop.f32.mrf.mxu0
  %1096 = vmatprep.mubr.bf16.mxu0 %v421
  %1097 = vmatmul.mubr.bf16.gmra.mxu0 %v420
  %v1098 = vpop.f32.mrf.mxu0
  %v1099 = vadd.f32 %v1002, %v1098
  %v1100 = vpop.f32.mrf.mxu0
  %v1101 = vpop.f32.mrf.mxu0
  %v1102 = vadd.f32 %v1005, %v1101
  %v1103 = vpop.f32.mrf.mxu0
  %1104 = vmatprep.mubr.bf16.mxu0 %v428
  %1105 = vmatmul.mubr.bf16.gmra.mxu0 %v427
  %v1106 = vpop.f32.mrf.mxu0
  %v1107 = vadd.f32 %v1010, %v1106
  %v1108 = vpop.f32.mrf.mxu0
  %v1109 = vpop.f32.mrf.mxu0
  %v1110 = vadd.f32 %v1013, %v1109
  %v1111 = vpop.f32.mrf.mxu0
  %1112 = vdwg.mxu0
  %1113 = vmatprep.subr.bf16.mxu0 0
  %1114 = vmatpush1.bf16.msra.mxu0 %v765
  %1115 = vmatprep.subr.bf16.mxu0 0
  %1116 = vmatpush1.bf16.msra.mxu0 %v764
  %1117 = vmatprep.subr.bf16.mxu0 0
  %1118 = vmatpush1.bf16.msra.mxu0 %v763
  %1119 = vmatprep.subr.bf16.mxu0 0
  %1120 = vmatpush1.bf16.msra.mxu0 %v762
  %1121 = vmatprep.subr.bf16.mxu0 0
  %1122 = vmatpush1.bf16.msra.mxu0 %v761
  %1123 = vmatprep.subr.bf16.mxu0 0
  %1124 = vmatpush1.bf16.msra.mxu0 %v760
  %1125 = vmatprep.subr.bf16.mxu0 0
  %1126 = vmatpush1.bf16.msra.mxu0 %v759
  %1127 = vmatprep.subr.bf16.mxu0 0
  %1128 = vmatpush1.bf16.msra.mxu0 %v758
  %1129 = vmatprep.subr.bf16.mxu0 0
  %1130 = vmatpush2.bf16.msra.mxu0 0
  %1131 = vmatprep.subr.bf16.mxu0 0
  %1132 = vmatpush2.bf16.msra.mxu0 0
  %1133 = vmatprep.subr.bf16.mxu0 0
  %1134 = vmatpush2.bf16.msra.mxu0 0
  %1135 = vmatprep.subr.bf16.mxu0 0
  %1136 = vmatpush2.bf16.msra.mxu0 0
  %1137 = vmatprep.subr.bf16.mxu0 0
  %1138 = vmatpush2.bf16.msra.mxu0 0
  %1139 = vmatprep.subr.bf16.mxu0 0
  %1140 = vmatpush2.bf16.msra.mxu0 0
  %1141 = vmatprep.subr.bf16.mxu0 0
  %1142 = vmatpush2.bf16.msra.mxu0 0
  %1143 = vmatprep.subr.bf16.mxu0 0
  %1144 = vmatpush2.bf16.msra.mxu0 0
  %1145 = vmatprep.mubr.bf16.mxu0 0
  %1146 = vmatmul.mubr.bf16.gmra.mxu0 %v380
  %v1147 = vpop.f32.mrf.mxu0
  %v1148 = vadd.f32 %v1051, %v1147
  %v1149 = vpop.f32.mrf.mxu0
  %v1150 = vpop.f32.mrf.mxu0
  %v1151 = vadd.f32 %v1054, %v1150
  %v1152 = vpop.f32.mrf.mxu0
  %1153 = vmatprep.mubr.bf16.mxu0 0
  %1154 = vmatmul.mubr.bf16.gmra.mxu0 %v387
  %v1155 = vpop.f32.mrf.mxu0
  %v1156 = vadd.f32 %v1059, %v1155
  %v1157 = vpop.f32.mrf.mxu0
  %v1158 = vpop.f32.mrf.mxu0
  %v1159 = vadd.f32 %v1062, %v1158
  %v1160 = vpop.f32.mrf.mxu0
  %1161 = vmatprep.mubr.bf16.mxu0 0
  %1162 = vmatmul.mubr.bf16.gmra.mxu0 %v394
  %v1163 = vpop.f32.mrf.mxu0
  %v1164 = vadd.f32 %v1067, %v1163
  %v1165 = vpop.f32.mrf.mxu0
  %v1166 = vpop.f32.mrf.mxu0
  %v1167 = vadd.f32 %v1070, %v1166
  %v1168 = vpop.f32.mrf.mxu0
  %1169 = vmatprep.mubr.bf16.mxu0 0
  %1170 = vmatmul.mubr.bf16.gmra.mxu0 %v401
  %v1171 = vpop.f32.mrf.mxu0
  %v1172 = vadd.f32 %v1075, %v1171
  %v1173 = vpop.f32.mrf.mxu0
  %v1174 = vpop.f32.mrf.mxu0
  %v1175 = vadd.f32 %v1078, %v1174
  %v1176 = vpop.f32.mrf.mxu0
  %1177 = vmatprep.mubr.bf16.mxu0 0
  %1178 = vmatmul.mubr.bf16.gmra.mxu0 %v408
  %v1179 = vpop.f32.mrf.mxu0
  %v1180 = vadd.f32 %v1083, %v1179
  %v1181 = vpop.f32.mrf.mxu0
  %v1182 = vpop.f32.mrf.mxu0
  %v1183 = vadd.f32 %v1086, %v1182
  %v1184 = vpop.f32.mrf.mxu0
  %1185 = vmatprep.mubr.bf16.mxu0 0
  %1186 = vmatmul.mubr.bf16.gmra.mxu0 %v415
  %v1187 = vpop.f32.mrf.mxu0
  %v1188 = vadd.f32 %v1091, %v1187
  %v1189 = vpop.f32.mrf.mxu0
  %v1190 = vpop.f32.mrf.mxu0
  %v1191 = vadd.f32 %v1094, %v1190
  %v1192 = vpop.f32.mrf.mxu0
  %1193 = vmatprep.mubr.bf16.mxu0 0
  %1194 = vmatmul.mubr.bf16.gmra.mxu0 %v422
  %v1195 = vpop.f32.mrf.mxu0
  %v1196 = vadd.f32 %v1099, %v1195
  %v1197 = vpop.f32.mrf.mxu0
  %v1198 = vpop.f32.mrf.mxu0
  %v1199 = vadd.f32 %v1102, %v1198
  %v1200 = vpop.f32.mrf.mxu0
  %1201 = vmatprep.mubr.bf16.mxu0 0
  %1202 = vmatmul.mubr.bf16.gmra.mxu0 %v429
  %v1203 = vpop.f32.mrf.mxu0
  %v1204 = vadd.f32 %v1107, %v1203
  %v1205 = vpop.f32.mrf.mxu0
  %v1206 = vpop.f32.mrf.mxu0
  %v1207 = vadd.f32 %v1110, %v1206
  %v1208 = vpop.f32.mrf.mxu0
  %1209 = vdwg.mxu0
  %v1210 = vmax.f32 %v1148, 0.0
  %v1211 = vmax.f32 %v1151, 0.0
  %v1212 = vmax.f32 %v1156, 0.0
  %v1213 = vmax.f32 %v1159, 0.0
  %v1214 = vmax.f32 %v1164, 0.0
  %v1215 = vmax.f32 %v1167, 0.0
  %v1216 = vmax.f32 %v1172, 0.0
  %v1217 = vmax.f32 %v1175, 0.0
  %v1218 = vmax.f32 %v1180, 0.0
  %v1219 = vmax.f32 %v1183, 0.0
  %v1220 = vmax.f32 %v1188, 0.0
  %v1221 = vmax.f32 %v1191, 0.0
  %v1222 = vmax.f32 %v1196, 0.0
  %v1223 = vmax.f32 %v1199, 0.0
  %v1224 = vmax.f32 %v1204, 0.0
  %v1225 = vmax.f32 %v1207, 0.0
  %1226 = vst [vmem:[%s3] sm:$0xff] %v1210
  %1227 = vst [vmem:[%s3 + $0x8] sm:$0xff] %v1211
  %1228 = vst [vmem:[%s3 + $0x10] sm:$0xff] %v1212
  %1229 = vst [vmem:[%s3 + $0x18] sm:$0xff] %v1213
  %1230 = vst [vmem:[%s3 + $0x20] sm:$0xff] %v1214
  %1231 = vst [vmem:[%s3 + $0x28] sm:$0xff] %v1215
  %1232 = vst [vmem:[%s3 + $0x30] sm:$0xff] %v1216
  %1233 = vst [vmem:[%s3 + $0x38] sm:$0xff] %v1217
  %1234 = vst [vmem:[%s3 + $0x40] sm:$0xff] %v1218
  %1235 = vst [vmem:[%s3 + $0x48] sm:$0xff] %v1219
  %1236 = vst [vmem:[%s3 + $0x50] sm:$0xff] %v1220
  %1237 = vst [vmem:[%s3 + $0x58] sm:$0xff] %v1221
  %1238 = vst [vmem:[%s3 + $0x60] sm:$0xff] %v1222
  %1239 = vst [vmem:[%s3 + $0x68] sm:$0xff] %v1223
  %1240 = vst [vmem:[%s3 + $0x70] sm:$0xff] %v1224
  %1241 = vst [vmem:[%s3 + $0x78] sm:$0xff] %v1225
  // Predicated region
  $region14: #{cnn_forward.9} parent=0 // pred_check
    _
  $region15: #{cnn_forward.9} parent=0 // pred_check_branch
    %1243 = sbr.rel (0) target = $region17
  $region16: #{cnn_forward.9} parent=0 // pred_region
    _
  $region17: #{cnn_forward.9} parent=0 // pred_fallthru
    _
  // Predicated region
  $region18: #{cnn_forward.9} parent=0 // pred_check
    _
  $region19: #{cnn_forward.9} parent=0 // pred_check_branch
    %1245 = sbr.rel (0) target = $region21
  $region20: #{cnn_forward.9} parent=0 // pred_region
    _
  $region21: #{cnn_forward.9} parent=0 // pred_fallthru
    _

// kernel: cnn_forward.10
$region0: #{cnn_forward.10}
  #allocation0 [shape = 'u32[]', space=smem, size = 0x4, offset = 0x4, fixed_abs, tag = 'smem constant byte address 0x4 - core index']
  #allocation1 [shape = 'u32[144,128]{1,0:T(1,128)}', space=vmem, size = 0x12000, scoped, tag = 'internal scratch']
  %s0 = inlined_call_operand.vmem [shape: f32[8,2,4,256], index: 0, kind: input, shape index: {}]
  %s1 = inlined_call_operand.vmem [shape: f32[8,4,128], index: 1, kind: output, shape index: {}]
  %s2 = sld [smem:[#allocation0]]
  $region14: #{cnn_forward.10} parent=0
    _
  %s4 = ssub.s32 1, %s2
  %s5 = scalar_select 0, %s4, %s2
  // Predicated region
  $region2: #{cnn_forward.10} parent=0 // pred_check
    _
  $region3: #{cnn_forward.10} parent=0 // pred_check_branch
    %7 = sbr.rel (0) target = $region5
  $region4: #{cnn_forward.10} parent=0 // pred_region
    _
  $region5: #{cnn_forward.10} parent=0 // pred_fallthru
    _
  %v8 = vld [vmem:[%s0] sm:$0xff]
  %v9 = vld [vmem:[%s0 + $0x8] sm:$0xff]
  %v10 = vld [vmem:[%s0 + $0x10] sm:$0xff]
  %v11 = vld [vmem:[%s0 + $0x18] sm:$0xff]
  %v12 = vld [vmem:[%s0 + $0x20] sm:$0xff]
  %v13 = vld [vmem:[%s0 + $0x28] sm:$0xff]
  %v14 = vld [vmem:[%s0 + $0x30] sm:$0xff]
  %v15 = vld [vmem:[%s0 + $0x38] sm:$0xff]
  %v16 = vld [vmem:[%s0 + $0x40] sm:$0xff]
  %v17 = vld [vmem:[%s0 + $0x48] sm:$0xff]
  %v18 = vld [vmem:[%s0 + $0x50] sm:$0xff]
  %v19 = vld [vmem:[%s0 + $0x58] sm:$0xff]
  %v20 = vld [vmem:[%s0 + $0x60] sm:$0xff]
  %v21 = vld [vmem:[%s0 + $0x68] sm:$0xff]
  %v22 = vld [vmem:[%s0 + $0x70] sm:$0xff]
  %v23 = vld [vmem:[%s0 + $0x78] sm:$0xff]
  %v24 = vmax.f32 %v8, %v9
  %v25 = vmax.f32 %v10, %v11
  %v26 = vmax.f32 %v12, %v13
  %v27 = vmax.f32 %v14, %v15
  %v28 = vmax.f32 %v16, %v17
  %v29 = vmax.f32 %v18, %v19
  %v30 = vmax.f32 %v20, %v21
  %v31 = vmax.f32 %v22, %v23
  %v40 = vrot.slane %v24, 4
  %v41 = vrot.slane %v25, 4
  %v42 = vrot.slane %v26, 4
  %v43 = vrot.slane %v27, 4
  %v44 = vrot.slane %v28, 4
  %v45 = vrot.slane %v29, 4
  %v46 = vrot.slane %v30, 4
  %v47 = vrot.slane %v31, 4
  %v56 = vmax.f32 %v24, %v40
  %v57 = vmax.f32 %v25, %v41
  %v58 = vmax.f32 %v26, %v42
  %v59 = vmax.f32 %v27, %v43
  %v60 = vmax.f32 %v28, %v44
  %v61 = vmax.f32 %v29, %v45
  %v62 = vmax.f32 %v30, %v46
  %v63 = vmax.f32 %v31, %v47
  %64 = vst [vmem:[%s1] sm:$0xf] %v56
  %65 = vst [vmem:[%s1 + $0x4] sm:$0xf] %v57
  %66 = vst [vmem:[%s1 + $0x8] sm:$0xf] %v58
  %67 = vst [vmem:[%s1 + $0xc] sm:$0xf] %v59
  %68 = vst [vmem:[%s1 + $0x10] sm:$0xf] %v60
  %69 = vst [vmem:[%s1 + $0x14] sm:$0xf] %v61
  %70 = vst [vmem:[%s1 + $0x18] sm:$0xf] %v62
  %71 = vst [vmem:[%s1 + $0x1c] sm:$0xf] %v63
  // Predicated region
  $region6: #{cnn_forward.10} parent=0 // pred_check
    _
  $region7: #{cnn_forward.10} parent=0 // pred_check_branch
    %73 = sbr.rel (0) target = $region9
  $region8: #{cnn_forward.10} parent=0 // pred_region
    _
  $region9: #{cnn_forward.10} parent=0 // pred_fallthru
    _
  // Predicated region
  $region10: #{cnn_forward.10} parent=0 // pred_check
    _
  $region11: #{cnn_forward.10} parent=0 // pred_check_branch
    %75 = sbr.rel (0) target = $region13
  $region12: #{cnn_forward.10} parent=0 // pred_region
    _
  $region13: #{cnn_forward.10} parent=0 // pred_fallthru
    _

// kernel: cnn_forward.11
$region0: #{cnn_forward.11}
  #allocation0 [shape = 'u32[]', space=smem, size = 0x4, offset = 0x4, fixed_abs, tag = 'smem constant byte address 0x4 - core index']
  #allocation1 [shape = 'u32[144,128]{1,0:T(1,128)}', space=vmem, size = 0x12000, scoped, tag = 'internal scratch']
  %s0 = inlined_call_operand.vmem [shape: bf16[8,2048], index: 0, kind: input, shape index: {}]
  %s1 = inlined_call_operand.vmem [shape: bf16[2048,128], index: 1, kind: input, shape index: {}]
  %s2 = inlined_call_operand.vmem [shape: f32[1,128], index: 2, kind: input, shape index: {}]
  %s3 = inlined_call_operand.vmem [shape: bf16[128,128], index: 3, kind: input, shape index: {}]
  %s4 = inlined_call_operand.vmem [shape: f32[1,128], index: 4, kind: input, shape index: {}]
  %s5 = inlined_call_operand.vmem [shape: f32[8,128], index: 5, kind: output, shape index: {}]
  %s6 = sld [smem:[#allocation0]]
  $region30: #{cnn_forward.11} parent=0
    _
  %s8 = ssub.s32 1, %s6
  %s9 = scalar_select 0, %s8, %s6
  // Predicated region
  $region2: #{cnn_forward.11} parent=0 // pred_check
    _
  $region3: #{cnn_forward.11} parent=0 // pred_check_branch
    %11 = sbr.rel (0) target = $region5
  $region4: #{cnn_forward.11} parent=0 // pred_region
    _
  $region5: #{cnn_forward.11} parent=0 // pred_fallthru
    _
  // Predicated region
  $region6: #{cnn_forward.11} parent=0 // pred_check
    _
  $region7: #{cnn_forward.11} parent=0 // pred_check_branch
    %13 = sbr.rel (0) target = $region9
  $region8: #{cnn_forward.11} parent=0 // pred_region
    _
  $region9: #{cnn_forward.11} parent=0 // pred_fallthru
    _
  // Predicated region
  $region10: #{cnn_forward.11} parent=0 // pred_check
    _
  $region11: #{cnn_forward.11} parent=0 // pred_check_branch
    %15 = sbr.rel (0) target = $region13
  $region12: #{cnn_forward.11} parent=0 // pred_region
    _
  $region13: #{cnn_forward.11} parent=0 // pred_fallthru
    _
  // Predicated region
  $region14: #{cnn_forward.11} parent=0 // pred_check
    _
  $region15: #{cnn_forward.11} parent=0 // pred_check_branch
    %17 = sbr.rel (0) target = $region17
  $region16: #{cnn_forward.11} parent=0 // pred_region
    _
  $region17: #{cnn_forward.11} parent=0 // pred_fallthru
    _
  // Predicated region
  $region18: #{cnn_forward.11} parent=0 // pred_check
    _
  $region19: #{cnn_forward.11} parent=0 // pred_check_branch
    %19 = sbr.rel (0) target = $region21
  $region20: #{cnn_forward.11} parent=0 // pred_region
    _
  $region21: #{cnn_forward.11} parent=0 // pred_fallthru
    _
  %v21 = vld [vmem:[%s0] sm:$0xff]
  %v22 = vld [vmem:[%s0 + $0x8] sm:$0xff]
  %v23 = vld [vmem:[%s0 + $0x10] sm:$0xff]
  %v24 = vld [vmem:[%s0 + $0x18] sm:$0xff]
  %v25 = vld [vmem:[%s0 + $0x20] sm:$0xff]
  %v26 = vld [vmem:[%s0 + $0x28] sm:$0xff]
  %v27 = vld [vmem:[%s0 + $0x30] sm:$0xff]
  %v28 = vld [vmem:[%s0 + $0x38] sm:$0xff]
  %v29 = vld [vmem:[%s1] sm:$0xf]
  %v30 = vld [vmem:[%s1 + $0x4] sm:$0xf]
  %v31 = vld [vmem:[%s1 + $0x8] sm:$0xf]
  %v32 = vld [vmem:[%s1 + $0xc] sm:$0xf]
  %v33 = vld [vmem:[%s1 + $0x10] sm:$0xf]
  %v34 = vld [vmem:[%s1 + $0x14] sm:$0xf]
  %v35 = vld [vmem:[%s1 + $0x18] sm:$0xf]
  %v36 = vld [vmem:[%s1 + $0x1c] sm:$0xf]
  %v37 = vld [vmem:[%s1 + $0x20] sm:$0xf]
  %v38 = vld [vmem:[%s1 + $0x24] sm:$0xf]
  %v39 = vld [vmem:[%s1 + $0x28] sm:$0xf]
  %v40 = vld [vmem:[%s1 + $0x2c] sm:$0xf]
  %v41 = vld [vmem:[%s1 + $0x30] sm:$0xf]
  %v42 = vld [vmem:[%s1 + $0x34] sm:$0xf]
  %v43 = vld [vmem:[%s1 + $0x38] sm:$0xf]
  %v44 = vld [vmem:[%s1 + $0x3c] sm:$0xf]
  %v45 = vld [vmem:[%s1 + $0x40] sm:$0xf]
  %v46 = vld [vmem:[%s1 + $0x44] sm:$0xf]
  %v47 = vld [vmem:[%s1 + $0x48] sm:$0xf]
  %v48 = vld [vmem:[%s1 + $0x4c] sm:$0xf]
  %v49 = vld [vmem:[%s1 + $0x50] sm:$0xf]
  %v50 = vld [vmem:[%s1 + $0x54] sm:$0xf]
  %v51 = vld [vmem:[%s1 + $0x58] sm:$0xf]
  %v52 = vld [vmem:[%s1 + $0x5c] sm:$0xf]
  %v53 = vld [vmem:[%s1 + $0x60] sm:$0xf]
  %v54 = vld [vmem:[%s1 + $0x64] sm:$0xf]
  %v55 = vld [vmem:[%s1 + $0x68] sm:$0xf]
  %v56 = vld [vmem:[%s1 + $0x6c] sm:$0xf]
  %v57 = vld [vmem:[%s1 + $0x70] sm:$0xf]
  %v58 = vld [vmem:[%s1 + $0x74] sm:$0xf]
  %v59 = vld [vmem:[%s1 + $0x78] sm:$0xf]
  %v60 = vld [vmem:[%s1 + $0x7c] sm:$0xf]
  %v61 = vld [vmem:[%s1 + $0x80] sm:$0xf]
  %v62 = vld [vmem:[%s1 + $0x84] sm:$0xf]
  %v63 = vld [vmem:[%s1 + $0x88] sm:$0xf]
  %v64 = vld [vmem:[%s1 + $0x8c] sm:$0xf]
  %v65 = vld [vmem:[%s1 + $0x90] sm:$0xf]
  %v66 = vld [vmem:[%s1 + $0x94] sm:$0xf]
  %v67 = vld [vmem:[%s1 + $0x98] sm:$0xf]
  %v68 = vld [vmem:[%s1 + $0x9c] sm:$0xf]
  %v69 = vld [vmem:[%s1 + $0xa0] sm:$0xf]
  %v70 = vld [vmem:[%s1 + $0xa4] sm:$0xf]
  %v71 = vld [vmem:[%s1 + $0xa8] sm:$0xf]
  %v72 = vld [vmem:[%s1 + $0xac] sm:$0xf]
  %v73 = vld [vmem:[%s1 + $0xb0] sm:$0xf]
  %v74 = vld [vmem:[%s1 + $0xb4] sm:$0xf]
  %v75 = vld [vmem:[%s1 + $0xb8] sm:$0xf]
  %v76 = vld [vmem:[%s1 + $0xbc] sm:$0xf]
  %v77 = vld [vmem:[%s1 + $0xc0] sm:$0xf]
  %v78 = vld [vmem:[%s1 + $0xc4] sm:$0xf]
  %v79 = vld [vmem:[%s1 + $0xc8] sm:$0xf]
  %v80 = vld [vmem:[%s1 + $0xcc] sm:$0xf]
  %v81 = vld [vmem:[%s1 + $0xd0] sm:$0xf]
  %v82 = vld [vmem:[%s1 + $0xd4] sm:$0xf]
  %v83 = vld [vmem:[%s1 + $0xd8] sm:$0xf]
  %v84 = vld [vmem:[%s1 + $0xdc] sm:$0xf]
  %v85 = vld [vmem:[%s1 + $0xe0] sm:$0xf]
  %v86 = vld [vmem:[%s1 + $0xe4] sm:$0xf]
  %v87 = vld [vmem:[%s1 + $0xe8] sm:$0xf]
  %v88 = vld [vmem:[%s1 + $0xec] sm:$0xf]
  %v89 = vld [vmem:[%s1 + $0xf0] sm:$0xf]
  %v90 = vld [vmem:[%s1 + $0xf4] sm:$0xf]
  %v91 = vld [vmem:[%s1 + $0xf8] sm:$0xf]
  %v92 = vld [vmem:[%s1 + $0xfc] sm:$0xf]
  %v93 = vld [vmem:[%s1 + $0x100] sm:$0xf]
  %v94 = vld [vmem:[%s1 + $0x104] sm:$0xf]
  %v95 = vld [vmem:[%s1 + $0x108] sm:$0xf]
  %v96 = vld [vmem:[%s1 + $0x10c] sm:$0xf]
  %v97 = vld [vmem:[%s1 + $0x110] sm:$0xf]
  %v98 = vld [vmem:[%s1 + $0x114] sm:$0xf]
  %v99 = vld [vmem:[%s1 + $0x118] sm:$0xf]
  %v100 = vld [vmem:[%s1 + $0x11c] sm:$0xf]
  %v101 = vld [vmem:[%s1 + $0x120] sm:$0xf]
  %v102 = vld [vmem:[%s1 + $0x124] sm:$0xf]
  %v103 = vld [vmem:[%s1 + $0x128] sm:$0xf]
  %v104 = vld [vmem:[%s1 + $0x12c] sm:$0xf]
  %v105 = vld [vmem:[%s1 + $0x130] sm:$0xf]
  %v106 = vld [vmem:[%s1 + $0x134] sm:$0xf]
  %v107 = vld [vmem:[%s1 + $0x138] sm:$0xf]
  %v108 = vld [vmem:[%s1 + $0x13c] sm:$0xf]
  %v109 = vld [vmem:[%s1 + $0x140] sm:$0xf]
  %v110 = vld [vmem:[%s1 + $0x144] sm:$0xf]
  %v111 = vld [vmem:[%s1 + $0x148] sm:$0xf]
  %v112 = vld [vmem:[%s1 + $0x14c] sm:$0xf]
  %v113 = vld [vmem:[%s1 + $0x150] sm:$0xf]
  %v114 = vld [vmem:[%s1 + $0x154] sm:$0xf]
  %v115 = vld [vmem:[%s1 + $0x158] sm:$0xf]
  %v116 = vld [vmem:[%s1 + $0x15c] sm:$0xf]
  %v117 = vld [vmem:[%s1 + $0x160] sm:$0xf]
  %v118 = vld [vmem:[%s1 + $0x164] sm:$0xf]
  %v119 = vld [vmem:[%s1 + $0x168] sm:$0xf]
  %v120 = vld [vmem:[%s1 + $0x16c] sm:$0xf]
  %v121 = vld [vmem:[%s1 + $0x170] sm:$0xf]
  %v122 = vld [vmem:[%s1 + $0x174] sm:$0xf]
  %v123 = vld [vmem:[%s1 + $0x178] sm:$0xf]
  %v124 = vld [vmem:[%s1 + $0x17c] sm:$0xf]
  %v125 = vld [vmem:[%s1 + $0x180] sm:$0xf]
  %v126 = vld [vmem:[%s1 + $0x184] sm:$0xf]
  %v127 = vld [vmem:[%s1 + $0x188] sm:$0xf]
  %v128 = vld [vmem:[%s1 + $0x18c] sm:$0xf]
  %v129 = vld [vmem:[%s1 + $0x190] sm:$0xf]
  %v130 = vld [vmem:[%s1 + $0x194] sm:$0xf]
  %v131 = vld [vmem:[%s1 + $0x198] sm:$0xf]
  %v132 = vld [vmem:[%s1 + $0x19c] sm:$0xf]
  %v133 = vld [vmem:[%s1 + $0x1a0] sm:$0xf]
  %v134 = vld [vmem:[%s1 + $0x1a4] sm:$0xf]
  %v135 = vld [vmem:[%s1 + $0x1a8] sm:$0xf]
  %v136 = vld [vmem:[%s1 + $0x1ac] sm:$0xf]
  %v137 = vld [vmem:[%s1 + $0x1b0] sm:$0xf]
  %v138 = vld [vmem:[%s1 + $0x1b4] sm:$0xf]
  %v139 = vld [vmem:[%s1 + $0x1b8] sm:$0xf]
  %v140 = vld [vmem:[%s1 + $0x1bc] sm:$0xf]
  %v141 = vld [vmem:[%s1 + $0x1c0] sm:$0xf]
  %v142 = vld [vmem:[%s1 + $0x1c4] sm:$0xf]
  %v143 = vld [vmem:[%s1 + $0x1c8] sm:$0xf]
  %v144 = vld [vmem:[%s1 + $0x1cc] sm:$0xf]
  %v145 = vld [vmem:[%s1 + $0x1d0] sm:$0xf]
  %v146 = vld [vmem:[%s1 + $0x1d4] sm:$0xf]
  %v147 = vld [vmem:[%s1 + $0x1d8] sm:$0xf]
  %v148 = vld [vmem:[%s1 + $0x1dc] sm:$0xf]
  %v149 = vld [vmem:[%s1 + $0x1e0] sm:$0xf]
  %v150 = vld [vmem:[%s1 + $0x1e4] sm:$0xf]
  %v151 = vld [vmem:[%s1 + $0x1e8] sm:$0xf]
  %v152 = vld [vmem:[%s1 + $0x1ec] sm:$0xf]
  %v153 = vld [vmem:[%s1 + $0x1f0] sm:$0xf]
  %v154 = vld [vmem:[%s1 + $0x1f4] sm:$0xf]
  %v155 = vld [vmem:[%s1 + $0x1f8] sm:$0xf]
  %v156 = vld [vmem:[%s1 + $0x1fc] sm:$0xf]
  %v157 = vld [vmem:[%s1 + $0x200] sm:$0xf]
  %v158 = vld [vmem:[%s1 + $0x204] sm:$0xf]
  %v159 = vld [vmem:[%s1 + $0x208] sm:$0xf]
  %v160 = vld [vmem:[%s1 + $0x20c] sm:$0xf]
  %v161 = vld [vmem:[%s1 + $0x210] sm:$0xf]
  %v162 = vld [vmem:[%s1 + $0x214] sm:$0xf]
  %v163 = vld [vmem:[%s1 + $0x218] sm:$0xf]
  %v164 = vld [vmem:[%s1 + $0x21c] sm:$0xf]
  %v165 = vld [vmem:[%s1 + $0x220] sm:$0xf]
  %v166 = vld [vmem:[%s1 + $0x224] sm:$0xf]
  %v167 = vld [vmem:[%s1 + $0x228] sm:$0xf]
  %v168 = vld [vmem:[%s1 + $0x22c] sm:$0xf]
  %v169 = vld [vmem:[%s1 + $0x230] sm:$0xf]
  %v170 = vld [vmem:[%s1 + $0x234] sm:$0xf]
  %v171 = vld [vmem:[%s1 + $0x238] sm:$0xf]
  %v172 = vld [vmem:[%s1 + $0x23c] sm:$0xf]
  %v173 = vld [vmem:[%s1 + $0x240] sm:$0xf]
  %v174 = vld [vmem:[%s1 + $0x244] sm:$0xf]
  %v175 = vld [vmem:[%s1 + $0x248] sm:$0xf]
  %v176 = vld [vmem:[%s1 + $0x24c] sm:$0xf]
  %v177 = vld [vmem:[%s1 + $0x250] sm:$0xf]
  %v178 = vld [vmem:[%s1 + $0x254] sm:$0xf]
  %v179 = vld [vmem:[%s1 + $0x258] sm:$0xf]
  %v180 = vld [vmem:[%s1 + $0x25c] sm:$0xf]
  %v181 = vld [vmem:[%s1 + $0x260] sm:$0xf]
  %v182 = vld [vmem:[%s1 + $0x264] sm:$0xf]
  %v183 = vld [vmem:[%s1 + $0x268] sm:$0xf]
  %v184 = vld [vmem:[%s1 + $0x26c] sm:$0xf]
  %v185 = vld [vmem:[%s1 + $0x270] sm:$0xf]
  %v186 = vld [vmem:[%s1 + $0x274] sm:$0xf]
  %v187 = vld [vmem:[%s1 + $0x278] sm:$0xf]
  %v188 = vld [vmem:[%s1 + $0x27c] sm:$0xf]
  %v189 = vld [vmem:[%s1 + $0x280] sm:$0xf]
  %v190 = vld [vmem:[%s1 + $0x284] sm:$0xf]
  %v191 = vld [vmem:[%s1 + $0x288] sm:$0xf]
  %v192 = vld [vmem:[%s1 + $0x28c] sm:$0xf]
  %v193 = vld [vmem:[%s1 + $0x290] sm:$0xf]
  %v194 = vld [vmem:[%s1 + $0x294] sm:$0xf]
  %v195 = vld [vmem:[%s1 + $0x298] sm:$0xf]
  %v196 = vld [vmem:[%s1 + $0x29c] sm:$0xf]
  %v197 = vld [vmem:[%s1 + $0x2a0] sm:$0xf]
  %v198 = vld [vmem:[%s1 + $0x2a4] sm:$0xf]
  %v199 = vld [vmem:[%s1 + $0x2a8] sm:$0xf]
  %v200 = vld [vmem:[%s1 + $0x2ac] sm:$0xf]
  %v201 = vld [vmem:[%s1 + $0x2b0] sm:$0xf]
  %v202 = vld [vmem:[%s1 + $0x2b4] sm:$0xf]
  %v203 = vld [vmem:[%s1 + $0x2b8] sm:$0xf]
  %v204 = vld [vmem:[%s1 + $0x2bc] sm:$0xf]
  %v205 = vld [vmem:[%s1 + $0x2c0] sm:$0xf]
  %v206 = vld [vmem:[%s1 + $0x2c4] sm:$0xf]
  %v207 = vld [vmem:[%s1 + $0x2c8] sm:$0xf]
  %v208 = vld [vmem:[%s1 + $0x2cc] sm:$0xf]
  %v209 = vld [vmem:[%s1 + $0x2d0] sm:$0xf]
  %v210 = vld [vmem:[%s1 + $0x2d4] sm:$0xf]
  %v211 = vld [vmem:[%s1 + $0x2d8] sm:$0xf]
  %v212 = vld [vmem:[%s1 + $0x2dc] sm:$0xf]
  %v213 = vld [vmem:[%s1 + $0x2e0] sm:$0xf]
  %v214 = vld [vmem:[%s1 + $0x2e4] sm:$0xf]
  %v215 = vld [vmem:[%s1 + $0x2e8] sm:$0xf]
  %v216 = vld [vmem:[%s1 + $0x2ec] sm:$0xf]
  %v217 = vld [vmem:[%s1 + $0x2f0] sm:$0xf]
  %v218 = vld [vmem:[%s1 + $0x2f4] sm:$0xf]
  %v219 = vld [vmem:[%s1 + $0x2f8] sm:$0xf]
  %v220 = vld [vmem:[%s1 + $0x2fc] sm:$0xf]
  %v221 = vld [vmem:[%s1 + $0x300] sm:$0xf]
  %v222 = vld [vmem:[%s1 + $0x304] sm:$0xf]
  %v223 = vld [vmem:[%s1 + $0x308] sm:$0xf]
  %v224 = vld [vmem:[%s1 + $0x30c] sm:$0xf]
  %v225 = vld [vmem:[%s1 + $0x310] sm:$0xf]
  %v226 = vld [vmem:[%s1 + $0x314] sm:$0xf]
  %v227 = vld [vmem:[%s1 + $0x318] sm:$0xf]
  %v228 = vld [vmem:[%s1 + $0x31c] sm:$0xf]
  %v229 = vld [vmem:[%s1 + $0x320] sm:$0xf]
  %v230 = vld [vmem:[%s1 + $0x324] sm:$0xf]
  %v231 = vld [vmem:[%s1 + $0x328] sm:$0xf]
  %v232 = vld [vmem:[%s1 + $0x32c] sm:$0xf]
  %v233 = vld [vmem:[%s1 + $0x330] sm:$0xf]
  %v234 = vld [vmem:[%s1 + $0x334] sm:$0xf]
  %v235 = vld [vmem:[%s1 + $0x338] sm:$0xf]
  %v236 = vld [vmem:[%s1 + $0x33c] sm:$0xf]
  %v237 = vld [vmem:[%s1 + $0x340] sm:$0xf]
  %v238 = vld [vmem:[%s1 + $0x344] sm:$0xf]
  %v239 = vld [vmem:[%s1 + $0x348] sm:$0xf]
  %v240 = vld [vmem:[%s1 + $0x34c] sm:$0xf]
  %v241 = vld [vmem:[%s1 + $0x350] sm:$0xf]
  %v242 = vld [vmem:[%s1 + $0x354] sm:$0xf]
  %v243 = vld [vmem:[%s1 + $0x358] sm:$0xf]
  %v244 = vld [vmem:[%s1 + $0x35c] sm:$0xf]
  %v245 = vld [vmem:[%s1 + $0x360] sm:$0xf]
  %v246 = vld [vmem:[%s1 + $0x364] sm:$0xf]
  %v247 = vld [vmem:[%s1 + $0x368] sm:$0xf]
  %v248 = vld [vmem:[%s1 + $0x36c] sm:$0xf]
  %v249 = vld [vmem:[%s1 + $0x370] sm:$0xf]
  %v250 = vld [vmem:[%s1 + $0x374] sm:$0xf]
  %v251 = vld [vmem:[%s1 + $0x378] sm:$0xf]
  %v252 = vld [vmem:[%s1 + $0x37c] sm:$0xf]
  %v253 = vld [vmem:[%s1 + $0x380] sm:$0xf]
  %v254 = vld [vmem:[%s1 + $0x384] sm:$0xf]
  %v255 = vld [vmem:[%s1 + $0x388] sm:$0xf]
  %v256 = vld [vmem:[%s1 + $0x38c] sm:$0xf]
  %v257 = vld [vmem:[%s1 + $0x390] sm:$0xf]
  %v258 = vld [vmem:[%s1 + $0x394] sm:$0xf]
  %v259 = vld [vmem:[%s1 + $0x398] sm:$0xf]
  %v260 = vld [vmem:[%s1 + $0x39c] sm:$0xf]
  %v261 = vld [vmem:[%s1 + $0x3a0] sm:$0xf]
  %v262 = vld [vmem:[%s1 + $0x3a4] sm:$0xf]
  %v263 = vld [vmem:[%s1 + $0x3a8] sm:$0xf]
  %v264 = vld [vmem:[%s1 + $0x3ac] sm:$0xf]
  %v265 = vld [vmem:[%s1 + $0x3b0] sm:$0xf]
  %v266 = vld [vmem:[%s1 + $0x3b4] sm:$0xf]
  %v267 = vld [vmem:[%s1 + $0x3b8] sm:$0xf]
  %v268 = vld [vmem:[%s1 + $0x3bc] sm:$0xf]
  %v269 = vld [vmem:[%s1 + $0x3c0] sm:$0xf]
  %v270 = vld [vmem:[%s1 + $0x3c4] sm:$0xf]
  %v271 = vld [vmem:[%s1 + $0x3c8] sm:$0xf]
  %v272 = vld [vmem:[%s1 + $0x3cc] sm:$0xf]
  %v273 = vld [vmem:[%s1 + $0x3d0] sm:$0xf]
  %v274 = vld [vmem:[%s1 + $0x3d4] sm:$0xf]
  %v275 = vld [vmem:[%s1 + $0x3d8] sm:$0xf]
  %v276 = vld [vmem:[%s1 + $0x3dc] sm:$0xf]
  %v277 = vld [vmem:[%s1 + $0x3e0] sm:$0xf]
  %v278 = vld [vmem:[%s1 + $0x3e4] sm:$0xf]
  %v279 = vld [vmem:[%s1 + $0x3e8] sm:$0xf]
  %v280 = vld [vmem:[%s1 + $0x3ec] sm:$0xf]
  %v281 = vld [vmem:[%s1 + $0x3f0] sm:$0xf]
  %v282 = vld [vmem:[%s1 + $0x3f4] sm:$0xf]
  %v283 = vld [vmem:[%s1 + $0x3f8] sm:$0xf]
  %v284 = vld [vmem:[%s1 + $0x3fc] sm:$0xf]
  %v285 = vld [vmem:[%s2] sm:$0x1]
  %v287 = vlaneseq
  %v288 = vshrl.u32 %v287, 7
  %v289 = vsub.s32 0, %v288
  %v290 = vrot.slane %v285, %v289
  %v300 = vunpack.c.l.b16 %v21
  %v301 = vunpack.c.h.b16 %v21
  %v302 = vunpack.c.l.b16 %v22
  %v303 = vunpack.c.h.b16 %v22
  %v304 = vunpack.c.l.b16 %v23
  %v305 = vunpack.c.h.b16 %v23
  %v306 = vunpack.c.l.b16 %v24
  %v307 = vunpack.c.h.b16 %v24
  %v308 = vunpack.c.l.b16 %v25
  %v309 = vunpack.c.h.b16 %v25
  %v310 = vunpack.c.l.b16 %v26
  %v311 = vunpack.c.h.b16 %v26
  %v312 = vunpack.c.l.b16 %v27
  %v313 = vunpack.c.h.b16 %v27
  %v314 = vunpack.c.l.b16 %v28
  %v315 = vunpack.c.h.b16 %v28
  %v316 = vpack.c.b16 %v300, %v300
  %v317 = vpack.c.b16 %v301, %v301
  %v318 = vpack.c.b16 %v302, %v302
  %v319 = vpack.c.b16 %v303, %v303
  %v320 = vpack.c.b16 %v304, %v304
  %v321 = vpack.c.b16 %v305, %v305
  %v322 = vpack.c.b16 %v306, %v306
  %v323 = vpack.c.b16 %v307, %v307
  %v324 = vpack.c.b16 %v308, %v308
  %v325 = vpack.c.b16 %v309, %v309
  %v326 = vpack.c.b16 %v310, %v310
  %v327 = vpack.c.b16 %v311, %v311
  %v328 = vpack.c.b16 %v312, %v312
  %v329 = vpack.c.b16 %v313, %v313
  %v330 = vpack.c.b16 %v314, %v314
  %v331 = vpack.c.b16 %v315, %v315
  %v604 = vunpack.c.l.b16 %v29
  %v605 = vunpack.c.l.b16 %v30
  %v606 = vunpack.c.l.b16 %v31
  %v607 = vunpack.c.l.b16 %v32
  %v608 = vunpack.c.l.b16 %v33
  %v609 = vunpack.c.l.b16 %v34
  %v610 = vunpack.c.l.b16 %v35
  %v611 = vunpack.c.l.b16 %v36
  %v612 = vunpack.c.l.b16 %v37
  %v613 = vunpack.c.l.b16 %v38
  %v614 = vunpack.c.l.b16 %v39
  %v615 = vunpack.c.l.b16 %v40
  %v616 = vunpack.c.l.b16 %v41
  %v617 = vunpack.c.l.b16 %v42
  %v618 = vunpack.c.l.b16 %v43
  %v619 = vunpack.c.l.b16 %v44
  %v620 = vunpack.c.l.b16 %v45
  %v621 = vunpack.c.l.b16 %v46
  %v622 = vunpack.c.l.b16 %v47
  %v623 = vunpack.c.l.b16 %v48
  %v624 = vunpack.c.l.b16 %v49
  %v625 = vunpack.c.l.b16 %v50
  %v626 = vunpack.c.l.b16 %v51
  %v627 = vunpack.c.l.b16 %v52
  %v628 = vunpack.c.l.b16 %v53
  %v629 = vunpack.c.l.b16 %v54
  %v630 = vunpack.c.l.b16 %v55
  %v631 = vunpack.c.l.b16 %v56
  %v632 = vunpack.c.l.b16 %v57
  %v633 = vunpack.c.l.b16 %v58
  %v634 = vunpack.c.l.b16 %v59
  %v635 = vunpack.c.l.b16 %v60
  %v636 = vunpack.c.l.b16 %v61
  %v637 = vunpack.c.l.b16 %v62
  %v638 = vunpack.c.l.b16 %v63
  %v639 = vunpack.c.l.b16 %v64
  %v640 = vunpack.c.l.b16 %v65
  %v641 = vunpack.c.l.b16 %v66
  %v642 = vunpack.c.l.b16 %v67
  %v643 = vunpack.c.l.b16 %v68
  %v644 = vunpack.c.l.b16 %v69
  %v645 = vunpack.c.l.b16 %v70
  %v646 = vunpack.c.l.b16 %v71
  %v647 = vunpack.c.l.b16 %v72
  %v648 = vunpack.c.l.b16 %v73
  %v649 = vunpack.c.l.b16 %v74
  %v650 = vunpack.c.l.b16 %v75
  %v651 = vunpack.c.l.b16 %v76
  %v652 = vunpack.c.l.b16 %v77
  %v653 = vunpack.c.l.b16 %v78
  %v654 = vunpack.c.l.b16 %v79
  %v655 = vunpack.c.l.b16 %v80
  %v656 = vunpack.c.l.b16 %v81
  %v657 = vunpack.c.l.b16 %v82
  %v658 = vunpack.c.l.b16 %v83
  %v659 = vunpack.c.l.b16 %v84
  %v660 = vunpack.c.l.b16 %v85
  %v661 = vunpack.c.l.b16 %v86
  %v662 = vunpack.c.l.b16 %v87
  %v663 = vunpack.c.l.b16 %v88
  %v664 = vunpack.c.l.b16 %v89
  %v665 = vunpack.c.l.b16 %v90
  %v666 = vunpack.c.l.b16 %v91
  %v667 = vunpack.c.l.b16 %v92
  %v668 = vunpack.c.l.b16 %v93
  %v669 = vunpack.c.l.b16 %v94
  %v670 = vunpack.c.l.b16 %v95
  %v671 = vunpack.c.l.b16 %v96
  %v672 = vunpack.c.l.b16 %v97
  %v673 = vunpack.c.l.b16 %v98
  %v674 = vunpack.c.l.b16 %v99
  %v675 = vunpack.c.l.b16 %v100
  %v676 = vunpack.c.l.b16 %v101
  %v677 = vunpack.c.l.b16 %v102
  %v678 = vunpack.c.l.b16 %v103
  %v679 = vunpack.c.l.b16 %v104
  %v680 = vunpack.c.l.b16 %v105
  %v681 = vunpack.c.l.b16 %v106
  %v682 = vunpack.c.l.b16 %v107
  %v683 = vunpack.c.l.b16 %v108
  %v684 = vunpack.c.l.b16 %v109
  %v685 = vunpack.c.l.b16 %v110
  %v686 = vunpack.c.l.b16 %v111
  %v687 = vunpack.c.l.b16 %v112
  %v688 = vunpack.c.l.b16 %v113
  %v689 = vunpack.c.l.b16 %v114
  %v690 = vunpack.c.l.b16 %v115
  %v691 = vunpack.c.l.b16 %v116
  %v692 = vunpack.c.l.b16 %v117
  %v693 = vunpack.c.l.b16 %v118
  %v694 = vunpack.c.l.b16 %v119
  %v695 = vunpack.c.l.b16 %v120
  %v696 = vunpack.c.l.b16 %v121
  %v697 = vunpack.c.l.b16 %v122
  %v698 = vunpack.c.l.b16 %v123
  %v699 = vunpack.c.l.b16 %v124
  %v700 = vunpack.c.l.b16 %v125
  %v701 = vunpack.c.l.b16 %v126
  %v702 = vunpack.c.l.b16 %v127
  %v703 = vunpack.c.l.b16 %v128
  %v704 = vunpack.c.l.b16 %v129
  %v705 = vunpack.c.l.b16 %v130
  %v706 = vunpack.c.l.b16 %v131
  %v707 = vunpack.c.l.b16 %v132
  %v708 = vunpack.c.l.b16 %v133
  %v709 = vunpack.c.l.b16 %v134
  %v710 = vunpack.c.l.b16 %v135
  %v711 = vunpack.c.l.b16 %v136
  %v712 = vunpack.c.l.b16 %v137
  %v713 = vunpack.c.l.b16 %v138
  %v714 = vunpack.c.l.b16 %v139
  %v715 = vunpack.c.l.b16 %v140
  %v716 = vunpack.c.l.b16 %v141
  %v717 = vunpack.c.l.b16 %v142
  %v718 = vunpack.c.l.b16 %v143
  %v719 = vunpack.c.l.b16 %v144
  %v720 = vunpack.c.l.b16 %v145
  %v721 = vunpack.c.l.b16 %v146
  %v722 = vunpack.c.l.b16 %v147
  %v723 = vunpack.c.l.b16 %v148
  %v724 = vunpack.c.l.b16 %v149
  %v725 = vunpack.c.l.b16 %v150
  %v726 = vunpack.c.l.b16 %v151
  %v727 = vunpack.c.l.b16 %v152
  %v728 = vunpack.c.l.b16 %v153
  %v729 = vunpack.c.l.b16 %v154
  %v730 = vunpack.c.l.b16 %v155
  %v731 = vunpack.c.l.b16 %v156
  %v732 = vunpack.c.l.b16 %v157
  %v733 = vunpack.c.l.b16 %v158
  %v734 = vunpack.c.l.b16 %v159
  %v735 = vunpack.c.l.b16 %v160
  %v736 = vunpack.c.l.b16 %v161
  %v737 = vunpack.c.l.b16 %v162
  %v738 = vunpack.c.l.b16 %v163
  %v739 = vunpack.c.l.b16 %v164
  %v740 = vunpack.c.l.b16 %v165
  %v741 = vunpack.c.l.b16 %v166
  %v742 = vunpack.c.l.b16 %v167
  %v743 = vunpack.c.l.b16 %v168
  %v744 = vunpack.c.l.b16 %v169
  %v745 = vunpack.c.l.b16 %v170
  %v746 = vunpack.c.l.b16 %v171
  %v747 = vunpack.c.l.b16 %v172
  %v748 = vunpack.c.l.b16 %v173
  %v749 = vunpack.c.l.b16 %v174
  %v750 = vunpack.c.l.b16 %v175
  %v751 = vunpack.c.l.b16 %v176
  %v752 = vunpack.c.l.b16 %v177
  %v753 = vunpack.c.l.b16 %v178
  %v754 = vunpack.c.l.b16 %v179
  %v755 = vunpack.c.l.b16 %v180
  %v756 = vunpack.c.l.b16 %v181
  %v757 = vunpack.c.l.b16 %v182
  %v758 = vunpack.c.l.b16 %v183
  %v759 = vunpack.c.l.b16 %v184
  %v760 = vunpack.c.l.b16 %v185
  %v761 = vunpack.c.l.b16 %v186
  %v762 = vunpack.c.l.b16 %v187
  %v763 = vunpack.c.l.b16 %v188
  %v764 = vunpack.c.l.b16 %v189
  %v765 = vunpack.c.l.b16 %v190
  %v766 = vunpack.c.l.b16 %v191
  %v767 = vunpack.c.l.b16 %v192
  %v768 = vunpack.c.l.b16 %v193
  %v769 = vunpack.c.l.b16 %v194
  %v770 = vunpack.c.l.b16 %v195
  %v771 = vunpack.c.l.b16 %v196
  %v772 = vunpack.c.l.b16 %v197
  %v773 = vunpack.c.l.b16 %v198
  %v774 = vunpack.c.l.b16 %v199
  %v775 = vunpack.c.l.b16 %v200
  %v776 = vunpack.c.l.b16 %v201
  %v777 = vunpack.c.l.b16 %v202
  %v778 = vunpack.c.l.b16 %v203
  %v779 = vunpack.c.l.b16 %v204
  %v780 = vunpack.c.l.b16 %v205
  %v781 = vunpack.c.l.b16 %v206
  %v782 = vunpack.c.l.b16 %v207
  %v783 = vunpack.c.l.b16 %v208
  %v784 = vunpack.c.l.b16 %v209
  %v785 = vunpack.c.l.b16 %v210
  %v786 = vunpack.c.l.b16 %v211
  %v787 = vunpack.c.l.b16 %v212
  %v788 = vunpack.c.l.b16 %v213
  %v789 = vunpack.c.l.b16 %v214
  %v790 = vunpack.c.l.b16 %v215
  %v791 = vunpack.c.l.b16 %v216
  %v792 = vunpack.c.l.b16 %v217
  %v793 = vunpack.c.l.b16 %v218
  %v794 = vunpack.c.l.b16 %v219
  %v795 = vunpack.c.l.b16 %v220
  %v796 = vunpack.c.l.b16 %v221
  %v797 = vunpack.c.l.b16 %v222
  %v798 = vunpack.c.l.b16 %v223
  %v799 = vunpack.c.l.b16 %v224
  %v800 = vunpack.c.l.b16 %v225
  %v801 = vunpack.c.l.b16 %v226
  %v802 = vunpack.c.l.b16 %v227
  %v803 = vunpack.c.l.b16 %v228
  %v804 = vunpack.c.l.b16 %v229
  %v805 = vunpack.c.l.b16 %v230
  %v806 = vunpack.c.l.b16 %v231
  %v807 = vunpack.c.l.b16 %v232
  %v808 = vunpack.c.l.b16 %v233
  %v809 = vunpack.c.l.b16 %v234
  %v810 = vunpack.c.l.b16 %v235
  %v811 = vunpack.c.l.b16 %v236
  %v812 = vunpack.c.l.b16 %v237
  %v813 = vunpack.c.l.b16 %v238
  %v814 = vunpack.c.l.b16 %v239
  %v815 = vunpack.c.l.b16 %v240
  %v816 = vunpack.c.l.b16 %v241
  %v817 = vunpack.c.l.b16 %v242
  %v818 = vunpack.c.l.b16 %v243
  %v819 = vunpack.c.l.b16 %v244
  %v820 = vunpack.c.l.b16 %v245
  %v821 = vunpack.c.l.b16 %v246
  %v822 = vunpack.c.l.b16 %v247
  %v823 = vunpack.c.l.b16 %v248
  %v824 = vunpack.c.l.b16 %v249
  %v825 = vunpack.c.l.b16 %v250
  %v826 = vunpack.c.l.b16 %v251
  %v827 = vunpack.c.l.b16 %v252
  %v828 = vunpack.c.l.b16 %v253
  %v829 = vunpack.c.l.b16 %v254
  %v830 = vunpack.c.l.b16 %v255
  %v831 = vunpack.c.l.b16 %v256
  %v832 = vunpack.c.l.b16 %v257
  %v833 = vunpack.c.l.b16 %v258
  %v834 = vunpack.c.l.b16 %v259
  %v835 = vunpack.c.l.b16 %v260
  %v836 = vunpack.c.l.b16 %v261
  %v837 = vunpack.c.l.b16 %v262
  %v838 = vunpack.c.l.b16 %v263
  %v839 = vunpack.c.l.b16 %v264
  %v840 = vunpack.c.l.b16 %v265
  %v841 = vunpack.c.l.b16 %v266
  %v842 = vunpack.c.l.b16 %v267
  %v843 = vunpack.c.l.b16 %v268
  %v844 = vunpack.c.l.b16 %v269
  %v845 = vunpack.c.l.b16 %v270
  %v846 = vunpack.c.l.b16 %v271
  %v847 = vunpack.c.l.b16 %v272
  %v848 = vunpack.c.l.b16 %v273
  %v849 = vunpack.c.l.b16 %v274
  %v850 = vunpack.c.l.b16 %v275
  %v851 = vunpack.c.l.b16 %v276
  %v852 = vunpack.c.l.b16 %v277
  %v853 = vunpack.c.l.b16 %v278
  %v854 = vunpack.c.l.b16 %v279
  %v855 = vunpack.c.l.b16 %v280
  %v856 = vunpack.c.l.b16 %v281
  %v857 = vunpack.c.l.b16 %v282
  %v858 = vunpack.c.l.b16 %v283
  %v859 = vunpack.c.l.b16 %v284
  %v860 = vpack.c.b16 %v605, %v604
  %v861 = vpack.c.b16 %v607, %v606
  %v862 = vpack.c.b16 %v609, %v608
  %v863 = vpack.c.b16 %v611, %v610
  %v864 = vpack.c.b16 %v613, %v612
  %v865 = vpack.c.b16 %v615, %v614
  %v866 = vpack.c.b16 %v617, %v616
  %v867 = vpack.c.b16 %v619, %v618
  %v868 = vpack.c.b16 %v621, %v620
  %v869 = vpack.c.b16 %v623, %v622
  %v870 = vpack.c.b16 %v625, %v624
  %v871 = vpack.c.b16 %v627, %v626
  %v872 = vpack.c.b16 %v629, %v628
  %v873 = vpack.c.b16 %v631, %v630
  %v874 = vpack.c.b16 %v633, %v632
  %v875 = vpack.c.b16 %v635, %v634
  %v876 = vpack.c.b16 %v637, %v636
  %v877 = vpack.c.b16 %v639, %v638
  %v878 = vpack.c.b16 %v641, %v640
  %v879 = vpack.c.b16 %v643, %v642
  %v880 = vpack.c.b16 %v645, %v644
  %v881 = vpack.c.b16 %v647, %v646
  %v882 = vpack.c.b16 %v649, %v648
  %v883 = vpack.c.b16 %v651, %v650
  %v884 = vpack.c.b16 %v653, %v652
  %v885 = vpack.c.b16 %v655, %v654
  %v886 = vpack.c.b16 %v657, %v656
  %v887 = vpack.c.b16 %v659, %v658
  %v888 = vpack.c.b16 %v661, %v660
  %v889 = vpack.c.b16 %v663, %v662
  %v890 = vpack.c.b16 %v665, %v664
  %v891 = vpack.c.b16 %v667, %v666
  %v892 = vpack.c.b16 %v669, %v668
  %v893 = vpack.c.b16 %v671, %v670
  %v894 = vpack.c.b16 %v673, %v672
  %v895 = vpack.c.b16 %v675, %v674
  %v896 = vpack.c.b16 %v677, %v676
  %v897 = vpack.c.b16 %v679, %v678
  %v898 = vpack.c.b16 %v681, %v680
  %v899 = vpack.c.b16 %v683, %v682
  %v900 = vpack.c.b16 %v685, %v684
  %v901 = vpack.c.b16 %v687, %v686
  %v902 = vpack.c.b16 %v689, %v688
  %v903 = vpack.c.b16 %v691, %v690
  %v904 = vpack.c.b16 %v693, %v692
  %v905 = vpack.c.b16 %v695, %v694
  %v906 = vpack.c.b16 %v697, %v696
  %v907 = vpack.c.b16 %v699, %v698
  %v908 = vpack.c.b16 %v701, %v700
  %v909 = vpack.c.b16 %v703, %v702
  %v910 = vpack.c.b16 %v705, %v704
  %v911 = vpack.c.b16 %v707, %v706
  %v912 = vpack.c.b16 %v709, %v708
  %v913 = vpack.c.b16 %v711, %v710
  %v914 = vpack.c.b16 %v713, %v712
  %v915 = vpack.c.b16 %v715, %v714
  %v916 = vpack.c.b16 %v717, %v716
  %v917 = vpack.c.b16 %v719, %v718
  %v918 = vpack.c.b16 %v721, %v720
  %v919 = vpack.c.b16 %v723, %v722
  %v920 = vpack.c.b16 %v725, %v724
  %v921 = vpack.c.b16 %v727, %v726
  %v922 = vpack.c.b16 %v729, %v728
  %v923 = vpack.c.b16 %v731, %v730
  %v924 = vpack.c.b16 %v733, %v732
  %v925 = vpack.c.b16 %v735, %v734
  %v926 = vpack.c.b16 %v737, %v736
  %v927 = vpack.c.b16 %v739, %v738
  %v928 = vpack.c.b16 %v741, %v740
  %v929 = vpack.c.b16 %v743, %v742
  %v930 = vpack.c.b16 %v745, %v744
  %v931 = vpack.c.b16 %v747, %v746
  %v932 = vpack.c.b16 %v749, %v748
  %v933 = vpack.c.b16 %v751, %v750
  %v934 = vpack.c.b16 %v753, %v752
  %v935 = vpack.c.b16 %v755, %v754
  %v936 = vpack.c.b16 %v757, %v756
  %v937 = vpack.c.b16 %v759, %v758
  %v938 = vpack.c.b16 %v761, %v760
  %v939 = vpack.c.b16 %v763, %v762
  %v940 = vpack.c.b16 %v765, %v764
  %v941 = vpack.c.b16 %v767, %v766
  %v942 = vpack.c.b16 %v769, %v768
  %v943 = vpack.c.b16 %v771, %v770
  %v944 = vpack.c.b16 %v773, %v772
  %v945 = vpack.c.b16 %v775, %v774
  %v946 = vpack.c.b16 %v777, %v776
  %v947 = vpack.c.b16 %v779, %v778
  %v948 = vpack.c.b16 %v781, %v780
  %v949 = vpack.c.b16 %v783, %v782
  %v950 = vpack.c.b16 %v785, %v784
  %v951 = vpack.c.b16 %v787, %v786
  %v952 = vpack.c.b16 %v789, %v788
  %v953 = vpack.c.b16 %v791, %v790
  %v954 = vpack.c.b16 %v793, %v792
  %v955 = vpack.c.b16 %v795, %v794
  %v956 = vpack.c.b16 %v797, %v796
  %v957 = vpack.c.b16 %v799, %v798
  %v958 = vpack.c.b16 %v801, %v800
  %v959 = vpack.c.b16 %v803, %v802
  %v960 = vpack.c.b16 %v805, %v804
  %v961 = vpack.c.b16 %v807, %v806
  %v962 = vpack.c.b16 %v809, %v808
  %v963 = vpack.c.b16 %v811, %v810
  %v964 = vpack.c.b16 %v813, %v812
  %v965 = vpack.c.b16 %v815, %v814
  %v966 = vpack.c.b16 %v817, %v816
  %v967 = vpack.c.b16 %v819, %v818
  %v968 = vpack.c.b16 %v821, %v820
  %v969 = vpack.c.b16 %v823, %v822
  %v970 = vpack.c.b16 %v825, %v824
  %v971 = vpack.c.b16 %v827, %v826
  %v972 = vpack.c.b16 %v829, %v828
  %v973 = vpack.c.b16 %v831, %v830
  %v974 = vpack.c.b16 %v833, %v832
  %v975 = vpack.c.b16 %v835, %v834
  %v976 = vpack.c.b16 %v837, %v836
  %v977 = vpack.c.b16 %v839, %v838
  %v978 = vpack.c.b16 %v841, %v840
  %v979 = vpack.c.b16 %v843, %v842
  %v980 = vpack.c.b16 %v845, %v844
  %v981 = vpack.c.b16 %v847, %v846
  %v982 = vpack.c.b16 %v849, %v848
  %v983 = vpack.c.b16 %v851, %v850
  %v984 = vpack.c.b16 %v853, %v852
  %v985 = vpack.c.b16 %v855, %v854
  %v986 = vpack.c.b16 %v857, %v856
  %v987 = vpack.c.b16 %v859, %v858
  %1116 = vmatprep.subr.bf16.mxu0 0
  %1117 = vmatpush1.bf16.msra.mxu0 %v867
  %1118 = vmatprep.subr.bf16.mxu0 0
  %1119 = vmatpush1.bf16.msra.mxu0 %v866
  %1120 = vmatprep.subr.bf16.mxu0 0
  %1121 = vmatpush1.bf16.msra.mxu0 %v865
  %1122 = vmatprep.subr.bf16.mxu0 0
  %1123 = vmatpush1.bf16.msra.mxu0 %v864
  %1124 = vmatprep.subr.bf16.mxu0 0
  %1125 = vmatpush1.bf16.msra.mxu0 %v863
  %1126 = vmatprep.subr.bf16.mxu0 0
  %1127 = vmatpush1.bf16.msra.mxu0 %v862
  %1128 = vmatprep.subr.bf16.mxu0 0
  %1129 = vmatpush1.bf16.msra.mxu0 %v861
  %1130 = vmatprep.subr.bf16.mxu0 0
  %1131 = vmatpush1.bf16.msra.mxu0 %v860
  %1132 = vmatprep.subr.bf16.mxu0 0
  %1133 = vmatpush2.bf16.msra.mxu0 %v875
  %1134 = vmatprep.subr.bf16.mxu0 0
  %1135 = vmatpush2.bf16.msra.mxu0 %v874
  %1136 = vmatprep.subr.bf16.mxu0 0
  %1137 = vmatpush2.bf16.msra.mxu0 %v873
  %1138 = vmatprep.subr.bf16.mxu0 0
  %1139 = vmatpush2.bf16.msra.mxu0 %v872
  %1140 = vmatprep.subr.bf16.mxu0 0
  %1141 = vmatpush2.bf16.msra.mxu0 %v871
  %1142 = vmatprep.subr.bf16.mxu0 0
  %1143 = vmatpush2.bf16.msra.mxu0 %v870
  %1144 = vmatprep.subr.bf16.mxu0 0
  %1145 = vmatpush2.bf16.msra.mxu0 %v869
  %1146 = vmatprep.subr.bf16.mxu0 0
  %1147 = vmatpush2.bf16.msra.mxu0 %v868
  %1148 = vmatprep.mubr.bf16.mxu0 %v317
  %1149 = vmatmul.mubr.bf16.gmra.mxu0 %v316
  %v1150 = vpop.f32.mrf.mxu0
  %v1151 = vadd.f32 %v290, %v1150
  %v1152 = vpop.f32.mrf.mxu0
  %v1153 = vpop.f32.mrf.mxu0
  %v1154 = vpop.f32.mrf.mxu0
  %1155 = vdwg.mxu0
  %1156 = vmatprep.subr.bf16.mxu0 0
  %1157 = vmatpush1.bf16.msra.mxu0 %v883
  %1158 = vmatprep.subr.bf16.mxu0 0
  %1159 = vmatpush1.bf16.msra.mxu0 %v882
  %1160 = vmatprep.subr.bf16.mxu0 0
  %1161 = vmatpush1.bf16.msra.mxu0 %v881
  %1162 = vmatprep.subr.bf16.mxu0 0
  %1163 = vmatpush1.bf16.msra.mxu0 %v880
  %1164 = vmatprep.subr.bf16.mxu0 0
  %1165 = vmatpush1.bf16.msra.mxu0 %v879
  %1166 = vmatprep.subr.bf16.mxu0 0
  %1167 = vmatpush1.bf16.msra.mxu0 %v878
  %1168 = vmatprep.subr.bf16.mxu0 0
  %1169 = vmatpush1.bf16.msra.mxu0 %v877
  %1170 = vmatprep.subr.bf16.mxu0 0
  %1171 = vmatpush1.bf16.msra.mxu0 %v876
  %1172 = vmatprep.subr.bf16.mxu0 0
  %1173 = vmatpush2.bf16.msra.mxu0 %v891
  %1174 = vmatprep.subr.bf16.mxu0 0
  %1175 = vmatpush2.bf16.msra.mxu0 %v890
  %1176 = vmatprep.subr.bf16.mxu0 0
  %1177 = vmatpush2.bf16.msra.mxu0 %v889
  %1178 = vmatprep.subr.bf16.mxu0 0
  %1179 = vmatpush2.bf16.msra.mxu0 %v888
  %1180 = vmatprep.subr.bf16.mxu0 0
  %1181 = vmatpush2.bf16.msra.mxu0 %v887
  %1182 = vmatprep.subr.bf16.mxu0 0
  %1183 = vmatpush2.bf16.msra.mxu0 %v886
  %1184 = vmatprep.subr.bf16.mxu0 0
  %1185 = vmatpush2.bf16.msra.mxu0 %v885
  %1186 = vmatprep.subr.bf16.mxu0 0
  %1187 = vmatpush2.bf16.msra.mxu0 %v884
  %1188 = vmatprep.mubr.bf16.mxu0 %v319
  %1189 = vmatmul.mubr.bf16.gmra.mxu0 %v318
  %v1190 = vpop.f32.mrf.mxu0
  %v1191 = vadd.f32 %v1151, %v1190
  %v1192 = vpop.f32.mrf.mxu0
  %v1193 = vpop.f32.mrf.mxu0
  %v1194 = vpop.f32.mrf.mxu0
  %1195 = vdwg.mxu0
  %1196 = vmatprep.subr.bf16.mxu0 0
  %1197 = vmatpush1.bf16.msra.mxu0 %v899
  %1198 = vmatprep.subr.bf16.mxu0 0
  %1199 = vmatpush1.bf16.msra.mxu0 %v898
  %1200 = vmatprep.subr.bf16.mxu0 0
  %1201 = vmatpush1.bf16.msra.mxu0 %v897
  %1202 = vmatprep.subr.bf16.mxu0 0
  %1203 = vmatpush1.bf16.msra.mxu0 %v896
  %1204 = vmatprep.subr.bf16.mxu0 0
  %1205 = vmatpush1.bf16.msra.mxu0 %v895
  %1206 = vmatprep.subr.bf16.mxu0 0
  %1207 = vmatpush1.bf16.msra.mxu0 %v894
  %1208 = vmatprep.subr.bf16.mxu0 0
  %1209 = vmatpush1.bf16.msra.mxu0 %v893
  %1210 = vmatprep.subr.bf16.mxu0 0
  %1211 = vmatpush1.bf16.msra.mxu0 %v892
  %1212 = vmatprep.subr.bf16.mxu0 0
  %1213 = vmatpush2.bf16.msra.mxu0 %v907
  %1214 = vmatprep.subr.bf16.mxu0 0
  %1215 = vmatpush2.bf16.msra.mxu0 %v906
  %1216 = vmatprep.subr.bf16.mxu0 0
  %1217 = vmatpush2.bf16.msra.mxu0 %v905
  %1218 = vmatprep.subr.bf16.mxu0 0
  %1219 = vmatpush2.bf16.msra.mxu0 %v904
  %1220 = vmatprep.subr.bf16.mxu0 0
  %1221 = vmatpush2.bf16.msra.mxu0 %v903
  %1222 = vmatprep.subr.bf16.mxu0 0
  %1223 = vmatpush2.bf16.msra.mxu0 %v902
  %1224 = vmatprep.subr.bf16.mxu0 0
  %1225 = vmatpush2.bf16.msra.mxu0 %v901
  %1226 = vmatprep.subr.bf16.mxu0 0
  %1227 = vmatpush2.bf16.msra.mxu0 %v900
  %1228 = vmatprep.mubr.bf16.mxu0 %v321
  %1229 = vmatmul.mubr.bf16.gmra.mxu0 %v320
  %v1230 = vpop.f32.mrf.mxu0
  %v1231 = vadd.f32 %v1191, %v1230
  %v1232 = vpop.f32.mrf.mxu0
  %v1233 = vpop.f32.mrf.mxu0
  %v1234 = vpop.f32.mrf.mxu0
  %1235 = vdwg.mxu0
  %1236 = vmatprep.subr.bf16.mxu0 0
  %1237 = vmatpush1.bf16.msra.mxu0 %v915
  %1238 = vmatprep.subr.bf16.mxu0 0
  %1239 = vmatpush1.bf16.msra.mxu0 %v914
  %1240 = vmatprep.subr.bf16.mxu0 0
  %1241 = vmatpush1.bf16.msra.mxu0 %v913
  %1242 = vmatprep.subr.bf16.mxu0 0
  %1243 = vmatpush1.bf16.msra.mxu0 %v912
  %1244 = vmatprep.subr.bf16.mxu0 0
  %1245 = vmatpush1.bf16.msra.mxu0 %v911
  %1246 = vmatprep.subr.bf16.mxu0 0
  %1247 = vmatpush1.bf16.msra.mxu0 %v910
  %1248 = vmatprep.subr.bf16.mxu0 0
  %1249 = vmatpush1.bf16.msra.mxu0 %v909
  %1250 = vmatprep.subr.bf16.mxu0 0
  %1251 = vmatpush1.bf16.msra.mxu0 %v908
  %1252 = vmatprep.subr.bf16.mxu0 0
  %1253 = vmatpush2.bf16.msra.mxu0 %v923
  %1254 = vmatprep.subr.bf16.mxu0 0
  %1255 = vmatpush2.bf16.msra.mxu0 %v922
  %1256 = vmatprep.subr.bf16.mxu0 0
  %1257 = vmatpush2.bf16.msra.mxu0 %v921
  %1258 = vmatprep.subr.bf16.mxu0 0
  %1259 = vmatpush2.bf16.msra.mxu0 %v920
  %1260 = vmatprep.subr.bf16.mxu0 0
  %1261 = vmatpush2.bf16.msra.mxu0 %v919
  %1262 = vmatprep.subr.bf16.mxu0 0
  %1263 = vmatpush2.bf16.msra.mxu0 %v918
  %1264 = vmatprep.subr.bf16.mxu0 0
  %1265 = vmatpush2.bf16.msra.mxu0 %v917
  %1266 = vmatprep.subr.bf16.mxu0 0
  %1267 = vmatpush2.bf16.msra.mxu0 %v916
  %1268 = vmatprep.mubr.bf16.mxu0 %v323
  %1269 = vmatmul.mubr.bf16.gmra.mxu0 %v322
  %v1270 = vpop.f32.mrf.mxu0
  %v1271 = vadd.f32 %v1231, %v1270
  %v1272 = vpop.f32.mrf.mxu0
  %v1273 = vpop.f32.mrf.mxu0
  %v1274 = vpop.f32.mrf.mxu0
  %1275 = vdwg.mxu0
  %1276 = vmatprep.subr.bf16.mxu0 0
  %1277 = vmatpush1.bf16.msra.mxu0 %v931
  %1278 = vmatprep.subr.bf16.mxu0 0
  %1279 = vmatpush1.bf16.msra.mxu0 %v930
  %1280 = vmatprep.subr.bf16.mxu0 0
  %1281 = vmatpush1.bf16.msra.mxu0 %v929
  %1282 = vmatprep.subr.bf16.mxu0 0
  %1283 = vmatpush1.bf16.msra.mxu0 %v928
  %1284 = vmatprep.subr.bf16.mxu0 0
  %1285 = vmatpush1.bf16.msra.mxu0 %v927
  %1286 = vmatprep.subr.bf16.mxu0 0
  %1287 = vmatpush1.bf16.msra.mxu0 %v926
  %1288 = vmatprep.subr.bf16.mxu0 0
  %1289 = vmatpush1.bf16.msra.mxu0 %v925
  %1290 = vmatprep.subr.bf16.mxu0 0
  %1291 = vmatpush1.bf16.msra.mxu0 %v924
  %1292 = vmatprep.subr.bf16.mxu0 0
  %1293 = vmatpush2.bf16.msra.mxu0 %v939
  %1294 = vmatprep.subr.bf16.mxu0 0
  %1295 = vmatpush2.bf16.msra.mxu0 %v938
  %1296 = vmatprep.subr.bf16.mxu0 0
  %1297 = vmatpush2.bf16.msra.mxu0 %v937
  %1298 = vmatprep.subr.bf16.mxu0 0
  %1299 = vmatpush2.bf16.msra.mxu0 %v936
  %1300 = vmatprep.subr.bf16.mxu0 0
  %1301 = vmatpush2.bf16.msra.mxu0 %v935
  %1302 = vmatprep.subr.bf16.mxu0 0
  %1303 = vmatpush2.bf16.msra.mxu0 %v934
  %1304 = vmatprep.subr.bf16.mxu0 0
  %1305 = vmatpush2.bf16.msra.mxu0 %v933
  %1306 = vmatprep.subr.bf16.mxu0 0
  %1307 = vmatpush2.bf16.msra.mxu0 %v932
  %1308 = vmatprep.mubr.bf16.mxu0 %v325
  %1309 = vmatmul.mubr.bf16.gmra.mxu0 %v324
  %v1310 = vpop.f32.mrf.mxu0
  %v1311 = vadd.f32 %v1271, %v1310
  %v1312 = vpop.f32.mrf.mxu0
  %v1313 = vpop.f32.mrf.mxu0
  %v1314 = vpop.f32.mrf.mxu0
  %1315 = vdwg.mxu0
  %1316 = vmatprep.subr.bf16.mxu0 0
  %1317 = vmatpush1.bf16.msra.mxu0 %v947
  %1318 = vmatprep.subr.bf16.mxu0 0
  %1319 = vmatpush1.bf16.msra.mxu0 %v946
  %1320 = vmatprep.subr.bf16.mxu0 0
  %1321 = vmatpush1.bf16.msra.mxu0 %v945
  %1322 = vmatprep.subr.bf16.mxu0 0
  %1323 = vmatpush1.bf16.msra.mxu0 %v944
  %1324 = vmatprep.subr.bf16.mxu0 0
  %1325 = vmatpush1.bf16.msra.mxu0 %v943
  %1326 = vmatprep.subr.bf16.mxu0 0
  %1327 = vmatpush1.bf16.msra.mxu0 %v942
  %1328 = vmatprep.subr.bf16.mxu0 0
  %1329 = vmatpush1.bf16.msra.mxu0 %v941
  %1330 = vmatprep.subr.bf16.mxu0 0
  %1331 = vmatpush1.bf16.msra.mxu0 %v940
  %1332 = vmatprep.subr.bf16.mxu0 0
  %1333 = vmatpush2.bf16.msra.mxu0 %v955
  %1334 = vmatprep.subr.bf16.mxu0 0
  %1335 = vmatpush2.bf16.msra.mxu0 %v954
  %1336 = vmatprep.subr.bf16.mxu0 0
  %1337 = vmatpush2.bf16.msra.mxu0 %v953
  %1338 = vmatprep.subr.bf16.mxu0 0
  %1339 = vmatpush2.bf16.msra.mxu0 %v952
  %1340 = vmatprep.subr.bf16.mxu0 0
  %1341 = vmatpush2.bf16.msra.mxu0 %v951
  %1342 = vmatprep.subr.bf16.mxu0 0
  %1343 = vmatpush2.bf16.msra.mxu0 %v950
  %1344 = vmatprep.subr.bf16.mxu0 0
  %1345 = vmatpush2.bf16.msra.mxu0 %v949
  %1346 = vmatprep.subr.bf16.mxu0 0
  %1347 = vmatpush2.bf16.msra.mxu0 %v948
  %1348 = vmatprep.mubr.bf16.mxu0 %v327
  %1349 = vmatmul.mubr.bf16.gmra.mxu0 %v326
  %v1350 = vpop.f32.mrf.mxu0
  %v1351 = vadd.f32 %v1311, %v1350
  %v1352 = vpop.f32.mrf.mxu0
  %v1353 = vpop.f32.mrf.mxu0
  %v1354 = vpop.f32.mrf.mxu0
  %1355 = vdwg.mxu0
  %1356 = vmatprep.subr.bf16.mxu0 0
  %1357 = vmatpush1.bf16.msra.mxu0 %v963
  %1358 = vmatprep.subr.bf16.mxu0 0
  %1359 = vmatpush1.bf16.msra.mxu0 %v962
  %1360 = vmatprep.subr.bf16.mxu0 0
  %1361 = vmatpush1.bf16.msra.mxu0 %v961
  %1362 = vmatprep.subr.bf16.mxu0 0
  %1363 = vmatpush1.bf16.msra.mxu0 %v960
  %1364 = vmatprep.subr.bf16.mxu0 0
  %1365 = vmatpush1.bf16.msra.mxu0 %v959
  %1366 = vmatprep.subr.bf16.mxu0 0
  %1367 = vmatpush1.bf16.msra.mxu0 %v958
  %1368 = vmatprep.subr.bf16.mxu0 0
  %1369 = vmatpush1.bf16.msra.mxu0 %v957
  %1370 = vmatprep.subr.bf16.mxu0 0
  %1371 = vmatpush1.bf16.msra.mxu0 %v956
  %1372 = vmatprep.subr.bf16.mxu0 0
  %1373 = vmatpush2.bf16.msra.mxu0 %v971
  %1374 = vmatprep.subr.bf16.mxu0 0
  %1375 = vmatpush2.bf16.msra.mxu0 %v970
  %1376 = vmatprep.subr.bf16.mxu0 0
  %1377 = vmatpush2.bf16.msra.mxu0 %v969
  %1378 = vmatprep.subr.bf16.mxu0 0
  %1379 = vmatpush2.bf16.msra.mxu0 %v968
  %1380 = vmatprep.subr.bf16.mxu0 0
  %1381 = vmatpush2.bf16.msra.mxu0 %v967
  %1382 = vmatprep.subr.bf16.mxu0 0
  %1383 = vmatpush2.bf16.msra.mxu0 %v966
  %1384 = vmatprep.subr.bf16.mxu0 0
  %1385 = vmatpush2.bf16.msra.mxu0 %v965
  %1386 = vmatprep.subr.bf16.mxu0 0
  %1387 = vmatpush2.bf16.msra.mxu0 %v964
  %1388 = vmatprep.mubr.bf16.mxu0 %v329
  %1389 = vmatmul.mubr.bf16.gmra.mxu0 %v328
  %v1390 = vpop.f32.mrf.mxu0
  %v1391 = vadd.f32 %v1351, %v1390
  %v1392 = vpop.f32.mrf.mxu0
  %v1393 = vpop.f32.mrf.mxu0
  %v1394 = vpop.f32.mrf.mxu0
  %1395 = vdwg.mxu0
  %1396 = vmatprep.subr.bf16.mxu0 0
  %1397 = vmatpush1.bf16.msra.mxu0 %v979
  %1398 = vmatprep.subr.bf16.mxu0 0
  %1399 = vmatpush1.bf16.msra.mxu0 %v978
  %1400 = vmatprep.subr.bf16.mxu0 0
  %1401 = vmatpush1.bf16.msra.mxu0 %v977
  %1402 = vmatprep.subr.bf16.mxu0 0
  %1403 = vmatpush1.bf16.msra.mxu0 %v976
  %1404 = vmatprep.subr.bf16.mxu0 0
  %1405 = vmatpush1.bf16.msra.mxu0 %v975
  %1406 = vmatprep.subr.bf16.mxu0 0
  %1407 = vmatpush1.bf16.msra.mxu0 %v974
  %1408 = vmatprep.subr.bf16.mxu0 0
  %1409 = vmatpush1.bf16.msra.mxu0 %v973
  %1410 = vmatprep.subr.bf16.mxu0 0
  %1411 = vmatpush1.bf16.msra.mxu0 %v972
  %1412 = vmatprep.subr.bf16.mxu0 0
  %1413 = vmatpush2.bf16.msra.mxu0 %v987
  %1414 = vmatprep.subr.bf16.mxu0 0
  %1415 = vmatpush2.bf16.msra.mxu0 %v986
  %1416 = vmatprep.subr.bf16.mxu0 0
  %1417 = vmatpush2.bf16.msra.mxu0 %v985
  %1418 = vmatprep.subr.bf16.mxu0 0
  %1419 = vmatpush2.bf16.msra.mxu0 %v984
  %1420 = vmatprep.subr.bf16.mxu0 0
  %1421 = vmatpush2.bf16.msra.mxu0 %v983
  %1422 = vmatprep.subr.bf16.mxu0 0
  %1423 = vmatpush2.bf16.msra.mxu0 %v982
  %1424 = vmatprep.subr.bf16.mxu0 0
  %1425 = vmatpush2.bf16.msra.mxu0 %v981
  %1426 = vmatprep.subr.bf16.mxu0 0
  %1427 = vmatpush2.bf16.msra.mxu0 %v980
  %1428 = vmatprep.mubr.bf16.mxu0 %v331
  %1429 = vmatmul.mubr.bf16.gmra.mxu0 %v330
  %v1430 = vpop.f32.mrf.mxu0
  %v1431 = vadd.f32 %v1391, %v1430
  %v1432 = vpop.f32.mrf.mxu0
  %v1433 = vpop.f32.mrf.mxu0
  %v1434 = vpop.f32.mrf.mxu0
  %1435 = vdwg.mxu0
  %v1436 = vmax.f32 %v1431, 0.0
  %v1437 = vpack.c.bf16 %v1436, %v1436
  %v1438 = vld [vmem:[%s3] sm:$0xf]
  %v1439 = vld [vmem:[%s3 + $0x4] sm:$0xf]
  %v1440 = vld [vmem:[%s3 + $0x8] sm:$0xf]
  %v1441 = vld [vmem:[%s3 + $0xc] sm:$0xf]
  %v1442 = vld [vmem:[%s3 + $0x10] sm:$0xf]
  %v1443 = vld [vmem:[%s3 + $0x14] sm:$0xf]
  %v1444 = vld [vmem:[%s3 + $0x18] sm:$0xf]
  %v1445 = vld [vmem:[%s3 + $0x1c] sm:$0xf]
  %v1446 = vld [vmem:[%s3 + $0x20] sm:$0xf]
  %v1447 = vld [vmem:[%s3 + $0x24] sm:$0xf]
  %v1448 = vld [vmem:[%s3 + $0x28] sm:$0xf]
  %v1449 = vld [vmem:[%s3 + $0x2c] sm:$0xf]
  %v1450 = vld [vmem:[%s3 + $0x30] sm:$0xf]
  %v1451 = vld [vmem:[%s3 + $0x34] sm:$0xf]
  %v1452 = vld [vmem:[%s3 + $0x38] sm:$0xf]
  %v1453 = vld [vmem:[%s3 + $0x3c] sm:$0xf]
  %v1454 = vld [vmem:[%s4] sm:$0x1]
  %v1456 = vlaneseq
  %v1457 = vshrl.u32 %v1456, 7
  %v1458 = vsub.s32 0, %v1457
  %v1459 = vrot.slane %v1454, %v1458
  %v1477 = vunpack.c.l.b16 %v1438
  %v1478 = vunpack.c.l.b16 %v1439
  %v1479 = vunpack.c.l.b16 %v1440
  %v1480 = vunpack.c.l.b16 %v1441
  %v1481 = vunpack.c.l.b16 %v1442
  %v1482 = vunpack.c.l.b16 %v1443
  %v1483 = vunpack.c.l.b16 %v1444
  %v1484 = vunpack.c.l.b16 %v1445
  %v1485 = vunpack.c.l.b16 %v1446
  %v1486 = vunpack.c.l.b16 %v1447
  %v1487 = vunpack.c.l.b16 %v1448
  %v1488 = vunpack.c.l.b16 %v1449
  %v1489 = vunpack.c.l.b16 %v1450
  %v1490 = vunpack.c.l.b16 %v1451
  %v1491 = vunpack.c.l.b16 %v1452
  %v1492 = vunpack.c.l.b16 %v1453
  %v1493 = vpack.c.b16 %v1478, %v1477
  %v1494 = vpack.c.b16 %v1480, %v1479
  %v1495 = vpack.c.b16 %v1482, %v1481
  %v1496 = vpack.c.b16 %v1484, %v1483
  %v1497 = vpack.c.b16 %v1486, %v1485
  %v1498 = vpack.c.b16 %v1488, %v1487
  %v1499 = vpack.c.b16 %v1490, %v1489
  %v1500 = vpack.c.b16 %v1492, %v1491
  %1509 = vmatprep.subr.bf16.mxu0 0
  %1510 = vmatpush1.bf16.msra.mxu0 %v1500
  %1511 = vmatprep.subr.bf16.mxu0 0
  %1512 = vmatpush1.bf16.msra.mxu0 %v1499
  %1513 = vmatprep.subr.bf16.mxu0 0
  %1514 = vmatpush1.bf16.msra.mxu0 %v1498
  %1515 = vmatprep.subr.bf16.mxu0 0
  %1516 = vmatpush1.bf16.msra.mxu0 %v1497
  %1517 = vmatprep.subr.bf16.mxu0 0
  %1518 = vmatpush1.bf16.msra.mxu0 %v1496
  %1519 = vmatprep.subr.bf16.mxu0 0
  %1520 = vmatpush1.bf16.msra.mxu0 %v1495
  %1521 = vmatprep.subr.bf16.mxu0 0
  %1522 = vmatpush1.bf16.msra.mxu0 %v1494
  %1523 = vmatprep.subr.bf16.mxu0 0
  %1524 = vmatpush1.bf16.msra.mxu0 %v1493
  %1525 = vmatprep.subr.bf16.mxu0 0
  %1526 = vmatpush2.bf16.msra.mxu0 0
  %1527 = vmatprep.subr.bf16.mxu0 0
  %1528 = vmatpush2.bf16.msra.mxu0 0
  %1529 = vmatprep.subr.bf16.mxu0 0
  %1530 = vmatpush2.bf16.msra.mxu0 0
  %1531 = vmatprep.subr.bf16.mxu0 0
  %1532 = vmatpush2.bf16.msra.mxu0 0
  %1533 = vmatprep.subr.bf16.mxu0 0
  %1534 = vmatpush2.bf16.msra.mxu0 0
  %1535 = vmatprep.subr.bf16.mxu0 0
  %1536 = vmatpush2.bf16.msra.mxu0 0
  %1537 = vmatprep.subr.bf16.mxu0 0
  %1538 = vmatpush2.bf16.msra.mxu0 0
  %1539 = vmatprep.subr.bf16.mxu0 0
  %1540 = vmatpush2.bf16.msra.mxu0 0
  %1541 = vmatprep.mubr.bf16.mxu0 0
  %1542 = vmatmul.mubr.bf16.gmra.mxu0 %v1437
  %v1543 = vpop.f32.mrf.mxu0
  %v1544 = vadd.f32 %v1459, %v1543
  %v1545 = vpop.f32.mrf.mxu0
  %v1546 = vpop.f32.mrf.mxu0
  %v1547 = vpop.f32.mrf.mxu0
  %1548 = vdwg.mxu0
  %1549 = vst [vmem:[%s5] sm:$0xff] %v1544
  // Predicated region
  $region22: #{cnn_forward.11} parent=0 // pred_check
    _
  $region23: #{cnn_forward.11} parent=0 // pred_check_branch
    %1551 = sbr.rel (0) target = $region25
  $region24: #{cnn_forward.11} parent=0 // pred_region
    _
  $region25: #{cnn_forward.11} parent=0 // pred_fallthru
    _
  // Predicated region
  $region26: #{cnn_forward.11} parent=0 // pred_check
    _
  $region27: #{cnn_forward.11} parent=0 // pred_check_branch
    %1553 = sbr.rel (0) target = $region29
  $region28: #{cnn_forward.11} parent=0 // pred_region
    _
  $region29: #{cnn_forward.11} parent=0 // pred_fallthru
    _

</llo_original>
